<compile_context>
chip_gen: v6e
topology: v6e:2x2x1
jax: 0.10.0
libtpu: 0.0.40
codegen_flags: <defaults>
</compile_context>

<pallas_src>
import functools

import jax
import jax.numpy as jnp
from jax.experimental import pallas as pl
from jax.experimental.pallas import tpu as pltpu

TEXT_DIM = 1024     # molt5-large encoder hidden size
GRAPH_DIM = 300     # MoMu graph2d node-feature size
PROJ_DIM = 768      # property_projection_{text,graph} output dim
MLP_HIDDEN = 256    # property_mlp hidden dim
LANE = 128          # TPU lane width

_INPUT_BLOCK_BUDGET = 12 * 1024 * 1024   # bytes for one (text + graph) input block set


def _round_up(x, m):
    return ((x + m - 1) // m) * m


def _git_head_kernel(pool, inv_seq_len,
                     text_ref, graph_ref,
                     wt_ref, bt_ref, wg_ref, bg_ref,
                     wft_ref, wfg_ref, bf_ref,
                     w1_ref, b1_ref, w2_ref, b2_ref,
                     out_ref, acc_ref):
    """Fused: streamed pooling -> projections -> FusionNet gate -> property MLP."""
    j = pl.program_id(1)                       # sequence-chunk (reduction) axis

    @pl.when(j == 0)
    def _():
        if pool == "avg":
            acc_ref[...] = jnp.zeros_like(acc_ref)
        else:
            acc_ref[...] = jnp.full(acc_ref.shape, -jnp.inf, acc_ref.dtype)

    # Stream this text-embedding chunk and accumulate the pooled statistic in f32.
    chunk = text_ref[...].astype(jnp.float32)          # (tile_b, tile_s, 1024)
    if pool == "avg":
        acc_ref[...] += jnp.sum(chunk, axis=1)
    else:
        acc_ref[...] = jnp.maximum(acc_ref[...], jnp.max(chunk, axis=1))

    @pl.when(j == pl.num_programs(1) - 1)
    def _():
        graph = graph_ref[...].astype(jnp.float32)      # (tile_b, N, 300)
        if pool == "avg":
            f_text = acc_ref[...] * inv_seq_len
            f_graph = jnp.mean(graph, axis=1)
        else:
            f_text = acc_ref[...]
            f_graph = jnp.max(graph, axis=1)

        # property projections: bf16 weights on the MXU, f32 accumulation.
        f_text = jnp.dot(f_text.astype(jnp.bfloat16), wt_ref[...],
                         preferred_element_type=jnp.float32) + bt_ref[...]
        f_graph = jnp.dot(f_graph.astype(jnp.bfloat16), wg_ref[...],
                          preferred_element_type=jnp.float32) + bg_ref[...]

        # FusionNet gate (fusion_mode == 'weight').  w_fuse is pre-split into
        # text/graph halves so no concat buffer is materialized, and the N=1
        # "matmul" is a VPU multiply + row reduce instead of a padded MXU op.
        logit = (jnp.sum(f_text * wft_ref[...], axis=-1, keepdims=True)
                 + jnp.sum(f_graph * wfg_ref[...], axis=-1, keepdims=True)
                 + bf_ref[...])
        gate = jax.nn.sigmoid(logit)
        fused = gate * f_text + (1.0 - gate) * f_graph

        # property_mlp: Linear -> ReLU -> (Dropout == identity in eval) -> Linear
        h = jnp.dot(fused.astype(jnp.bfloat16), w1_ref[...],
                    preferred_element_type=jnp.float32) + b1_ref[...]
        h = jnp.maximum(h, 0.0)
        out_ref[...] = jnp.dot(h.astype(jnp.bfloat16), w2_ref[...],
                               preferred_element_type=jnp.float32) + b2_ref[...]


def _choose_tiles(B, S, N, itemsize):
    """Pick (tile_b, tile_s) so double-buffered input blocks stay VMEM-friendly
    (sized for v7x's 64 MiB physical / 32 MiB default scoped VMEM)."""
    tile_s = min(S, 128)                      # full dim if short, else 128-chunks
    b_cap = _round_up(max(B, 1), 8)
    tile_b = 8
    for cand in (256, 128, 64, 32, 16, 8):
        if cand > b_cap:
            continue
        blk = cand * (tile_s * TEXT_DIM + N * GRAPH_DIM) * itemsize
        if blk <= _INPUT_BLOCK_BUDGET:
            tile_b = cand
            break
    return tile_b, tile_s


def git_property_head(smiles_embeddings, graph_embeddings, params, *,
                      pool="avg", num_tasks):
    """GITModel.forward() given encoder outputs.  Returns (B, num_tasks) f32."""
    B, S, _ = smiles_embeddings.shape
    N = graph_embeddings.shape[1]
    out_pad = max(LANE, _round_up(num_tasks, LANE))   # lane-dense output stores

    itemsize = max(smiles_embeddings.dtype.itemsize, graph_embeddings.dtype.itemsize)
    tile_b, tile_s = _choose_tiles(B, S, N, itemsize)
    b_pad = _round_up(B, tile_b)
    s_pad = _round_up(S, tile_s)

    fill = 0.0 if pool == "avg" else -3.0e38
    text = smiles_embeddings
    graph = graph_embeddings
    if b_pad != B or s_pad != S:
        text = jnp.pad(text, ((0, b_pad - B), (0, s_pad - S), (0, 0)),
                       constant_values=fill)
    if b_pad != B:
        graph = jnp.pad(graph, ((0, b_pad - B), (0, 0), (0, 0)),
                        constant_values=fill)

    weights = (
        params["w_text"], params["b_text"],
        params["w_graph"], params["b_graph"],
        params["wf_text"], params["wf_graph"], params["b_fuse"],
        params["w_mlp1"], params["b_mlp1"],
        params["w_mlp2"], params["b_mlp2"],
    )
    inputs = (text, graph) + weights

    grid = (b_pad // tile_b, s_pad // tile_s)

    # Streamed/tiled data blocks; weights use a constant index_map so they are
    # DMA'd once and stay VMEM-resident across every grid step.
    in_specs = [
        pl.BlockSpec((tile_b, tile_s, TEXT_DIM), lambda i, j: (i, j, 0)),
        pl.BlockSpec((tile_b, N, GRAPH_DIM), lambda i, j: (i, 0, 0)),
    ] + [pl.BlockSpec(w.shape, lambda i, j: (0, 0)) for w in weights]
    out_specs = pl.BlockSpec((tile_b, out_pad), lambda i, j: (i, 0))

    # Explicit VMEM budget: double-buffered streamed blocks + resident weights
    # + accumulator, with headroom, capped for v7x's 64 MiB physical VMEM.
    text_blk = tile_b * tile_s * TEXT_DIM * text.dtype.itemsize
    graph_blk = tile_b * N * GRAPH_DIM * graph.dtype.itemsize
    weight_bytes = sum(int(w.size) * w.dtype.itemsize for w in weights)
    out_blk = tile_b * out_pad * 4
    acc_blk = tile_b * TEXT_DIM * 4
    vmem_limit = int(1.5 * (2 * (text_blk + graph_blk + out_blk)
                            + weight_bytes + acc_blk)) + (4 << 20)
    vmem_limit = max(32 << 20, min(vmem_limit, 64 << 20))

    flops = (2 * b_pad * (TEXT_DIM * PROJ_DIM + GRAPH_DIM * PROJ_DIM
                          + 2 * PROJ_DIM + PROJ_DIM * MLP_HIDDEN
                          + MLP_HIDDEN * out_pad)
             + b_pad * (s_pad * TEXT_DIM + N * GRAPH_DIM))
    bytes_accessed = (int(text.size) * text.dtype.itemsize
                      + int(graph.size) * graph.dtype.itemsize
                      + weight_bytes + b_pad * out_pad * 4)

    out_full = pl.pallas_call(
        functools.partial(_git_head_kernel, pool, float(1.0 / S)),
        out_shape=jax.ShapeDtypeStruct((b_pad, out_pad), jnp.float32),
        grid_spec=pltpu.PrefetchScalarGridSpec(
            num_scalar_prefetch=0,
            grid=grid,
            in_specs=in_specs,
            out_specs=out_specs,
            scratch_shapes=[pltpu.VMEM((tile_b, TEXT_DIM), jnp.float32)]),
        compiler_params=pltpu.CompilerParams(
            dimension_semantics=("parallel", "arbitrary"),
            vmem_limit_bytes=vmem_limit),
        cost_estimate=pl.CostEstimate(
            flops=flops, transcendentals=b_pad, bytes_accessed=bytes_accessed),
    )(*inputs)

    return out_full[:B, :num_tasks]


class GITModelPallas:
    """Pallas equivalent of GITModel's property-prediction forward pass.

    Holds the post-encoder parameters pre-laid-out for the kernel: matmul
    weights as (in, out) bf16, biases and the FusionNet gate vectors as f32,
    final layer zero-padded to a lane-dense 128-wide output.
    """

    def __init__(self, num_tasks, pool="avg", key=None):
        key = jax.random.PRNGKey(0) if key is None else key
        ks = jax.random.split(key, 11)

        def linear(kw, kb, fan_in, fan_out, w_dtype=jnp.bfloat16):
            w = (jax.random.normal(kw, (fan_in, fan_out), jnp.float32)
                 / jnp.sqrt(jnp.float32(fan_in))).astype(w_dtype)
            b = jax.random.normal(kb, (1, fan_out), jnp.float32) * 0.01
            return w, b

        self.num_tasks = num_tasks
        self.pool = pool
        out_pad = max(LANE, _round_up(num_tasks, LANE))

        p = {}
        p["w_text"], p["b_text"] = linear(ks[0], ks[1], TEXT_DIM, PROJ_DIM)
        p["w_graph"], p["b_graph"] = linear(ks[2], ks[3], GRAPH_DIM, PROJ_DIM)
        # FusionNet fc(1536 -> 1), pre-split into text/graph halves (no concat
        # inside the kernel); gate math stays f32 on the VPU.
        p["wf_text"] = (jax.random.normal(ks[4], (1, PROJ_DIM), jnp.float32)
                        / jnp.sqrt(jnp.float32(2 * PROJ_DIM)))
        p["wf_graph"] = (jax.random.normal(ks[5], (1, PROJ_DIM), jnp.float32)
                         / jnp.sqrt(jnp.float32(2 * PROJ_DIM)))
        p["b_fuse"] = jax.random.normal(ks[6], (1, 1), jnp.float32) * 0.01
        p["w_mlp1"], p["b_mlp1"] = linear(ks[7], ks[8], PROJ_DIM, MLP_HIDDEN)
        # Final layer zero-padded from num_tasks to a lane-dense width.
        w2, b2 = linear(ks[9], ks[10], MLP_HIDDEN, num_tasks, w_dtype=jnp.float32)
        p["w_mlp2"] = jnp.pad(w2, ((0, 0), (0, out_pad - num_tasks))).astype(jnp.bfloat16)
        p["b_mlp2"] = jnp.pad(b2, ((0, 0), (0, out_pad - num_tasks)))
        self.params = p

    def __call__(self, smiles_embeddings, graph_embeddings):
        return git_property_head(smiles_embeddings, graph_embeddings,
                                 self.params, pool=self.pool,
                                 num_tasks=self.num_tasks)


def _ref_forward(params, text_emb, graph_emb, pool, num_tasks):
    """Pure-JAX reference with identical semantics / precision policy."""
    if pool == "avg":
        ft = jnp.mean(text_emb, axis=1)
        fg = jnp.mean(graph_emb, axis=1)
    else:
        ft = jnp.max(text_emb, axis=1)
        fg = jnp.max(graph_emb, axis=1)
    ft = jnp.dot(ft.astype(jnp.bfloat16), params["w_text"],
                 preferred_element_type=jnp.float32) + params["b_text"]
    fg = jnp.dot(fg.astype(jnp.bfloat16), params["w_graph"],
                 preferred_element_type=jnp.float32) + params["b_graph"]
    logit = (jnp.sum(ft * params["wf_text"], axis=-1, keepdims=True)
             + jnp.sum(fg * params["wf_graph"], axis=-1, keepdims=True)
             + params["b_fuse"])
    gate = jax.nn.sigmoid(logit)
    fused = gate * ft + (1.0 - gate) * fg
    h = jnp.maximum(jnp.dot(fused.astype(jnp.bfloat16), params["w_mlp1"],
                            preferred_element_type=jnp.float32) + params["b_mlp1"],
                    0.0)
    out = jnp.dot(h.astype(jnp.bfloat16), params["w_mlp2"],
                  preferred_element_type=jnp.float32) + params["b_mlp2"]
    return out[:, :num_tasks]


if __name__ == "__main__":
    key = jax.random.PRNGKey(0)
    k_text, k_graph, k_params = jax.random.split(key, 3)

    # Small shapes consistent with the module: batch=2, SMILES seq len=8 (T5
    # encoder dim 1024), graph nodes=16 (MoMu dim 300), num_tasks=3.
    B, S, N, num_tasks = 2, 8, 16, 3
    smiles_embeddings = jax.random.normal(k_text, (B, S, TEXT_DIM), jnp.float32)
    graph_embeddings = jax.random.normal(k_graph, (B, N, GRAPH_DIM), jnp.float32)

    model = GITModelPallas(num_tasks=num_tasks, pool="avg", key=k_params)
    out = jax.block_until_ready(model(smiles_embeddings, graph_embeddings))

    ref = _ref_forward(model.params, smiles_embeddings, graph_embeddings,
                       "avg", num_tasks)
    assert out.shape == (B, num_tasks), out.shape
    assert jnp.allclose(out, ref, atol=1e-2, rtol=1e-2), (out, ref)

    print("KERNEL_OK")
</pallas_src>

<mosaic_0001>
module attributes {stable_mosaic.version = 11 : i64} {
  func.func @_git_head_kernel(%arg0: i32, %arg1: i32, %arg2: memref<8x8x1024xf32, #tpu.memory_space<vmem>>, %arg3: memref<8x16x300xf32, #tpu.memory_space<vmem>>, %arg4: memref<1024x768xbf16, #tpu.memory_space<vmem>>, %arg5: memref<1x768xf32, #tpu.memory_space<vmem>>, %arg6: memref<300x768xbf16, #tpu.memory_space<vmem>>, %arg7: memref<1x768xf32, #tpu.memory_space<vmem>>, %arg8: memref<1x768xf32, #tpu.memory_space<vmem>>, %arg9: memref<1x768xf32, #tpu.memory_space<vmem>>, %arg10: memref<1x1xf32, #tpu.memory_space<vmem>>, %arg11: memref<768x256xbf16, #tpu.memory_space<vmem>>, %arg12: memref<1x256xf32, #tpu.memory_space<vmem>>, %arg13: memref<256x128xbf16, #tpu.memory_space<vmem>>, %arg14: memref<1x128xf32, #tpu.memory_space<vmem>>, %arg15: memref<8x128xf32, #tpu.memory_space<vmem>>, %arg16: memref<8x1024xf32, #tpu.memory_space<vmem>>) attributes {dimension_semantics = [#tpu.dimension_semantics<parallel>, #tpu.dimension_semantics<arbitrary>], iteration_bounds = array<i64: 1, 1>, scalar_prefetch = 0 : i64, scratch_operands = 1 : i64, tpu.core_type = #tpu.core_type<tc>, window_params = [{transform_indices = @transform_0, window_bounds = array<i64: 8, 8, 1024>}, {transform_indices = @transform_1, window_bounds = array<i64: 8, 16, 300>}, {pipeline_mode = #tpu.pipeline_mode<synchronous>, transform_indices = @transform_2, window_bounds = array<i64: 1024, 768>}, {pipeline_mode = #tpu.pipeline_mode<synchronous>, transform_indices = @transform_3, window_bounds = array<i64: 1, 768>}, {pipeline_mode = #tpu.pipeline_mode<synchronous>, transform_indices = @transform_4, window_bounds = array<i64: 300, 768>}, {pipeline_mode = #tpu.pipeline_mode<synchronous>, transform_indices = @transform_5, window_bounds = array<i64: 1, 768>}, {pipeline_mode = #tpu.pipeline_mode<synchronous>, transform_indices = @transform_6, window_bounds = array<i64: 1, 768>}, {pipeline_mode = #tpu.pipeline_mode<synchronous>, transform_indices = @transform_7, window_bounds = array<i64: 1, 768>}, {pipeline_mode = #tpu.pipeline_mode<synchronous>, transform_indices = @transform_8, window_bounds = array<i64: 1, 1>}, {pipeline_mode = #tpu.pipeline_mode<synchronous>, transform_indices = @transform_9, window_bounds = array<i64: 768, 256>}, {pipeline_mode = #tpu.pipeline_mode<synchronous>, transform_indices = @transform_10, window_bounds = array<i64: 1, 256>}, {pipeline_mode = #tpu.pipeline_mode<synchronous>, transform_indices = @transform_11, window_bounds = array<i64: 256, 128>}, {pipeline_mode = #tpu.pipeline_mode<synchronous>, transform_indices = @transform_12, window_bounds = array<i64: 1, 128>}, {transform_indices = @transform_13, window_bounds = array<i64: 8, 128>}]} {
    %c0_i32 = arith.constant 0 : i32
    %0 = arith.cmpi eq, %arg1, %c0_i32 : i32
    %1 = arith.extui %0 : i1 to i32
    %c0_i32_0 = arith.constant 0 : i32
    %2 = arith.cmpi ne, %1, %c0_i32_0 : i32
    scf.if %2 {
      %cst_9 = arith.constant 0.000000e+00 : f32
      %11 = vector.broadcast %cst_9 : f32 to vector<8x1024xf32>
      %c0_10 = arith.constant 0 : index
      %c0_11 = arith.constant 0 : index
      %12 = vector.load %arg16[%c0_10, %c0_11] : memref<8x1024xf32, #tpu.memory_space<vmem>>, vector<8x1024xf32>
      tpu.vector_store %arg16[%c0_10, %c0_11], %11 {strides = array<i32>} : memref<8x1024xf32, #tpu.memory_space<vmem>>, vector<8x1024xf32>,
    } else {
    }
    %c0 = arith.constant 0 : index
    %c0_1 = arith.constant 0 : index
    %c0_2 = arith.constant 0 : index
    %3 = vector.load %arg2[%c0, %c0_1, %c0_2] : memref<8x8x1024xf32, #tpu.memory_space<vmem>>, vector<8x8x1024xf32>
    %c0_3 = arith.constant 0 : index
    %c0_4 = arith.constant 0 : index
    %4 = vector.load %arg16[%c0_3, %c0_4] : memref<8x1024xf32, #tpu.memory_space<vmem>>, vector<8x1024xf32>
    %cst = arith.constant dense<0.000000e+00> : vector<8x1024xf32>
    %5 = vector.multi_reduction <add>, %3, %cst [1] : vector<8x8x1024xf32> to vector<8x1024xf32>
    %6 = arith.addf %4, %5 : vector<8x1024xf32>
    %c0_5 = arith.constant 0 : index
    %c0_6 = arith.constant 0 : index
    %7 = vector.load %arg16[%c0_5, %c0_6] : memref<8x1024xf32, #tpu.memory_space<vmem>>, vector<8x1024xf32>
    tpu.vector_store %arg16[%c0_5, %c0_6], %6 {strides = array<i32>} : memref<8x1024xf32, #tpu.memory_space<vmem>>, vector<8x1024xf32>,
    %c0_i32_7 = arith.constant 0 : i32
    %8 = arith.cmpi eq, %arg1, %c0_i32_7 : i32
    %9 = arith.extui %8 : i1 to i32
    %c0_i32_8 = arith.constant 0 : i32
    %10 = arith.cmpi ne, %9, %c0_i32_8 : i32
    scf.if %10 {
      %c0_9 = arith.constant 0 : index
      %c0_10 = arith.constant 0 : index
      %c0_11 = arith.constant 0 : index
      %11 = vector.load %arg3[%c0_9, %c0_10, %c0_11] : memref<8x16x300xf32, #tpu.memory_space<vmem>>, vector<8x16x300xf32>
      %c0_12 = arith.constant 0 : index
      %c0_13 = arith.constant 0 : index
      %12 = vector.load %arg16[%c0_12, %c0_13] : memref<8x1024xf32, #tpu.memory_space<vmem>>, vector<8x1024xf32>
      %cst_14 = arith.constant 1.250000e-01 : f32
      %13 = vector.broadcast %cst_14 : f32 to vector<8x1024xf32>
      %14 = arith.mulf %12, %13 : vector<8x1024xf32>
      %cst_15 = arith.constant dense<0.000000e+00> : vector<8x300xf32>
      %15 = vector.multi_reduction <add>, %11, %cst_15 [1] : vector<8x16x300xf32> to vector<8x300xf32>
      %cst_16 = arith.constant 1.600000e+01 : f32
      %16 = vector.broadcast %cst_16 : f32 to vector<8x300xf32>
      %17 = arith.divf %15, %16 : vector<8x300xf32>
      %18 = arith.truncf %14 : vector<8x1024xf32> to vector<8x1024xbf16>
      %c0_17 = arith.constant 0 : index
      %c0_18 = arith.constant 0 : index
      %19 = vector.load %arg4[%c0_17, %c0_18] : memref<1024x768xbf16, #tpu.memory_space<vmem>>, vector<1024x768xbf16>
      %cst_19 = arith.constant dense<0.000000e+00> : vector<8x768xf32>
      %20 = tpu.matmul %18, %19, %cst_19 {dimension_numbers = #tpu.dot_dimension_numbers<[1], [0], [0], [1], [0, 0, 1, 1], [], []>} : vector<8x1024xbf16>, vector<1024x768xbf16>, vector<8x768xf32> -> vector<8x768xf32>
      %c0_20 = arith.constant 0 : index
      %c0_21 = arith.constant 0 : index
      %21 = vector.load %arg5[%c0_20, %c0_21] : memref<1x768xf32, #tpu.memory_space<vmem>>, vector<1x768xf32>
      %22 = vector.broadcast %21 : vector<1x768xf32> to vector<8x768xf32>
      %23 = arith.addf %20, %22 : vector<8x768xf32>
      %24 = arith.truncf %17 : vector<8x300xf32> to vector<8x300xbf16>
      %c0_22 = arith.constant 0 : index
      %c0_23 = arith.constant 0 : index
      %25 = vector.load %arg6[%c0_22, %c0_23] : memref<300x768xbf16, #tpu.memory_space<vmem>>, vector<300x768xbf16>
      %cst_24 = arith.constant dense<0.000000e+00> : vector<8x768xf32>
      %26 = tpu.matmul %24, %25, %cst_24 {dimension_numbers = #tpu.dot_dimension_numbers<[1], [0], [0], [1], [0, 0, 1, 1], [], []>} : vector<8x300xbf16>, vector<300x768xbf16>, vector<8x768xf32> -> vector<8x768xf32>
      %c0_25 = arith.constant 0 : index
      %c0_26 = arith.constant 0 : index
      %27 = vector.load %arg7[%c0_25, %c0_26] : memref<1x768xf32, #tpu.memory_space<vmem>>, vector<1x768xf32>
      %28 = vector.broadcast %27 : vector<1x768xf32> to vector<8x768xf32>
      %29 = arith.addf %26, %28 : vector<8x768xf32>
      %c0_27 = arith.constant 0 : index
      %c0_28 = arith.constant 0 : index
      %30 = vector.load %arg8[%c0_27, %c0_28] : memref<1x768xf32, #tpu.memory_space<vmem>>, vector<1x768xf32>
      %31 = vector.broadcast %30 : vector<1x768xf32> to vector<8x768xf32>
      %32 = arith.mulf %23, %31 : vector<8x768xf32>
      %cst_29 = arith.constant dense<0.000000e+00> : vector<8xf32>
      %33 = vector.multi_reduction <add>, %32, %cst_29 [1] : vector<8x768xf32> to vector<8xf32>
      %34 = vector.shape_cast %33 : vector<8xf32> to vector<8x1xf32>
      %c0_30 = arith.constant 0 : index
      %c0_31 = arith.constant 0 : index
      %35 = vector.load %arg9[%c0_30, %c0_31] : memref<1x768xf32, #tpu.memory_space<vmem>>, vector<1x768xf32>
      %36 = vector.broadcast %35 : vector<1x768xf32> to vector<8x768xf32>
      %37 = arith.mulf %29, %36 : vector<8x768xf32>
      %cst_32 = arith.constant dense<0.000000e+00> : vector<8xf32>
      %38 = vector.multi_reduction <add>, %37, %cst_32 [1] : vector<8x768xf32> to vector<8xf32>
      %39 = vector.shape_cast %38 : vector<8xf32> to vector<8x1xf32>
      %40 = arith.addf %34, %39 : vector<8x1xf32>
      %c0_33 = arith.constant 0 : index
      %c0_34 = arith.constant 0 : index
      %41 = vector.load %arg10[%c0_33, %c0_34] : memref<1x1xf32, #tpu.memory_space<vmem>>, vector<1x1xf32>
      %42 = vector.broadcast %41 : vector<1x1xf32> to vector<8x1xf32>
      %43 = arith.addf %40, %42 : vector<8x1xf32>
      %44 = arith.negf %43 : vector<8x1xf32>
      %45 = math.exp %44 : vector<8x1xf32>
      %cst_35 = arith.constant 1.000000e+00 : f32
      %46 = vector.broadcast %cst_35 : f32 to vector<8x1xf32>
      %47 = arith.addf %46, %45 : vector<8x1xf32>
      %48 = arith.divf %46, %47 : vector<8x1xf32>
      %49 = vector.broadcast %48 : vector<8x1xf32> to vector<8x768xf32>
      %50 = arith.mulf %49, %23 : vector<8x768xf32>
      %cst_36 = arith.constant 1.000000e+00 : f32
      %51 = vector.broadcast %cst_36 : f32 to vector<8x1xf32>
      %52 = arith.subf %51, %48 : vector<8x1xf32>
      %53 = vector.broadcast %52 : vector<8x1xf32> to vector<8x768xf32>
      %54 = arith.mulf %53, %29 : vector<8x768xf32>
      %55 = arith.addf %50, %54 : vector<8x768xf32>
      %56 = arith.truncf %55 : vector<8x768xf32> to vector<8x768xbf16>
      %c0_37 = arith.constant 0 : index
      %c0_38 = arith.constant 0 : index
      %57 = vector.load %arg11[%c0_37, %c0_38] : memref<768x256xbf16, #tpu.memory_space<vmem>>, vector<768x256xbf16>
      %cst_39 = arith.constant dense<0.000000e+00> : vector<8x256xf32>
      %58 = tpu.matmul %56, %57, %cst_39 {dimension_numbers = #tpu.dot_dimension_numbers<[1], [0], [0], [1], [0, 0, 1, 1], [], []>} : vector<8x768xbf16>, vector<768x256xbf16>, vector<8x256xf32> -> vector<8x256xf32>
      %c0_40 = arith.constant 0 : index
      %c0_41 = arith.constant 0 : index
      %59 = vector.load %arg12[%c0_40, %c0_41] : memref<1x256xf32, #tpu.memory_space<vmem>>, vector<1x256xf32>
      %60 = vector.broadcast %59 : vector<1x256xf32> to vector<8x256xf32>
      %61 = arith.addf %58, %60 : vector<8x256xf32>
      %cst_42 = arith.constant 0.000000e+00 : f32
      %62 = vector.broadcast %cst_42 : f32 to vector<8x256xf32>
      %63 = arith.maximumf %61, %62 : vector<8x256xf32>
      %64 = arith.truncf %63 : vector<8x256xf32> to vector<8x256xbf16>
      %c0_43 = arith.constant 0 : index
      %c0_44 = arith.constant 0 : index
      %65 = vector.load %arg13[%c0_43, %c0_44] : memref<256x128xbf16, #tpu.memory_space<vmem>>, vector<256x128xbf16>
      %cst_45 = arith.constant dense<0.000000e+00> : vector<8x128xf32>
      %66 = tpu.matmul %64, %65, %cst_45 {dimension_numbers = #tpu.dot_dimension_numbers<[1], [0], [0], [1], [0, 0, 1, 1], [], []>} : vector<8x256xbf16>, vector<256x128xbf16>, vector<8x128xf32> -> vector<8x128xf32>
      %c0_46 = arith.constant 0 : index
      %c0_47 = arith.constant 0 : index
      %67 = vector.load %arg14[%c0_46, %c0_47] : memref<1x128xf32, #tpu.memory_space<vmem>>, vector<1x128xf32>
      %68 = vector.broadcast %67 : vector<1x128xf32> to vector<8x128xf32>
      %69 = arith.addf %66, %68 : vector<8x128xf32>
      %c0_48 = arith.constant 0 : index
      %c0_49 = arith.constant 0 : index
      %70 = vector.load %arg15[%c0_48, %c0_49] : memref<8x128xf32, #tpu.memory_space<vmem>>, vector<8x128xf32>
      tpu.vector_store %arg15[%c0_48, %c0_49], %69 {strides = array<i32>} : memref<8x128xf32, #tpu.memory_space<vmem>>, vector<8x128xf32>,
    } else {
    }
    return
  }
  func.func @transform_0(%arg0: i32, %arg1: i32) -> (i32, i32, i32) {
    %c0_i32 = arith.constant 0 : i32
    %c0_i32_0 = arith.constant 0 : i32
    return %arg0, %arg1, %c0_i32 : i32, i32, i32
  }
  func.func @transform_1(%arg0: i32, %arg1: i32) -> (i32, i32, i32) {
    %c0_i32 = arith.constant 0 : i32
    %c0_i32_0 = arith.constant 0 : i32
    %c0_i32_1 = arith.constant 0 : i32
    return %arg0, %c0_i32, %c0_i32_0 : i32, i32, i32
  }
  func.func @transform_2(%arg0: i32, %arg1: i32) -> (i32, i32) {
    %c0_i32 = arith.constant 0 : i32
    %c0_i32_0 = arith.constant 0 : i32
    %c0_i32_1 = arith.constant 0 : i32
    return %c0_i32, %c0_i32_0 : i32, i32
  }
  func.func @transform_3(%arg0: i32, %arg1: i32) -> (i32, i32) {
    %c0_i32 = arith.constant 0 : i32
    %c0_i32_0 = arith.constant 0 : i32
    %c0_i32_1 = arith.constant 0 : i32
    return %c0_i32, %c0_i32_0 : i32, i32
  }
  func.func @transform_4(%arg0: i32, %arg1: i32) -> (i32, i32) {
    %c0_i32 = arith.constant 0 : i32
    %c0_i32_0 = arith.constant 0 : i32
    %c0_i32_1 = arith.constant 0 : i32
    return %c0_i32, %c0_i32_0 : i32, i32
  }
  func.func @transform_5(%arg0: i32, %arg1: i32) -> (i32, i32) {
    %c0_i32 = arith.constant 0 : i32
    %c0_i32_0 = arith.constant 0 : i32
    %c0_i32_1 = arith.constant 0 : i32
    return %c0_i32, %c0_i32_0 : i32, i32
  }
  func.func @transform_6(%arg0: i32, %arg1: i32) -> (i32, i32) {
    %c0_i32 = arith.constant 0 : i32
    %c0_i32_0 = arith.constant 0 : i32
    %c0_i32_1 = arith.constant 0 : i32
    return %c0_i32, %c0_i32_0 : i32, i32
  }
  func.func @transform_7(%arg0: i32, %arg1: i32) -> (i32, i32) {
    %c0_i32 = arith.constant 0 : i32
    %c0_i32_0 = arith.constant 0 : i32
    %c0_i32_1 = arith.constant 0 : i32
    return %c0_i32, %c0_i32_0 : i32, i32
  }
  func.func @transform_8(%arg0: i32, %arg1: i32) -> (i32, i32) {
    %c0_i32 = arith.constant 0 : i32
    %c0_i32_0 = arith.constant 0 : i32
    %c0_i32_1 = arith.constant 0 : i32
    return %c0_i32, %c0_i32_0 : i32, i32
  }
  func.func @transform_9(%arg0: i32, %arg1: i32) -> (i32, i32) {
    %c0_i32 = arith.constant 0 : i32
    %c0_i32_0 = arith.constant 0 : i32
    %c0_i32_1 = arith.constant 0 : i32
    return %c0_i32, %c0_i32_0 : i32, i32
  }
  func.func @transform_10(%arg0: i32, %arg1: i32) -> (i32, i32) {
    %c0_i32 = arith.constant 0 : i32
    %c0_i32_0 = arith.constant 0 : i32
    %c0_i32_1 = arith.constant 0 : i32
    return %c0_i32, %c0_i32_0 : i32, i32
  }
  func.func @transform_11(%arg0: i32, %arg1: i32) -> (i32, i32) {
    %c0_i32 = arith.constant 0 : i32
    %c0_i32_0 = arith.constant 0 : i32
    %c0_i32_1 = arith.constant 0 : i32
    return %c0_i32, %c0_i32_0 : i32, i32
  }
  func.func @transform_12(%arg0: i32, %arg1: i32) -> (i32, i32) {
    %c0_i32 = arith.constant 0 : i32
    %c0_i32_0 = arith.constant 0 : i32
    %c0_i32_1 = arith.constant 0 : i32
    return %c0_i32, %c0_i32_0 : i32, i32
  }
  func.func @transform_13(%arg0: i32, %arg1: i32) -> (i32, i32) {
    %c0_i32 = arith.constant 0 : i32
    %c0_i32_0 = arith.constant 0 : i32
    return %arg0, %c0_i32 : i32, i32
  }
}

</mosaic_0001>

<llo_original>
// kernel: tpu_custom_call.1
$region0: #{tpu_custom_call.1}
  #allocation0 [shape = 'u32[]', space=smem, size = 0x4, offset = 0x4, fixed_abs, tag = 'smem constant byte address 0x4 - core index']
  #allocation1 [shape = 'u32[144,128]{1,0:T(1,128)}', space=vmem, size = 0x12000, scoped, tag = 'internal scratch']
  #allocation2 [shape = 'f32[8,1024]{1,0:T(8,128)}', space=vmem, size = 0x8000, scoped, tag = 'scratch operand']
  #allocation3 [shape = 'f32[1,1]{1,0:T(1,128)S(1)}', space=vmem, size = 0x200, scoped, tag = 'scoped memory for tpu_custom_call.1']
  %s0 = inlined_call_operand.hbm [shape: f32[8,8,1024], index: 0, kind: input, shape index: {}]
  %s1 = inlined_call_operand.hbm [shape: f32[8,16,300], index: 1, kind: input, shape index: {}]
  %s2 = inlined_call_operand.hbm [shape: bf16[1024,768], index: 2, kind: input, shape index: {}]
  %s3 = inlined_call_operand.hbm [shape: f32[1,768], index: 3, kind: input, shape index: {}]
  %s4 = inlined_call_operand.hbm [shape: bf16[300,768], index: 4, kind: input, shape index: {}]
  %s5 = inlined_call_operand.hbm [shape: f32[1,768], index: 5, kind: input, shape index: {}]
  %s6 = inlined_call_operand.hbm [shape: f32[1,768], index: 6, kind: input, shape index: {}]
  %s7 = inlined_call_operand.hbm [shape: f32[1,768], index: 7, kind: input, shape index: {}]
  %s8 = inlined_call_operand.<no memory space> [shape: f32[1,1], index: 8, kind: input, shape index: {}]
  %s9 = inlined_call_operand.hbm [shape: bf16[768,256], index: 9, kind: input, shape index: {}]
  %s10 = inlined_call_operand.hbm [shape: f32[1,256], index: 10, kind: input, shape index: {}]
  %s11 = inlined_call_operand.hbm [shape: bf16[256,128], index: 11, kind: input, shape index: {}]
  %s12 = inlined_call_operand.hbm [shape: f32[1,128], index: 12, kind: input, shape index: {}]
  %s13 = inlined_call_operand.hbm [shape: f32[8,128], index: 13, kind: output, shape index: {}]
  %s14 = sld [smem:[#allocation0]]
  $region118: #{tpu_custom_call.1} parent=0
    _
  %s16 = ssub.s32 1, %s14
  %s17 = scalar_select 0, %s16, %s14
  %v18 = vstv %s8
  %19 = vst [vmem:[#allocation3] sm:$0x1] %v18
  $region1: #{tpu_custom_call.1} parent=0
    #allocation4 [shape = 'u8[262144]{0}', space=vmem, size = 0x40000, scoped, tag = 'input window, operand 0, single buffered']
    #allocation5 [shape = 's32[1]{0}', space=sflag, size = 0x4, scoped, tag = 'scoped memory for tpu_custom_call.1']
    #allocation6 [shape = 's32[1]{0}', space=sflag, size = 0x4, scoped, tag = 'scoped memory for tpu_custom_call.1']
    #allocation7 [shape = 'u8[196608]{0}', space=vmem, size = 0x30000, scoped, tag = 'input window, operand 1, single buffered']
    #allocation8 [shape = 's32[1]{0}', space=sflag, size = 0x4, scoped, tag = 'scoped memory for tpu_custom_call.1']
    #allocation9 [shape = 'u8[1572864]{0}', space=vmem, size = 0x180000, scoped, tag = 'input window, operand 2, single buffered']
    #allocation10 [shape = 'u8[3072]{0}', space=vmem, size = 0xc00, scoped, tag = 'input window, operand 3, single buffered']
    #allocation11 [shape = 's32[1]{0}', space=sflag, size = 0x4, scoped, tag = 'scoped memory for tpu_custom_call.1']
    #allocation12 [shape = 'u8[466944]{0}', space=vmem, size = 0x72000, scoped, tag = 'input window, operand 4, single buffered']
    #allocation13 [shape = 'u8[3072]{0}', space=vmem, size = 0xc00, scoped, tag = 'input window, operand 5, single buffered']
    #allocation14 [shape = 's32[1]{0}', space=sflag, size = 0x4, scoped, tag = 'scoped memory for tpu_custom_call.1']
    #allocation15 [shape = 'u8[3072]{0}', space=vmem, size = 0xc00, scoped, tag = 'input window, operand 6, single buffered']
    #allocation16 [shape = 'u8[3072]{0}', space=vmem, size = 0xc00, scoped, tag = 'input window, operand 7, single buffered']
    #allocation17 [shape = 's32[1]{0}', space=sflag, size = 0x4, scoped, tag = 'scoped memory for tpu_custom_call.1']
    #allocation18 [shape = 'u8[393216]{0}', space=vmem, size = 0x60000, scoped, tag = 'input window, operand 9, single buffered']
    #allocation19 [shape = 'u8[1024]{0}', space=vmem, size = 0x400, scoped, tag = 'input window, operand 10, single buffered']
    #allocation20 [shape = 's32[1]{0}', space=sflag, size = 0x4, scoped, tag = 'scoped memory for tpu_custom_call.1']
    #allocation21 [shape = 'u8[65536]{0}', space=vmem, size = 0x10000, scoped, tag = 'input window, operand 11, single buffered']
    #allocation22 [shape = 'u8[512]{0}', space=vmem, size = 0x400, scoped, tag = 'input window, operand 12, single buffered']
    #allocation23 [shape = 's32[1]{0}', space=sflag, size = 0x4, scoped, tag = 'scoped memory for tpu_custom_call.1']
    #allocation24 [shape = 'u8[4096]{0}', space=vmem, size = 0x1000, scoped, tag = 'output window, operand 0, single buffered']
    %20 = vsyncpa [#allocation5], 0
    %21 = vsyncpa [#allocation8], 0
    %22 = vsyncpa [#allocation11], 0
    %23 = vsyncpa [#allocation14], 0
    %24 = vsyncpa [#allocation17], 0
    %25 = vsyncpa [#allocation20], 0
    %26 = vsyncpa [#allocation23], 0
    %27 = vsyncpa [#allocation6], 0
    // Predicated region
    $region2: #{tpu_custom_call.1} parent=1 // pred_check
      _
    $region3: #{tpu_custom_call.1} parent=1 // pred_check_branch
      %29 = sbr.rel (0) target = $region5
    $region4: #{tpu_custom_call.1} parent=1 // pred_region
      %s31 = ssub.s32 8192, 8192
      %32 = vsyncadd [#allocation5], %s31
      %s33 = sshll.u32 [#allocation4], 4
      %s34 = int_to_ptr.vmem [resolvable:$true] %s33
      %39 = dma.hbm_to_vmem [thread:$0]  %s0, 8192, %s34, [#allocation5], 1024, 1024, 64
    $region5: #{tpu_custom_call.1} parent=1 // pred_fallthru
      _
    // Predicated region
    $region6: #{tpu_custom_call.1} parent=1 // pred_check
      _
    $region7: #{tpu_custom_call.1} parent=1 // pred_check_branch
      %41 = sbr.rel (0) target = $region9
    $region8: #{tpu_custom_call.1} parent=1 // pred_region
      %s43 = ssub.s32 6144, 6144
      %44 = vsyncadd [#allocation8], %s43
      %s45 = sshll.u32 [#allocation7], 4
      %s46 = int_to_ptr.vmem [resolvable:$true] %s45
      %51 = dma.hbm_to_vmem [thread:$0]  %s1, 6144, %s46, [#allocation8], 384, 384, 24
    $region9: #{tpu_custom_call.1} parent=1 // pred_fallthru
      _
    // Predicated region
    $region10: #{tpu_custom_call.1} parent=1 // pred_check
      _
    $region11: #{tpu_custom_call.1} parent=1 // pred_check_branch
      %53 = sbr.rel (0) target = $region13
    $region12: #{tpu_custom_call.1} parent=1 // pred_region
      %s55 = ssub.s32 49152, 49152
      %56 = vsyncadd [#allocation8], %s55
      %s57 = sshll.u32 [#allocation9], 4
      %s58 = int_to_ptr.vmem [resolvable:$true] %s57
      %63 = dma.hbm_to_vmem [thread:$0]  %s2, 49152, %s58, [#allocation8], 384, 384, 24
    $region13: #{tpu_custom_call.1} parent=1 // pred_fallthru
      _
    // Predicated region
    $region14: #{tpu_custom_call.1} parent=1 // pred_check
      _
    $region15: #{tpu_custom_call.1} parent=1 // pred_check_branch
      %65 = sbr.rel (0) target = $region17
    $region16: #{tpu_custom_call.1} parent=1 // pred_region
      %s67 = ssub.s32 96, 96
      %68 = vsyncadd [#allocation11], %s67
      %s70 = sshll.u32 [#allocation10], 4
      %s71 = int_to_ptr.vmem [resolvable:$true] %s70
      %73 = dma.hbm_to_vmem [thread:$0]  %s3, 96, %s71, [#allocation11]
    $region17: #{tpu_custom_call.1} parent=1 // pred_fallthru
      _
    // Predicated region
    $region18: #{tpu_custom_call.1} parent=1 // pred_check
      _
    $region19: #{tpu_custom_call.1} parent=1 // pred_check_branch
      %75 = sbr.rel (0) target = $region21
    $region20: #{tpu_custom_call.1} parent=1 // pred_region
      %s77 = ssub.s32 14592, 14592
      %78 = vsyncadd [#allocation11], %s77
      %s79 = sshll.u32 [#allocation12], 4
      %s80 = int_to_ptr.vmem [resolvable:$true] %s79
      %85 = dma.hbm_to_vmem [thread:$0]  %s4, 14592, %s80, [#allocation11], 384, 384, 24
    $region21: #{tpu_custom_call.1} parent=1 // pred_fallthru
      _
    // Predicated region
    $region22: #{tpu_custom_call.1} parent=1 // pred_check
      _
    $region23: #{tpu_custom_call.1} parent=1 // pred_check_branch
      %87 = sbr.rel (0) target = $region25
    $region24: #{tpu_custom_call.1} parent=1 // pred_region
      %s89 = ssub.s32 96, 96
      %90 = vsyncadd [#allocation14], %s89
      %s92 = sshll.u32 [#allocation13], 4
      %s93 = int_to_ptr.vmem [resolvable:$true] %s92
      %95 = dma.hbm_to_vmem [thread:$0]  %s5, 96, %s93, [#allocation14]
    $region25: #{tpu_custom_call.1} parent=1 // pred_fallthru
      _
    // Predicated region
    $region26: #{tpu_custom_call.1} parent=1 // pred_check
      _
    $region27: #{tpu_custom_call.1} parent=1 // pred_check_branch
      %97 = sbr.rel (0) target = $region29
    $region28: #{tpu_custom_call.1} parent=1 // pred_region
      %s99 = ssub.s32 96, 96
      %100 = vsyncadd [#allocation14], %s99
      %s102 = sshll.u32 [#allocation15], 4
      %s103 = int_to_ptr.vmem [resolvable:$true] %s102
      %105 = dma.hbm_to_vmem [thread:$0]  %s6, 96, %s103, [#allocation14]
    $region29: #{tpu_custom_call.1} parent=1 // pred_fallthru
      _
    // Predicated region
    $region30: #{tpu_custom_call.1} parent=1 // pred_check
      _
    $region31: #{tpu_custom_call.1} parent=1 // pred_check_branch
      %107 = sbr.rel (0) target = $region33
    $region32: #{tpu_custom_call.1} parent=1 // pred_region
      %s109 = ssub.s32 96, 96
      %110 = vsyncadd [#allocation17], %s109
      %s112 = sshll.u32 [#allocation16], 4
      %s113 = int_to_ptr.vmem [resolvable:$true] %s112
      %115 = dma.hbm_to_vmem [thread:$0]  %s7, 96, %s113, [#allocation17]
    $region33: #{tpu_custom_call.1} parent=1 // pred_fallthru
      _
    // Predicated region
    $region34: #{tpu_custom_call.1} parent=1 // pred_check
      _
    $region35: #{tpu_custom_call.1} parent=1 // pred_check_branch
      %117 = sbr.rel (0) target = $region37
    $region36: #{tpu_custom_call.1} parent=1 // pred_region
      _
    $region37: #{tpu_custom_call.1} parent=1 // pred_fallthru
      _
    // Predicated region
    $region38: #{tpu_custom_call.1} parent=1 // pred_check
      _
    $region39: #{tpu_custom_call.1} parent=1 // pred_check_branch
      %119 = sbr.rel (0) target = $region41
    $region40: #{tpu_custom_call.1} parent=1 // pred_region
      %s121 = ssub.s32 12288, 12288
      %122 = vsyncadd [#allocation17], %s121
      %s123 = sshll.u32 [#allocation18], 4
      %s124 = int_to_ptr.vmem [resolvable:$true] %s123
      %129 = dma.hbm_to_vmem [thread:$0]  %s9, 12288, %s124, [#allocation17], 128, 128, 8
    $region41: #{tpu_custom_call.1} parent=1 // pred_fallthru
      _
    // Predicated region
    $region42: #{tpu_custom_call.1} parent=1 // pred_check
      _
    $region43: #{tpu_custom_call.1} parent=1 // pred_check_branch
      %131 = sbr.rel (0) target = $region45
    $region44: #{tpu_custom_call.1} parent=1 // pred_region
      %s133 = ssub.s32 32, 32
      %134 = vsyncadd [#allocation20], %s133
      %s136 = sshll.u32 [#allocation19], 4
      %s137 = int_to_ptr.vmem [resolvable:$true] %s136
      %139 = dma.hbm_to_vmem [thread:$0]  %s10, 32, %s137, [#allocation20]
    $region45: #{tpu_custom_call.1} parent=1 // pred_fallthru
      _
    // Predicated region
    $region46: #{tpu_custom_call.1} parent=1 // pred_check
      _
    $region47: #{tpu_custom_call.1} parent=1 // pred_check_branch
      %141 = sbr.rel (0) target = $region49
    $region48: #{tpu_custom_call.1} parent=1 // pred_region
      %s143 = ssub.s32 2048, 2048
      %144 = vsyncadd [#allocation20], %s143
      %s145 = sshll.u32 [#allocation21], 4
      %s146 = int_to_ptr.vmem [resolvable:$true] %s145
      %151 = dma.hbm_to_vmem [thread:$0]  %s11, 2048, %s146, [#allocation20], 64, 64, 4
    $region49: #{tpu_custom_call.1} parent=1 // pred_fallthru
      _
    // Predicated region
    $region50: #{tpu_custom_call.1} parent=1 // pred_check
      _
    $region51: #{tpu_custom_call.1} parent=1 // pred_check_branch
      %153 = sbr.rel (0) target = $region53
    $region52: #{tpu_custom_call.1} parent=1 // pred_region
      %s155 = ssub.s32 16, 16
      %156 = vsyncadd [#allocation23], %s155
      %s158 = sshll.u32 [#allocation22], 4
      %s159 = int_to_ptr.vmem [resolvable:$true] %s158
      %161 = dma.hbm_to_vmem [thread:$0]  %s12, 16, %s159, [#allocation23]
    $region53: #{tpu_custom_call.1} parent=1 // pred_fallthru
      _
    // Predicated region
    $region54: #{tpu_custom_call.1} parent=1 // pred_check
      _
    $region55: #{tpu_custom_call.1} parent=1 // pred_check_branch
      %163 = sbr.rel (0) target = $region57
    $region56: #{tpu_custom_call.1} parent=1 // pred_region
      %164 = dma.done [#allocation5], 8192
    $region57: #{tpu_custom_call.1} parent=1 // pred_fallthru
      _
    // Predicated region
    $region58: #{tpu_custom_call.1} parent=1 // pred_check
      _
    $region59: #{tpu_custom_call.1} parent=1 // pred_check_branch
      %166 = sbr.rel (0) target = $region61
    $region60: #{tpu_custom_call.1} parent=1 // pred_region
      %167 = dma.done [#allocation8], 6144
    $region61: #{tpu_custom_call.1} parent=1 // pred_fallthru
      _
    // Predicated region
    $region62: #{tpu_custom_call.1} parent=1 // pred_check
      _
    $region63: #{tpu_custom_call.1} parent=1 // pred_check_branch
      %169 = sbr.rel (0) target = $region65
    $region64: #{tpu_custom_call.1} parent=1 // pred_region
      %170 = dma.done [#allocation8], 49152
    $region65: #{tpu_custom_call.1} parent=1 // pred_fallthru
      _
    // Predicated region
    $region66: #{tpu_custom_call.1} parent=1 // pred_check
      _
    $region67: #{tpu_custom_call.1} parent=1 // pred_check_branch
      %172 = sbr.rel (0) target = $region69
    $region68: #{tpu_custom_call.1} parent=1 // pred_region
      %173 = dma.done [#allocation11], 96
    $region69: #{tpu_custom_call.1} parent=1 // pred_fallthru
      _
    // Predicated region
    $region70: #{tpu_custom_call.1} parent=1 // pred_check
      _
    $region71: #{tpu_custom_call.1} parent=1 // pred_check_branch
      %175 = sbr.rel (0) target = $region73
    $region72: #{tpu_custom_call.1} parent=1 // pred_region
      %176 = dma.done [#allocation11], 14592
    $region73: #{tpu_custom_call.1} parent=1 // pred_fallthru
      _
    // Predicated region
    $region74: #{tpu_custom_call.1} parent=1 // pred_check
      _
    $region75: #{tpu_custom_call.1} parent=1 // pred_check_branch
      %178 = sbr.rel (0) target = $region77
    $region76: #{tpu_custom_call.1} parent=1 // pred_region
      %179 = dma.done [#allocation14], 96
    $region77: #{tpu_custom_call.1} parent=1 // pred_fallthru
      _
    // Predicated region
    $region78: #{tpu_custom_call.1} parent=1 // pred_check
      _
    $region79: #{tpu_custom_call.1} parent=1 // pred_check_branch
      %181 = sbr.rel (0) target = $region81
    $region80: #{tpu_custom_call.1} parent=1 // pred_region
      %182 = dma.done [#allocation14], 96
    $region81: #{tpu_custom_call.1} parent=1 // pred_fallthru
      _
    // Predicated region
    $region82: #{tpu_custom_call.1} parent=1 // pred_check
      _
    $region83: #{tpu_custom_call.1} parent=1 // pred_check_branch
      %184 = sbr.rel (0) target = $region85
    $region84: #{tpu_custom_call.1} parent=1 // pred_region
      %185 = dma.done [#allocation17], 96
    $region85: #{tpu_custom_call.1} parent=1 // pred_fallthru
      _
    // Predicated region
    $region86: #{tpu_custom_call.1} parent=1 // pred_check
      _
    $region87: #{tpu_custom_call.1} parent=1 // pred_check_branch
      %187 = sbr.rel (0) target = $region89
    $region88: #{tpu_custom_call.1} parent=1 // pred_region
      %188 = dma.done [#allocation17], 12288
    $region89: #{tpu_custom_call.1} parent=1 // pred_fallthru
      _
    // Predicated region
    $region90: #{tpu_custom_call.1} parent=1 // pred_check
      _
    $region91: #{tpu_custom_call.1} parent=1 // pred_check_branch
      %190 = sbr.rel (0) target = $region93
    $region92: #{tpu_custom_call.1} parent=1 // pred_region
      %191 = dma.done [#allocation20], 32
    $region93: #{tpu_custom_call.1} parent=1 // pred_fallthru
      _
    // Predicated region
    $region94: #{tpu_custom_call.1} parent=1 // pred_check
      _
    $region95: #{tpu_custom_call.1} parent=1 // pred_check_branch
      %193 = sbr.rel (0) target = $region97
    $region96: #{tpu_custom_call.1} parent=1 // pred_region
      %194 = dma.done [#allocation20], 2048
    $region97: #{tpu_custom_call.1} parent=1 // pred_fallthru
      _
    // Predicated region
    $region98: #{tpu_custom_call.1} parent=1 // pred_check
      _
    $region99: #{tpu_custom_call.1} parent=1 // pred_check_branch
      %196 = sbr.rel (0) target = $region101
    $region100: #{tpu_custom_call.1} parent=1 // pred_region
      %197 = dma.done [#allocation23], 16
    $region101: #{tpu_custom_call.1} parent=1 // pred_fallthru
      _
    %p199 = scmp.eq.s32.totalorder 0, 0
    // Predicated region
    $region102: #{tpu_custom_call.1} parent=1 // pred_check
      %p200 = pneg %p199
    $region103: #{tpu_custom_call.1} parent=1 // pred_check_branch
      %202 = sbr.rel (%p200) target = $region105
    $region104: #{tpu_custom_call.1} parent=1 // pred_region
      %203 = vst [vmem:[#allocation2] sm:$0xff] 0.0
      %204 = vst [vmem:[#allocation2 + $0x8] sm:$0xff] 0.0
      %205 = vst [vmem:[#allocation2 + $0x10] sm:$0xff] 0.0
      %206 = vst [vmem:[#allocation2 + $0x18] sm:$0xff] 0.0
      %207 = vst [vmem:[#allocation2 + $0x20] sm:$0xff] 0.0
      %208 = vst [vmem:[#allocation2 + $0x28] sm:$0xff] 0.0
      %209 = vst [vmem:[#allocation2 + $0x30] sm:$0xff] 0.0
      %210 = vst [vmem:[#allocation2 + $0x38] sm:$0xff] 0.0
    $region105: #{tpu_custom_call.1} parent=1 // pred_fallthru
      _
    %v211 = vld [vmem:[#allocation4] sm:$0xff]
    %v212 = vld [vmem:[#allocation4 + $0x8] sm:$0xff]
    %v213 = vld [vmem:[#allocation4 + $0x10] sm:$0xff]
    %v214 = vld [vmem:[#allocation4 + $0x18] sm:$0xff]
    %v215 = vld [vmem:[#allocation4 + $0x20] sm:$0xff]
    %v216 = vld [vmem:[#allocation4 + $0x28] sm:$0xff]
    %v217 = vld [vmem:[#allocation4 + $0x30] sm:$0xff]
    %v218 = vld [vmem:[#allocation4 + $0x38] sm:$0xff]
    %v219 = vld [vmem:[#allocation4 + $0x40] sm:$0xff]
    %v220 = vld [vmem:[#allocation4 + $0x48] sm:$0xff]
    %v221 = vld [vmem:[#allocation4 + $0x50] sm:$0xff]
    %v222 = vld [vmem:[#allocation4 + $0x58] sm:$0xff]
    %v223 = vld [vmem:[#allocation4 + $0x60] sm:$0xff]
    %v224 = vld [vmem:[#allocation4 + $0x68] sm:$0xff]
    %v225 = vld [vmem:[#allocation4 + $0x70] sm:$0xff]
    %v226 = vld [vmem:[#allocation4 + $0x78] sm:$0xff]
    %v227 = vld [vmem:[#allocation4 + $0x80] sm:$0xff]
    %v228 = vld [vmem:[#allocation4 + $0x88] sm:$0xff]
    %v229 = vld [vmem:[#allocation4 + $0x90] sm:$0xff]
    %v230 = vld [vmem:[#allocation4 + $0x98] sm:$0xff]
    %v231 = vld [vmem:[#allocation4 + $0xa0] sm:$0xff]
    %v232 = vld [vmem:[#allocation4 + $0xa8] sm:$0xff]
    %v233 = vld [vmem:[#allocation4 + $0xb0] sm:$0xff]
    %v234 = vld [vmem:[#allocation4 + $0xb8] sm:$0xff]
    %v235 = vld [vmem:[#allocation4 + $0xc0] sm:$0xff]
    %v236 = vld [vmem:[#allocation4 + $0xc8] sm:$0xff]
    %v237 = vld [vmem:[#allocation4 + $0xd0] sm:$0xff]
    %v238 = vld [vmem:[#allocation4 + $0xd8] sm:$0xff]
    %v239 = vld [vmem:[#allocation4 + $0xe0] sm:$0xff]
    %v240 = vld [vmem:[#allocation4 + $0xe8] sm:$0xff]
    %v241 = vld [vmem:[#allocation4 + $0xf0] sm:$0xff]
    %v242 = vld [vmem:[#allocation4 + $0xf8] sm:$0xff]
    %v243 = vld [vmem:[#allocation4 + $0x100] sm:$0xff]
    %v244 = vld [vmem:[#allocation4 + $0x108] sm:$0xff]
    %v245 = vld [vmem:[#allocation4 + $0x110] sm:$0xff]
    %v246 = vld [vmem:[#allocation4 + $0x118] sm:$0xff]
    %v247 = vld [vmem:[#allocation4 + $0x120] sm:$0xff]
    %v248 = vld [vmem:[#allocation4 + $0x128] sm:$0xff]
    %v249 = vld [vmem:[#allocation4 + $0x130] sm:$0xff]
    %v250 = vld [vmem:[#allocation4 + $0x138] sm:$0xff]
    %v251 = vld [vmem:[#allocation4 + $0x140] sm:$0xff]
    %v252 = vld [vmem:[#allocation4 + $0x148] sm:$0xff]
    %v253 = vld [vmem:[#allocation4 + $0x150] sm:$0xff]
    %v254 = vld [vmem:[#allocation4 + $0x158] sm:$0xff]
    %v255 = vld [vmem:[#allocation4 + $0x160] sm:$0xff]
    %v256 = vld [vmem:[#allocation4 + $0x168] sm:$0xff]
    %v257 = vld [vmem:[#allocation4 + $0x170] sm:$0xff]
    %v258 = vld [vmem:[#allocation4 + $0x178] sm:$0xff]
    %v259 = vld [vmem:[#allocation4 + $0x180] sm:$0xff]
    %v260 = vld [vmem:[#allocation4 + $0x188] sm:$0xff]
    %v261 = vld [vmem:[#allocation4 + $0x190] sm:$0xff]
    %v262 = vld [vmem:[#allocation4 + $0x198] sm:$0xff]
    %v263 = vld [vmem:[#allocation4 + $0x1a0] sm:$0xff]
    %v264 = vld [vmem:[#allocation4 + $0x1a8] sm:$0xff]
    %v265 = vld [vmem:[#allocation4 + $0x1b0] sm:$0xff]
    %v266 = vld [vmem:[#allocation4 + $0x1b8] sm:$0xff]
    %v267 = vld [vmem:[#allocation4 + $0x1c0] sm:$0xff]
    %v268 = vld [vmem:[#allocation4 + $0x1c8] sm:$0xff]
    %v269 = vld [vmem:[#allocation4 + $0x1d0] sm:$0xff]
    %v270 = vld [vmem:[#allocation4 + $0x1d8] sm:$0xff]
    %v271 = vld [vmem:[#allocation4 + $0x1e0] sm:$0xff]
    %v272 = vld [vmem:[#allocation4 + $0x1e8] sm:$0xff]
    %v273 = vld [vmem:[#allocation4 + $0x1f0] sm:$0xff]
    %v274 = vld [vmem:[#allocation4 + $0x1f8] sm:$0xff]
    %v275 = vld [vmem:[#allocation2] sm:$0xff]
    %v276 = vld [vmem:[#allocation2 + $0x8] sm:$0xff]
    %v277 = vld [vmem:[#allocation2 + $0x10] sm:$0xff]
    %v278 = vld [vmem:[#allocation2 + $0x18] sm:$0xff]
    %v279 = vld [vmem:[#allocation2 + $0x20] sm:$0xff]
    %v280 = vld [vmem:[#allocation2 + $0x28] sm:$0xff]
    %v281 = vld [vmem:[#allocation2 + $0x30] sm:$0xff]
    %v282 = vld [vmem:[#allocation2 + $0x38] sm:$0xff]
    %v283 = vrot.slane %v211, 4
    %v284 = vadd.f32 %v211, %v283
    %v285 = vrot.slane %v284, 2
    %v286 = vadd.f32 %v284, %v285
    %v287 = vrot.slane %v286, 1
    %v288 = vadd.f32 %v286, %v287
    %v289 = vrot.slane %v212, 4
    %v290 = vadd.f32 %v212, %v289
    %v291 = vrot.slane %v290, 2
    %v292 = vadd.f32 %v290, %v291
    %v293 = vrot.slane %v292, 1
    %v294 = vadd.f32 %v292, %v293
    %v295 = vrot.slane %v213, 4
    %v296 = vadd.f32 %v213, %v295
    %v297 = vrot.slane %v296, 2
    %v298 = vadd.f32 %v296, %v297
    %v299 = vrot.slane %v298, 1
    %v300 = vadd.f32 %v298, %v299
    %v301 = vrot.slane %v214, 4
    %v302 = vadd.f32 %v214, %v301
    %v303 = vrot.slane %v302, 2
    %v304 = vadd.f32 %v302, %v303
    %v305 = vrot.slane %v304, 1
    %v306 = vadd.f32 %v304, %v305
    %v307 = vrot.slane %v215, 4
    %v308 = vadd.f32 %v215, %v307
    %v309 = vrot.slane %v308, 2
    %v310 = vadd.f32 %v308, %v309
    %v311 = vrot.slane %v310, 1
    %v312 = vadd.f32 %v310, %v311
    %v313 = vrot.slane %v216, 4
    %v314 = vadd.f32 %v216, %v313
    %v315 = vrot.slane %v314, 2
    %v316 = vadd.f32 %v314, %v315
    %v317 = vrot.slane %v316, 1
    %v318 = vadd.f32 %v316, %v317
    %v319 = vrot.slane %v217, 4
    %v320 = vadd.f32 %v217, %v319
    %v321 = vrot.slane %v320, 2
    %v322 = vadd.f32 %v320, %v321
    %v323 = vrot.slane %v322, 1
    %v324 = vadd.f32 %v322, %v323
    %v325 = vrot.slane %v218, 4
    %v326 = vadd.f32 %v218, %v325
    %v327 = vrot.slane %v326, 2
    %v328 = vadd.f32 %v326, %v327
    %v329 = vrot.slane %v328, 1
    %v330 = vadd.f32 %v328, %v329
    %v331 = vrot.slane %v219, 4
    %v332 = vadd.f32 %v219, %v331
    %v333 = vrot.slane %v332, 2
    %v334 = vadd.f32 %v332, %v333
    %v335 = vrot.slane %v334, 1
    %v336 = vadd.f32 %v334, %v335
    %v337 = vrot.slane %v220, 4
    %v338 = vadd.f32 %v220, %v337
    %v339 = vrot.slane %v338, 2
    %v340 = vadd.f32 %v338, %v339
    %v341 = vrot.slane %v340, 1
    %v342 = vadd.f32 %v340, %v341
    %v343 = vrot.slane %v221, 4
    %v344 = vadd.f32 %v221, %v343
    %v345 = vrot.slane %v344, 2
    %v346 = vadd.f32 %v344, %v345
    %v347 = vrot.slane %v346, 1
    %v348 = vadd.f32 %v346, %v347
    %v349 = vrot.slane %v222, 4
    %v350 = vadd.f32 %v222, %v349
    %v351 = vrot.slane %v350, 2
    %v352 = vadd.f32 %v350, %v351
    %v353 = vrot.slane %v352, 1
    %v354 = vadd.f32 %v352, %v353
    %v355 = vrot.slane %v223, 4
    %v356 = vadd.f32 %v223, %v355
    %v357 = vrot.slane %v356, 2
    %v358 = vadd.f32 %v356, %v357
    %v359 = vrot.slane %v358, 1
    %v360 = vadd.f32 %v358, %v359
    %v361 = vrot.slane %v224, 4
    %v362 = vadd.f32 %v224, %v361
    %v363 = vrot.slane %v362, 2
    %v364 = vadd.f32 %v362, %v363
    %v365 = vrot.slane %v364, 1
    %v366 = vadd.f32 %v364, %v365
    %v367 = vrot.slane %v225, 4
    %v368 = vadd.f32 %v225, %v367
    %v369 = vrot.slane %v368, 2
    %v370 = vadd.f32 %v368, %v369
    %v371 = vrot.slane %v370, 1
    %v372 = vadd.f32 %v370, %v371
    %v373 = vrot.slane %v226, 4
    %v374 = vadd.f32 %v226, %v373
    %v375 = vrot.slane %v374, 2
    %v376 = vadd.f32 %v374, %v375
    %v377 = vrot.slane %v376, 1
    %v378 = vadd.f32 %v376, %v377
    %v379 = vrot.slane %v227, 4
    %v380 = vadd.f32 %v227, %v379
    %v381 = vrot.slane %v380, 2
    %v382 = vadd.f32 %v380, %v381
    %v383 = vrot.slane %v382, 1
    %v384 = vadd.f32 %v382, %v383
    %v385 = vrot.slane %v228, 4
    %v386 = vadd.f32 %v228, %v385
    %v387 = vrot.slane %v386, 2
    %v388 = vadd.f32 %v386, %v387
    %v389 = vrot.slane %v388, 1
    %v390 = vadd.f32 %v388, %v389
    %v391 = vrot.slane %v229, 4
    %v392 = vadd.f32 %v229, %v391
    %v393 = vrot.slane %v392, 2
    %v394 = vadd.f32 %v392, %v393
    %v395 = vrot.slane %v394, 1
    %v396 = vadd.f32 %v394, %v395
    %v397 = vrot.slane %v230, 4
    %v398 = vadd.f32 %v230, %v397
    %v399 = vrot.slane %v398, 2
    %v400 = vadd.f32 %v398, %v399
    %v401 = vrot.slane %v400, 1
    %v402 = vadd.f32 %v400, %v401
    %v403 = vrot.slane %v231, 4
    %v404 = vadd.f32 %v231, %v403
    %v405 = vrot.slane %v404, 2
    %v406 = vadd.f32 %v404, %v405
    %v407 = vrot.slane %v406, 1
    %v408 = vadd.f32 %v406, %v407
    %v409 = vrot.slane %v232, 4
    %v410 = vadd.f32 %v232, %v409
    %v411 = vrot.slane %v410, 2
    %v412 = vadd.f32 %v410, %v411
    %v413 = vrot.slane %v412, 1
    %v414 = vadd.f32 %v412, %v413
    %v415 = vrot.slane %v233, 4
    %v416 = vadd.f32 %v233, %v415
    %v417 = vrot.slane %v416, 2
    %v418 = vadd.f32 %v416, %v417
    %v419 = vrot.slane %v418, 1
    %v420 = vadd.f32 %v418, %v419
    %v421 = vrot.slane %v234, 4
    %v422 = vadd.f32 %v234, %v421
    %v423 = vrot.slane %v422, 2
    %v424 = vadd.f32 %v422, %v423
    %v425 = vrot.slane %v424, 1
    %v426 = vadd.f32 %v424, %v425
    %v427 = vrot.slane %v235, 4
    %v428 = vadd.f32 %v235, %v427
    %v429 = vrot.slane %v428, 2
    %v430 = vadd.f32 %v428, %v429
    %v431 = vrot.slane %v430, 1
    %v432 = vadd.f32 %v430, %v431
    %v433 = vrot.slane %v236, 4
    %v434 = vadd.f32 %v236, %v433
    %v435 = vrot.slane %v434, 2
    %v436 = vadd.f32 %v434, %v435
    %v437 = vrot.slane %v436, 1
    %v438 = vadd.f32 %v436, %v437
    %v439 = vrot.slane %v237, 4
    %v440 = vadd.f32 %v237, %v439
    %v441 = vrot.slane %v440, 2
    %v442 = vadd.f32 %v440, %v441
    %v443 = vrot.slane %v442, 1
    %v444 = vadd.f32 %v442, %v443
    %v445 = vrot.slane %v238, 4
    %v446 = vadd.f32 %v238, %v445
    %v447 = vrot.slane %v446, 2
    %v448 = vadd.f32 %v446, %v447
    %v449 = vrot.slane %v448, 1
    %v450 = vadd.f32 %v448, %v449
    %v451 = vrot.slane %v239, 4
    %v452 = vadd.f32 %v239, %v451
    %v453 = vrot.slane %v452, 2
    %v454 = vadd.f32 %v452, %v453
    %v455 = vrot.slane %v454, 1
    %v456 = vadd.f32 %v454, %v455
    %v457 = vrot.slane %v240, 4
    %v458 = vadd.f32 %v240, %v457
    %v459 = vrot.slane %v458, 2
    %v460 = vadd.f32 %v458, %v459
    %v461 = vrot.slane %v460, 1
    %v462 = vadd.f32 %v460, %v461
    %v463 = vrot.slane %v241, 4
    %v464 = vadd.f32 %v241, %v463
    %v465 = vrot.slane %v464, 2
    %v466 = vadd.f32 %v464, %v465
    %v467 = vrot.slane %v466, 1
    %v468 = vadd.f32 %v466, %v467
    %v469 = vrot.slane %v242, 4
    %v470 = vadd.f32 %v242, %v469
    %v471 = vrot.slane %v470, 2
    %v472 = vadd.f32 %v470, %v471
    %v473 = vrot.slane %v472, 1
    %v474 = vadd.f32 %v472, %v473
    %v475 = vrot.slane %v243, 4
    %v476 = vadd.f32 %v243, %v475
    %v477 = vrot.slane %v476, 2
    %v478 = vadd.f32 %v476, %v477
    %v479 = vrot.slane %v478, 1
    %v480 = vadd.f32 %v478, %v479
    %v481 = vrot.slane %v244, 4
    %v482 = vadd.f32 %v244, %v481
    %v483 = vrot.slane %v482, 2
    %v484 = vadd.f32 %v482, %v483
    %v485 = vrot.slane %v484, 1
    %v486 = vadd.f32 %v484, %v485
    %v487 = vrot.slane %v245, 4
    %v488 = vadd.f32 %v245, %v487
    %v489 = vrot.slane %v488, 2
    %v490 = vadd.f32 %v488, %v489
    %v491 = vrot.slane %v490, 1
    %v492 = vadd.f32 %v490, %v491
    %v493 = vrot.slane %v246, 4
    %v494 = vadd.f32 %v246, %v493
    %v495 = vrot.slane %v494, 2
    %v496 = vadd.f32 %v494, %v495
    %v497 = vrot.slane %v496, 1
    %v498 = vadd.f32 %v496, %v497
    %v499 = vrot.slane %v247, 4
    %v500 = vadd.f32 %v247, %v499
    %v501 = vrot.slane %v500, 2
    %v502 = vadd.f32 %v500, %v501
    %v503 = vrot.slane %v502, 1
    %v504 = vadd.f32 %v502, %v503
    %v505 = vrot.slane %v248, 4
    %v506 = vadd.f32 %v248, %v505
    %v507 = vrot.slane %v506, 2
    %v508 = vadd.f32 %v506, %v507
    %v509 = vrot.slane %v508, 1
    %v510 = vadd.f32 %v508, %v509
    %v511 = vrot.slane %v249, 4
    %v512 = vadd.f32 %v249, %v511
    %v513 = vrot.slane %v512, 2
    %v514 = vadd.f32 %v512, %v513
    %v515 = vrot.slane %v514, 1
    %v516 = vadd.f32 %v514, %v515
    %v517 = vrot.slane %v250, 4
    %v518 = vadd.f32 %v250, %v517
    %v519 = vrot.slane %v518, 2
    %v520 = vadd.f32 %v518, %v519
    %v521 = vrot.slane %v520, 1
    %v522 = vadd.f32 %v520, %v521
    %v523 = vrot.slane %v251, 4
    %v524 = vadd.f32 %v251, %v523
    %v525 = vrot.slane %v524, 2
    %v526 = vadd.f32 %v524, %v525
    %v527 = vrot.slane %v526, 1
    %v528 = vadd.f32 %v526, %v527
    %v529 = vrot.slane %v252, 4
    %v530 = vadd.f32 %v252, %v529
    %v531 = vrot.slane %v530, 2
    %v532 = vadd.f32 %v530, %v531
    %v533 = vrot.slane %v532, 1
    %v534 = vadd.f32 %v532, %v533
    %v535 = vrot.slane %v253, 4
    %v536 = vadd.f32 %v253, %v535
    %v537 = vrot.slane %v536, 2
    %v538 = vadd.f32 %v536, %v537
    %v539 = vrot.slane %v538, 1
    %v540 = vadd.f32 %v538, %v539
    %v541 = vrot.slane %v254, 4
    %v542 = vadd.f32 %v254, %v541
    %v543 = vrot.slane %v542, 2
    %v544 = vadd.f32 %v542, %v543
    %v545 = vrot.slane %v544, 1
    %v546 = vadd.f32 %v544, %v545
    %v547 = vrot.slane %v255, 4
    %v548 = vadd.f32 %v255, %v547
    %v549 = vrot.slane %v548, 2
    %v550 = vadd.f32 %v548, %v549
    %v551 = vrot.slane %v550, 1
    %v552 = vadd.f32 %v550, %v551
    %v553 = vrot.slane %v256, 4
    %v554 = vadd.f32 %v256, %v553
    %v555 = vrot.slane %v554, 2
    %v556 = vadd.f32 %v554, %v555
    %v557 = vrot.slane %v556, 1
    %v558 = vadd.f32 %v556, %v557
    %v559 = vrot.slane %v257, 4
    %v560 = vadd.f32 %v257, %v559
    %v561 = vrot.slane %v560, 2
    %v562 = vadd.f32 %v560, %v561
    %v563 = vrot.slane %v562, 1
    %v564 = vadd.f32 %v562, %v563
    %v565 = vrot.slane %v258, 4
    %v566 = vadd.f32 %v258, %v565
    %v567 = vrot.slane %v566, 2
    %v568 = vadd.f32 %v566, %v567
    %v569 = vrot.slane %v568, 1
    %v570 = vadd.f32 %v568, %v569
    %v571 = vrot.slane %v259, 4
    %v572 = vadd.f32 %v259, %v571
    %v573 = vrot.slane %v572, 2
    %v574 = vadd.f32 %v572, %v573
    %v575 = vrot.slane %v574, 1
    %v576 = vadd.f32 %v574, %v575
    %v577 = vrot.slane %v260, 4
    %v578 = vadd.f32 %v260, %v577
    %v579 = vrot.slane %v578, 2
    %v580 = vadd.f32 %v578, %v579
    %v581 = vrot.slane %v580, 1
    %v582 = vadd.f32 %v580, %v581
    %v583 = vrot.slane %v261, 4
    %v584 = vadd.f32 %v261, %v583
    %v585 = vrot.slane %v584, 2
    %v586 = vadd.f32 %v584, %v585
    %v587 = vrot.slane %v586, 1
    %v588 = vadd.f32 %v586, %v587
    %v589 = vrot.slane %v262, 4
    %v590 = vadd.f32 %v262, %v589
    %v591 = vrot.slane %v590, 2
    %v592 = vadd.f32 %v590, %v591
    %v593 = vrot.slane %v592, 1
    %v594 = vadd.f32 %v592, %v593
    %v595 = vrot.slane %v263, 4
    %v596 = vadd.f32 %v263, %v595
    %v597 = vrot.slane %v596, 2
    %v598 = vadd.f32 %v596, %v597
    %v599 = vrot.slane %v598, 1
    %v600 = vadd.f32 %v598, %v599
    %v601 = vrot.slane %v264, 4
    %v602 = vadd.f32 %v264, %v601
    %v603 = vrot.slane %v602, 2
    %v604 = vadd.f32 %v602, %v603
    %v605 = vrot.slane %v604, 1
    %v606 = vadd.f32 %v604, %v605
    %v607 = vrot.slane %v265, 4
    %v608 = vadd.f32 %v265, %v607
    %v609 = vrot.slane %v608, 2
    %v610 = vadd.f32 %v608, %v609
    %v611 = vrot.slane %v610, 1
    %v612 = vadd.f32 %v610, %v611
    %v613 = vrot.slane %v266, 4
    %v614 = vadd.f32 %v266, %v613
    %v615 = vrot.slane %v614, 2
    %v616 = vadd.f32 %v614, %v615
    %v617 = vrot.slane %v616, 1
    %v618 = vadd.f32 %v616, %v617
    %v619 = vrot.slane %v267, 4
    %v620 = vadd.f32 %v267, %v619
    %v621 = vrot.slane %v620, 2
    %v622 = vadd.f32 %v620, %v621
    %v623 = vrot.slane %v622, 1
    %v624 = vadd.f32 %v622, %v623
    %v625 = vrot.slane %v268, 4
    %v626 = vadd.f32 %v268, %v625
    %v627 = vrot.slane %v626, 2
    %v628 = vadd.f32 %v626, %v627
    %v629 = vrot.slane %v628, 1
    %v630 = vadd.f32 %v628, %v629
    %v631 = vrot.slane %v269, 4
    %v632 = vadd.f32 %v269, %v631
    %v633 = vrot.slane %v632, 2
    %v634 = vadd.f32 %v632, %v633
    %v635 = vrot.slane %v634, 1
    %v636 = vadd.f32 %v634, %v635
    %v637 = vrot.slane %v270, 4
    %v638 = vadd.f32 %v270, %v637
    %v639 = vrot.slane %v638, 2
    %v640 = vadd.f32 %v638, %v639
    %v641 = vrot.slane %v640, 1
    %v642 = vadd.f32 %v640, %v641
    %v643 = vrot.slane %v271, 4
    %v644 = vadd.f32 %v271, %v643
    %v645 = vrot.slane %v644, 2
    %v646 = vadd.f32 %v644, %v645
    %v647 = vrot.slane %v646, 1
    %v648 = vadd.f32 %v646, %v647
    %v649 = vrot.slane %v272, 4
    %v650 = vadd.f32 %v272, %v649
    %v651 = vrot.slane %v650, 2
    %v652 = vadd.f32 %v650, %v651
    %v653 = vrot.slane %v652, 1
    %v654 = vadd.f32 %v652, %v653
    %v655 = vrot.slane %v273, 4
    %v656 = vadd.f32 %v273, %v655
    %v657 = vrot.slane %v656, 2
    %v658 = vadd.f32 %v656, %v657
    %v659 = vrot.slane %v658, 1
    %v660 = vadd.f32 %v658, %v659
    %v661 = vrot.slane %v274, 4
    %v662 = vadd.f32 %v274, %v661
    %v663 = vrot.slane %v662, 2
    %v664 = vadd.f32 %v662, %v663
    %v665 = vrot.slane %v664, 1
    %v666 = vadd.f32 %v664, %v665
    %vm731 = vcmask 1041409
    %v732 = vsel %vm731, %v336, %v288
    %vm733 = vcmask 1042434
    %v734 = vsel %vm733, %v384, %v732
    %vm735 = vcmask 1043459
    %v736 = vsel %vm735, %v432, %v734
    %vm737 = vcmask 1044484
    %v738 = vsel %vm737, %v480, %v736
    %vm739 = vcmask 1045509
    %v740 = vsel %vm739, %v528, %v738
    %vm741 = vcmask 1046534
    %v742 = vsel %vm741, %v576, %v740
    %vm743 = vcmask 1047559
    %v744 = vsel %vm743, %v624, %v742
    %v745 = vsel %vm731, %v342, %v294
    %v746 = vsel %vm733, %v390, %v745
    %v747 = vsel %vm735, %v438, %v746
    %v748 = vsel %vm737, %v486, %v747
    %v749 = vsel %vm739, %v534, %v748
    %v750 = vsel %vm741, %v582, %v749
    %v751 = vsel %vm743, %v630, %v750
    %v752 = vsel %vm731, %v348, %v300
    %v753 = vsel %vm733, %v396, %v752
    %v754 = vsel %vm735, %v444, %v753
    %v755 = vsel %vm737, %v492, %v754
    %v756 = vsel %vm739, %v540, %v755
    %v757 = vsel %vm741, %v588, %v756
    %v758 = vsel %vm743, %v636, %v757
    %v759 = vsel %vm731, %v354, %v306
    %v760 = vsel %vm733, %v402, %v759
    %v761 = vsel %vm735, %v450, %v760
    %v762 = vsel %vm737, %v498, %v761
    %v763 = vsel %vm739, %v546, %v762
    %v764 = vsel %vm741, %v594, %v763
    %v765 = vsel %vm743, %v642, %v764
    %v766 = vsel %vm731, %v360, %v312
    %v767 = vsel %vm733, %v408, %v766
    %v768 = vsel %vm735, %v456, %v767
    %v769 = vsel %vm737, %v504, %v768
    %v770 = vsel %vm739, %v552, %v769
    %v771 = vsel %vm741, %v600, %v770
    %v772 = vsel %vm743, %v648, %v771
    %v773 = vsel %vm731, %v366, %v318
    %v774 = vsel %vm733, %v414, %v773
    %v775 = vsel %vm735, %v462, %v774
    %v776 = vsel %vm737, %v510, %v775
    %v777 = vsel %vm739, %v558, %v776
    %v778 = vsel %vm741, %v606, %v777
    %v779 = vsel %vm743, %v654, %v778
    %v780 = vsel %vm731, %v372, %v324
    %v781 = vsel %vm733, %v420, %v780
    %v782 = vsel %vm735, %v468, %v781
    %v783 = vsel %vm737, %v516, %v782
    %v784 = vsel %vm739, %v564, %v783
    %v785 = vsel %vm741, %v612, %v784
    %v786 = vsel %vm743, %v660, %v785
    %v787 = vsel %vm731, %v378, %v330
    %v788 = vsel %vm733, %v426, %v787
    %v789 = vsel %vm735, %v474, %v788
    %v790 = vsel %vm737, %v522, %v789
    %v791 = vsel %vm739, %v570, %v790
    %v792 = vsel %vm741, %v618, %v791
    %v793 = vsel %vm743, %v666, %v792
    %v802 = vadd.f32 %v275, %v744
    %v803 = vadd.f32 %v276, %v751
    %v804 = vadd.f32 %v277, %v758
    %v805 = vadd.f32 %v278, %v765
    %v806 = vadd.f32 %v279, %v772
    %v807 = vadd.f32 %v280, %v779
    %v808 = vadd.f32 %v281, %v786
    %v809 = vadd.f32 %v282, %v793
    %810 = vst [vmem:[#allocation2] sm:$0xff] %v802
    %811 = vst [vmem:[#allocation2 + $0x8] sm:$0xff] %v803
    %812 = vst [vmem:[#allocation2 + $0x10] sm:$0xff] %v804
    %813 = vst [vmem:[#allocation2 + $0x18] sm:$0xff] %v805
    %814 = vst [vmem:[#allocation2 + $0x20] sm:$0xff] %v806
    %815 = vst [vmem:[#allocation2 + $0x28] sm:$0xff] %v807
    %816 = vst [vmem:[#allocation2 + $0x30] sm:$0xff] %v808
    %817 = vst [vmem:[#allocation2 + $0x38] sm:$0xff] %v809
    // Predicated region
    $region106: #{tpu_custom_call.1} parent=1 // pred_check
      %p818 = pneg %p199
    $region107: #{tpu_custom_call.1} parent=1 // pred_check_branch
      %820 = sbr.rel (%p818) target = $region109
    $region108: #{tpu_custom_call.1} parent=1 // pred_region
      %v821 = vld [vmem:[#allocation7] sm:$0xff]
      %v822 = vld [vmem:[#allocation7 + $0x8] sm:$0xff]
      %v823 = vld [vmem:[#allocation7 + $0x10] sm:$0xff]
      %v824 = vld [vmem:[#allocation7 + $0x18] sm:$0xff]
      %v825 = vld [vmem:[#allocation7 + $0x20] sm:$0xff]
      %v826 = vld [vmem:[#allocation7 + $0x28] sm:$0xff]
      %v827 = vld [vmem:[#allocation7 + $0x30] sm:$0xff]
      %v828 = vld [vmem:[#allocation7 + $0x38] sm:$0xff]
      %v829 = vld [vmem:[#allocation7 + $0x40] sm:$0xff]
      %v830 = vld [vmem:[#allocation7 + $0x48] sm:$0xff]
      %v831 = vld [vmem:[#allocation7 + $0x50] sm:$0xff]
      %v832 = vld [vmem:[#allocation7 + $0x58] sm:$0xff]
      %v833 = vld [vmem:[#allocation7 + $0x60] sm:$0xff]
      %v834 = vld [vmem:[#allocation7 + $0x68] sm:$0xff]
      %v835 = vld [vmem:[#allocation7 + $0x70] sm:$0xff]
      %v836 = vld [vmem:[#allocation7 + $0x78] sm:$0xff]
      %v837 = vld [vmem:[#allocation7 + $0x80] sm:$0xff]
      %v838 = vld [vmem:[#allocation7 + $0x88] sm:$0xff]
      %v839 = vld [vmem:[#allocation7 + $0x90] sm:$0xff]
      %v840 = vld [vmem:[#allocation7 + $0x98] sm:$0xff]
      %v841 = vld [vmem:[#allocation7 + $0xa0] sm:$0xff]
      %v842 = vld [vmem:[#allocation7 + $0xa8] sm:$0xff]
      %v843 = vld [vmem:[#allocation7 + $0xb0] sm:$0xff]
      %v844 = vld [vmem:[#allocation7 + $0xb8] sm:$0xff]
      %v845 = vld [vmem:[#allocation7 + $0xc0] sm:$0xff]
      %v846 = vld [vmem:[#allocation7 + $0xc8] sm:$0xff]
      %v847 = vld [vmem:[#allocation7 + $0xd0] sm:$0xff]
      %v848 = vld [vmem:[#allocation7 + $0xd8] sm:$0xff]
      %v849 = vld [vmem:[#allocation7 + $0xe0] sm:$0xff]
      %v850 = vld [vmem:[#allocation7 + $0xe8] sm:$0xff]
      %v851 = vld [vmem:[#allocation7 + $0xf0] sm:$0xff]
      %v852 = vld [vmem:[#allocation7 + $0xf8] sm:$0xff]
      %v853 = vld [vmem:[#allocation7 + $0x100] sm:$0xff]
      %v854 = vld [vmem:[#allocation7 + $0x108] sm:$0xff]
      %v855 = vld [vmem:[#allocation7 + $0x110] sm:$0xff]
      %v856 = vld [vmem:[#allocation7 + $0x118] sm:$0xff]
      %v857 = vld [vmem:[#allocation7 + $0x120] sm:$0xff]
      %v858 = vld [vmem:[#allocation7 + $0x128] sm:$0xff]
      %v859 = vld [vmem:[#allocation7 + $0x130] sm:$0xff]
      %v860 = vld [vmem:[#allocation7 + $0x138] sm:$0xff]
      %v861 = vld [vmem:[#allocation7 + $0x140] sm:$0xff]
      %v862 = vld [vmem:[#allocation7 + $0x148] sm:$0xff]
      %v863 = vld [vmem:[#allocation7 + $0x150] sm:$0xff]
      %v864 = vld [vmem:[#allocation7 + $0x158] sm:$0xff]
      %v865 = vld [vmem:[#allocation7 + $0x160] sm:$0xff]
      %v866 = vld [vmem:[#allocation7 + $0x168] sm:$0xff]
      %v867 = vld [vmem:[#allocation7 + $0x170] sm:$0xff]
      %v868 = vld [vmem:[#allocation7 + $0x178] sm:$0xff]
      %v869 = vld [vmem:[#allocation2] sm:$0xff]
      %v870 = vld [vmem:[#allocation2 + $0x8] sm:$0xff]
      %v871 = vld [vmem:[#allocation2 + $0x10] sm:$0xff]
      %v872 = vld [vmem:[#allocation2 + $0x18] sm:$0xff]
      %v873 = vld [vmem:[#allocation2 + $0x20] sm:$0xff]
      %v874 = vld [vmem:[#allocation2 + $0x28] sm:$0xff]
      %v875 = vld [vmem:[#allocation2 + $0x30] sm:$0xff]
      %v876 = vld [vmem:[#allocation2 + $0x38] sm:$0xff]
      %v877 = vmul.f32 %v869, 0.125
      %v878 = vmul.f32 %v870, 0.125
      %v879 = vmul.f32 %v871, 0.125
      %v880 = vmul.f32 %v872, 0.125
      %v881 = vmul.f32 %v873, 0.125
      %v882 = vmul.f32 %v874, 0.125
      %v883 = vmul.f32 %v875, 0.125
      %v884 = vmul.f32 %v876, 0.125
      %v885 = vadd.f32 %v821, %v824
      %v886 = vrot.slane %v885, 4
      %v887 = vadd.f32 %v885, %v886
      %v888 = vrot.slane %v887, 2
      %v889 = vadd.f32 %v887, %v888
      %v890 = vrot.slane %v889, 1
      %v891 = vadd.f32 %v889, %v890
      %v892 = vadd.f32 %v822, %v825
      %v893 = vrot.slane %v892, 4
      %v894 = vadd.f32 %v892, %v893
      %v895 = vrot.slane %v894, 2
      %v896 = vadd.f32 %v894, %v895
      %v897 = vrot.slane %v896, 1
      %v898 = vadd.f32 %v896, %v897
      %vm899 = vcmask 359424
      %v900 = vsel %vm899, %v823, 0.0
      %v901 = vsel %vm899, %v826, 0.0
      %v902 = vadd.f32 %v900, %v901
      %v903 = vrot.slane %v902, 4
      %v904 = vadd.f32 %v902, %v903
      %v905 = vrot.slane %v904, 2
      %v906 = vadd.f32 %v904, %v905
      %v907 = vrot.slane %v906, 1
      %v908 = vadd.f32 %v906, %v907
      %v909 = vadd.f32 %v827, %v830
      %v910 = vrot.slane %v909, 4
      %v911 = vadd.f32 %v909, %v910
      %v912 = vrot.slane %v911, 2
      %v913 = vadd.f32 %v911, %v912
      %v914 = vrot.slane %v913, 1
      %v915 = vadd.f32 %v913, %v914
      %v916 = vadd.f32 %v828, %v831
      %v917 = vrot.slane %v916, 4
      %v918 = vadd.f32 %v916, %v917
      %v919 = vrot.slane %v918, 2
      %v920 = vadd.f32 %v918, %v919
      %v921 = vrot.slane %v920, 1
      %v922 = vadd.f32 %v920, %v921
      %v923 = vsel %vm899, %v829, 0.0
      %v924 = vsel %vm899, %v832, 0.0
      %v925 = vadd.f32 %v923, %v924
      %v926 = vrot.slane %v925, 4
      %v927 = vadd.f32 %v925, %v926
      %v928 = vrot.slane %v927, 2
      %v929 = vadd.f32 %v927, %v928
      %v930 = vrot.slane %v929, 1
      %v931 = vadd.f32 %v929, %v930
      %v932 = vadd.f32 %v833, %v836
      %v933 = vrot.slane %v932, 4
      %v934 = vadd.f32 %v932, %v933
      %v935 = vrot.slane %v934, 2
      %v936 = vadd.f32 %v934, %v935
      %v937 = vrot.slane %v936, 1
      %v938 = vadd.f32 %v936, %v937
      %v939 = vadd.f32 %v834, %v837
      %v940 = vrot.slane %v939, 4
      %v941 = vadd.f32 %v939, %v940
      %v942 = vrot.slane %v941, 2
      %v943 = vadd.f32 %v941, %v942
      %v944 = vrot.slane %v943, 1
      %v945 = vadd.f32 %v943, %v944
      %v946 = vsel %vm899, %v835, 0.0
      %v947 = vsel %vm899, %v838, 0.0
      %v948 = vadd.f32 %v946, %v947
      %v949 = vrot.slane %v948, 4
      %v950 = vadd.f32 %v948, %v949
      %v951 = vrot.slane %v950, 2
      %v952 = vadd.f32 %v950, %v951
      %v953 = vrot.slane %v952, 1
      %v954 = vadd.f32 %v952, %v953
      %v955 = vadd.f32 %v839, %v842
      %v956 = vrot.slane %v955, 4
      %v957 = vadd.f32 %v955, %v956
      %v958 = vrot.slane %v957, 2
      %v959 = vadd.f32 %v957, %v958
      %v960 = vrot.slane %v959, 1
      %v961 = vadd.f32 %v959, %v960
      %v962 = vadd.f32 %v840, %v843
      %v963 = vrot.slane %v962, 4
      %v964 = vadd.f32 %v962, %v963
      %v965 = vrot.slane %v964, 2
      %v966 = vadd.f32 %v964, %v965
      %v967 = vrot.slane %v966, 1
      %v968 = vadd.f32 %v966, %v967
      %v969 = vsel %vm899, %v841, 0.0
      %v970 = vsel %vm899, %v844, 0.0
      %v971 = vadd.f32 %v969, %v970
      %v972 = vrot.slane %v971, 4
      %v973 = vadd.f32 %v971, %v972
      %v974 = vrot.slane %v973, 2
      %v975 = vadd.f32 %v973, %v974
      %v976 = vrot.slane %v975, 1
      %v977 = vadd.f32 %v975, %v976
      %v978 = vadd.f32 %v845, %v848
      %v979 = vrot.slane %v978, 4
      %v980 = vadd.f32 %v978, %v979
      %v981 = vrot.slane %v980, 2
      %v982 = vadd.f32 %v980, %v981
      %v983 = vrot.slane %v982, 1
      %v984 = vadd.f32 %v982, %v983
      %v985 = vadd.f32 %v846, %v849
      %v986 = vrot.slane %v985, 4
      %v987 = vadd.f32 %v985, %v986
      %v988 = vrot.slane %v987, 2
      %v989 = vadd.f32 %v987, %v988
      %v990 = vrot.slane %v989, 1
      %v991 = vadd.f32 %v989, %v990
      %v992 = vsel %vm899, %v847, 0.0
      %v993 = vsel %vm899, %v850, 0.0
      %v994 = vadd.f32 %v992, %v993
      %v995 = vrot.slane %v994, 4
      %v996 = vadd.f32 %v994, %v995
      %v997 = vrot.slane %v996, 2
      %v998 = vadd.f32 %v996, %v997
      %v999 = vrot.slane %v998, 1
      %v1000 = vadd.f32 %v998, %v999
      %v1001 = vadd.f32 %v851, %v854
      %v1002 = vrot.slane %v1001, 4
      %v1003 = vadd.f32 %v1001, %v1002
      %v1004 = vrot.slane %v1003, 2
      %v1005 = vadd.f32 %v1003, %v1004
      %v1006 = vrot.slane %v1005, 1
      %v1007 = vadd.f32 %v1005, %v1006
      %v1008 = vadd.f32 %v852, %v855
      %v1009 = vrot.slane %v1008, 4
      %v1010 = vadd.f32 %v1008, %v1009
      %v1011 = vrot.slane %v1010, 2
      %v1012 = vadd.f32 %v1010, %v1011
      %v1013 = vrot.slane %v1012, 1
      %v1014 = vadd.f32 %v1012, %v1013
      %v1015 = vsel %vm899, %v853, 0.0
      %v1016 = vsel %vm899, %v856, 0.0
      %v1017 = vadd.f32 %v1015, %v1016
      %v1018 = vrot.slane %v1017, 4
      %v1019 = vadd.f32 %v1017, %v1018
      %v1020 = vrot.slane %v1019, 2
      %v1021 = vadd.f32 %v1019, %v1020
      %v1022 = vrot.slane %v1021, 1
      %v1023 = vadd.f32 %v1021, %v1022
      %v1024 = vadd.f32 %v857, %v860
      %v1025 = vrot.slane %v1024, 4
      %v1026 = vadd.f32 %v1024, %v1025
      %v1027 = vrot.slane %v1026, 2
      %v1028 = vadd.f32 %v1026, %v1027
      %v1029 = vrot.slane %v1028, 1
      %v1030 = vadd.f32 %v1028, %v1029
      %v1031 = vadd.f32 %v858, %v861
      %v1032 = vrot.slane %v1031, 4
      %v1033 = vadd.f32 %v1031, %v1032
      %v1034 = vrot.slane %v1033, 2
      %v1035 = vadd.f32 %v1033, %v1034
      %v1036 = vrot.slane %v1035, 1
      %v1037 = vadd.f32 %v1035, %v1036
      %v1038 = vsel %vm899, %v859, 0.0
      %v1039 = vsel %vm899, %v862, 0.0
      %v1040 = vadd.f32 %v1038, %v1039
      %v1041 = vrot.slane %v1040, 4
      %v1042 = vadd.f32 %v1040, %v1041
      %v1043 = vrot.slane %v1042, 2
      %v1044 = vadd.f32 %v1042, %v1043
      %v1045 = vrot.slane %v1044, 1
      %v1046 = vadd.f32 %v1044, %v1045
      %v1047 = vadd.f32 %v863, %v866
      %v1048 = vrot.slane %v1047, 4
      %v1049 = vadd.f32 %v1047, %v1048
      %v1050 = vrot.slane %v1049, 2
      %v1051 = vadd.f32 %v1049, %v1050
      %v1052 = vrot.slane %v1051, 1
      %v1053 = vadd.f32 %v1051, %v1052
      %v1054 = vadd.f32 %v864, %v867
      %v1055 = vrot.slane %v1054, 4
      %v1056 = vadd.f32 %v1054, %v1055
      %v1057 = vrot.slane %v1056, 2
      %v1058 = vadd.f32 %v1056, %v1057
      %v1059 = vrot.slane %v1058, 1
      %v1060 = vadd.f32 %v1058, %v1059
      %v1061 = vsel %vm899, %v865, 0.0
      %v1062 = vsel %vm899, %v868, 0.0
      %v1063 = vadd.f32 %v1061, %v1062
      %v1064 = vrot.slane %v1063, 4
      %v1065 = vadd.f32 %v1063, %v1064
      %v1066 = vrot.slane %v1065, 2
      %v1067 = vadd.f32 %v1065, %v1066
      %v1068 = vrot.slane %v1067, 1
      %v1069 = vadd.f32 %v1067, %v1068
      %v1070 = vrcp.pop 16.0
      %v1071 = vmul.f32 %v891, %v1070
      %v1072 = vmul.f32 %v898, %v1070
      %v1073 = vmul.f32 %v908, %v1070
      %v1074 = vmul.f32 %v915, %v1070
      %v1075 = vmul.f32 %v922, %v1070
      %v1076 = vmul.f32 %v931, %v1070
      %v1077 = vmul.f32 %v938, %v1070
      %v1078 = vmul.f32 %v945, %v1070
      %v1079 = vmul.f32 %v954, %v1070
      %v1080 = vmul.f32 %v961, %v1070
      %v1081 = vmul.f32 %v968, %v1070
      %v1082 = vmul.f32 %v977, %v1070
      %v1083 = vmul.f32 %v984, %v1070
      %v1084 = vmul.f32 %v991, %v1070
      %v1085 = vmul.f32 %v1000, %v1070
      %v1086 = vmul.f32 %v1007, %v1070
      %v1087 = vmul.f32 %v1014, %v1070
      %v1088 = vmul.f32 %v1023, %v1070
      %v1089 = vmul.f32 %v1030, %v1070
      %v1090 = vmul.f32 %v1037, %v1070
      %v1091 = vmul.f32 %v1046, %v1070
      %v1092 = vmul.f32 %v1053, %v1070
      %v1093 = vmul.f32 %v1060, %v1070
      %v1094 = vmul.f32 %v1069, %v1070
      %v1095 = vpack.c.bf16 %v877, %v877
      %v1096 = vpack.c.bf16 %v878, %v878
      %v1097 = vpack.c.bf16 %v879, %v879
      %v1098 = vpack.c.bf16 %v880, %v880
      %v1099 = vpack.c.bf16 %v881, %v881
      %v1100 = vpack.c.bf16 %v882, %v882
      %v1101 = vpack.c.bf16 %v883, %v883
      %v1102 = vpack.c.bf16 %v884, %v884
      %v1103 = vld [vmem:[#allocation9] sm:$0xff]
      %v1104 = vld [vmem:[#allocation9 + $0x8] sm:$0xff]
      %v1105 = vld [vmem:[#allocation9 + $0x10] sm:$0xff]
      %v1106 = vld [vmem:[#allocation9 + $0x18] sm:$0xff]
      %v1107 = vld [vmem:[#allocation9 + $0x20] sm:$0xff]
      %v1108 = vld [vmem:[#allocation9 + $0x28] sm:$0xff]
      %v1109 = vld [vmem:[#allocation9 + $0x30] sm:$0xff]
      %v1110 = vld [vmem:[#allocation9 + $0x38] sm:$0xff]
      %v1111 = vld [vmem:[#allocation9 + $0x40] sm:$0xff]
      %v1112 = vld [vmem:[#allocation9 + $0x48] sm:$0xff]
      %v1113 = vld [vmem:[#allocation9 + $0x50] sm:$0xff]
      %v1114 = vld [vmem:[#allocation9 + $0x58] sm:$0xff]
      %v1115 = vld [vmem:[#allocation9 + $0x60] sm:$0xff]
      %v1116 = vld [vmem:[#allocation9 + $0x68] sm:$0xff]
      %v1117 = vld [vmem:[#allocation9 + $0x70] sm:$0xff]
      %v1118 = vld [vmem:[#allocation9 + $0x78] sm:$0xff]
      %v1119 = vld [vmem:[#allocation9 + $0x80] sm:$0xff]
      %v1120 = vld [vmem:[#allocation9 + $0x88] sm:$0xff]
      %v1121 = vld [vmem:[#allocation9 + $0x90] sm:$0xff]
      %v1122 = vld [vmem:[#allocation9 + $0x98] sm:$0xff]
      %v1123 = vld [vmem:[#allocation9 + $0xa0] sm:$0xff]
      %v1124 = vld [vmem:[#allocation9 + $0xa8] sm:$0xff]
      %v1125 = vld [vmem:[#allocation9 + $0xb0] sm:$0xff]
      %v1126 = vld [vmem:[#allocation9 + $0xb8] sm:$0xff]
      %v1127 = vld [vmem:[#allocation9 + $0xc0] sm:$0xff]
      %v1128 = vld [vmem:[#allocation9 + $0xc8] sm:$0xff]
      %v1129 = vld [vmem:[#allocation9 + $0xd0] sm:$0xff]
      %v1130 = vld [vmem:[#allocation9 + $0xd8] sm:$0xff]
      %v1131 = vld [vmem:[#allocation9 + $0xe0] sm:$0xff]
      %v1132 = vld [vmem:[#allocation9 + $0xe8] sm:$0xff]
      %v1133 = vld [vmem:[#allocation9 + $0xf0] sm:$0xff]
      %v1134 = vld [vmem:[#allocation9 + $0xf8] sm:$0xff]
      %v1135 = vld [vmem:[#allocation9 + $0x100] sm:$0xff]
      %v1136 = vld [vmem:[#allocation9 + $0x108] sm:$0xff]
      %v1137 = vld [vmem:[#allocation9 + $0x110] sm:$0xff]
      %v1138 = vld [vmem:[#allocation9 + $0x118] sm:$0xff]
      %v1139 = vld [vmem:[#allocation9 + $0x120] sm:$0xff]
      %v1140 = vld [vmem:[#allocation9 + $0x128] sm:$0xff]
      %v1141 = vld [vmem:[#allocation9 + $0x130] sm:$0xff]
      %v1142 = vld [vmem:[#allocation9 + $0x138] sm:$0xff]
      %v1143 = vld [vmem:[#allocation9 + $0x140] sm:$0xff]
      %v1144 = vld [vmem:[#allocation9 + $0x148] sm:$0xff]
      %v1145 = vld [vmem:[#allocation9 + $0x150] sm:$0xff]
      %v1146 = vld [vmem:[#allocation9 + $0x158] sm:$0xff]
      %v1147 = vld [vmem:[#allocation9 + $0x160] sm:$0xff]
      %v1148 = vld [vmem:[#allocation9 + $0x168] sm:$0xff]
      %v1149 = vld [vmem:[#allocation9 + $0x170] sm:$0xff]
      %v1150 = vld [vmem:[#allocation9 + $0x178] sm:$0xff]
      %v1151 = vld [vmem:[#allocation9 + $0x180] sm:$0xff]
      %v1152 = vld [vmem:[#allocation9 + $0x188] sm:$0xff]
      %v1153 = vld [vmem:[#allocation9 + $0x190] sm:$0xff]
      %v1154 = vld [vmem:[#allocation9 + $0x198] sm:$0xff]
      %v1155 = vld [vmem:[#allocation9 + $0x1a0] sm:$0xff]
      %v1156 = vld [vmem:[#allocation9 + $0x1a8] sm:$0xff]
      %v1157 = vld [vmem:[#allocation9 + $0x1b0] sm:$0xff]
      %v1158 = vld [vmem:[#allocation9 + $0x1b8] sm:$0xff]
      %v1159 = vld [vmem:[#allocation9 + $0x1c0] sm:$0xff]
      %v1160 = vld [vmem:[#allocation9 + $0x1c8] sm:$0xff]
      %v1161 = vld [vmem:[#allocation9 + $0x1d0] sm:$0xff]
      %v1162 = vld [vmem:[#allocation9 + $0x1d8] sm:$0xff]
      %v1163 = vld [vmem:[#allocation9 + $0x1e0] sm:$0xff]
      %v1164 = vld [vmem:[#allocation9 + $0x1e8] sm:$0xff]
      %v1165 = vld [vmem:[#allocation9 + $0x1f0] sm:$0xff]
      %v1166 = vld [vmem:[#allocation9 + $0x1f8] sm:$0xff]
      %v1167 = vld [vmem:[#allocation9 + $0x200] sm:$0xff]
      %v1168 = vld [vmem:[#allocation9 + $0x208] sm:$0xff]
      %v1169 = vld [vmem:[#allocation9 + $0x210] sm:$0xff]
      %v1170 = vld [vmem:[#allocation9 + $0x218] sm:$0xff]
      %v1171 = vld [vmem:[#allocation9 + $0x220] sm:$0xff]
      %v1172 = vld [vmem:[#allocation9 + $0x228] sm:$0xff]
      %v1173 = vld [vmem:[#allocation9 + $0x230] sm:$0xff]
      %v1174 = vld [vmem:[#allocation9 + $0x238] sm:$0xff]
      %v1175 = vld [vmem:[#allocation9 + $0x240] sm:$0xff]
      %v1176 = vld [vmem:[#allocation9 + $0x248] sm:$0xff]
      %v1177 = vld [vmem:[#allocation9 + $0x250] sm:$0xff]
      %v1178 = vld [vmem:[#allocation9 + $0x258] sm:$0xff]
      %v1179 = vld [vmem:[#allocation9 + $0x260] sm:$0xff]
      %v1180 = vld [vmem:[#allocation9 + $0x268] sm:$0xff]
      %v1181 = vld [vmem:[#allocation9 + $0x270] sm:$0xff]
      %v1182 = vld [vmem:[#allocation9 + $0x278] sm:$0xff]
      %v1183 = vld [vmem:[#allocation9 + $0x280] sm:$0xff]
      %v1184 = vld [vmem:[#allocation9 + $0x288] sm:$0xff]
      %v1185 = vld [vmem:[#allocation9 + $0x290] sm:$0xff]
      %v1186 = vld [vmem:[#allocation9 + $0x298] sm:$0xff]
      %v1187 = vld [vmem:[#allocation9 + $0x2a0] sm:$0xff]
      %v1188 = vld [vmem:[#allocation9 + $0x2a8] sm:$0xff]
      %v1189 = vld [vmem:[#allocation9 + $0x2b0] sm:$0xff]
      %v1190 = vld [vmem:[#allocation9 + $0x2b8] sm:$0xff]
      %v1191 = vld [vmem:[#allocation9 + $0x2c0] sm:$0xff]
      %v1192 = vld [vmem:[#allocation9 + $0x2c8] sm:$0xff]
      %v1193 = vld [vmem:[#allocation9 + $0x2d0] sm:$0xff]
      %v1194 = vld [vmem:[#allocation9 + $0x2d8] sm:$0xff]
      %v1195 = vld [vmem:[#allocation9 + $0x2e0] sm:$0xff]
      %v1196 = vld [vmem:[#allocation9 + $0x2e8] sm:$0xff]
      %v1197 = vld [vmem:[#allocation9 + $0x2f0] sm:$0xff]
      %v1198 = vld [vmem:[#allocation9 + $0x2f8] sm:$0xff]
      %v1199 = vld [vmem:[#allocation9 + $0x300] sm:$0xff]
      %v1200 = vld [vmem:[#allocation9 + $0x308] sm:$0xff]
      %v1201 = vld [vmem:[#allocation9 + $0x310] sm:$0xff]
      %v1202 = vld [vmem:[#allocation9 + $0x318] sm:$0xff]
      %v1203 = vld [vmem:[#allocation9 + $0x320] sm:$0xff]
      %v1204 = vld [vmem:[#allocation9 + $0x328] sm:$0xff]
      %v1205 = vld [vmem:[#allocation9 + $0x330] sm:$0xff]
      %v1206 = vld [vmem:[#allocation9 + $0x338] sm:$0xff]
      %v1207 = vld [vmem:[#allocation9 + $0x340] sm:$0xff]
      %v1208 = vld [vmem:[#allocation9 + $0x348] sm:$0xff]
      %v1209 = vld [vmem:[#allocation9 + $0x350] sm:$0xff]
      %v1210 = vld [vmem:[#allocation9 + $0x358] sm:$0xff]
      %v1211 = vld [vmem:[#allocation9 + $0x360] sm:$0xff]
      %v1212 = vld [vmem:[#allocation9 + $0x368] sm:$0xff]
      %v1213 = vld [vmem:[#allocation9 + $0x370] sm:$0xff]
      %v1214 = vld [vmem:[#allocation9 + $0x378] sm:$0xff]
      %v1215 = vld [vmem:[#allocation9 + $0x380] sm:$0xff]
      %v1216 = vld [vmem:[#allocation9 + $0x388] sm:$0xff]
      %v1217 = vld [vmem:[#allocation9 + $0x390] sm:$0xff]
      %v1218 = vld [vmem:[#allocation9 + $0x398] sm:$0xff]
      %v1219 = vld [vmem:[#allocation9 + $0x3a0] sm:$0xff]
      %v1220 = vld [vmem:[#allocation9 + $0x3a8] sm:$0xff]
      %v1221 = vld [vmem:[#allocation9 + $0x3b0] sm:$0xff]
      %v1222 = vld [vmem:[#allocation9 + $0x3b8] sm:$0xff]
      %v1223 = vld [vmem:[#allocation9 + $0x3c0] sm:$0xff]
      %v1224 = vld [vmem:[#allocation9 + $0x3c8] sm:$0xff]
      %v1225 = vld [vmem:[#allocation9 + $0x3d0] sm:$0xff]
      %v1226 = vld [vmem:[#allocation9 + $0x3d8] sm:$0xff]
      %v1227 = vld [vmem:[#allocation9 + $0x3e0] sm:$0xff]
      %v1228 = vld [vmem:[#allocation9 + $0x3e8] sm:$0xff]
      %v1229 = vld [vmem:[#allocation9 + $0x3f0] sm:$0xff]
      %v1230 = vld [vmem:[#allocation9 + $0x3f8] sm:$0xff]
      %v1231 = vld [vmem:[#allocation9 + $0x400] sm:$0xff]
      %v1232 = vld [vmem:[#allocation9 + $0x408] sm:$0xff]
      %v1233 = vld [vmem:[#allocation9 + $0x410] sm:$0xff]
      %v1234 = vld [vmem:[#allocation9 + $0x418] sm:$0xff]
      %v1235 = vld [vmem:[#allocation9 + $0x420] sm:$0xff]
      %v1236 = vld [vmem:[#allocation9 + $0x428] sm:$0xff]
      %v1237 = vld [vmem:[#allocation9 + $0x430] sm:$0xff]
      %v1238 = vld [vmem:[#allocation9 + $0x438] sm:$0xff]
      %v1239 = vld [vmem:[#allocation9 + $0x440] sm:$0xff]
      %v1240 = vld [vmem:[#allocation9 + $0x448] sm:$0xff]
      %v1241 = vld [vmem:[#allocation9 + $0x450] sm:$0xff]
      %v1242 = vld [vmem:[#allocation9 + $0x458] sm:$0xff]
      %v1243 = vld [vmem:[#allocation9 + $0x460] sm:$0xff]
      %v1244 = vld [vmem:[#allocation9 + $0x468] sm:$0xff]
      %v1245 = vld [vmem:[#allocation9 + $0x470] sm:$0xff]
      %v1246 = vld [vmem:[#allocation9 + $0x478] sm:$0xff]
      %v1247 = vld [vmem:[#allocation9 + $0x480] sm:$0xff]
      %v1248 = vld [vmem:[#allocation9 + $0x488] sm:$0xff]
      %v1249 = vld [vmem:[#allocation9 + $0x490] sm:$0xff]
      %v1250 = vld [vmem:[#allocation9 + $0x498] sm:$0xff]
      %v1251 = vld [vmem:[#allocation9 + $0x4a0] sm:$0xff]
      %v1252 = vld [vmem:[#allocation9 + $0x4a8] sm:$0xff]
      %v1253 = vld [vmem:[#allocation9 + $0x4b0] sm:$0xff]
      %v1254 = vld [vmem:[#allocation9 + $0x4b8] sm:$0xff]
      %v1255 = vld [vmem:[#allocation9 + $0x4c0] sm:$0xff]
      %v1256 = vld [vmem:[#allocation9 + $0x4c8] sm:$0xff]
      %v1257 = vld [vmem:[#allocation9 + $0x4d0] sm:$0xff]
      %v1258 = vld [vmem:[#allocation9 + $0x4d8] sm:$0xff]
      %v1259 = vld [vmem:[#allocation9 + $0x4e0] sm:$0xff]
      %v1260 = vld [vmem:[#allocation9 + $0x4e8] sm:$0xff]
      %v1261 = vld [vmem:[#allocation9 + $0x4f0] sm:$0xff]
      %v1262 = vld [vmem:[#allocation9 + $0x4f8] sm:$0xff]
      %v1263 = vld [vmem:[#allocation9 + $0x500] sm:$0xff]
      %v1264 = vld [vmem:[#allocation9 + $0x508] sm:$0xff]
      %v1265 = vld [vmem:[#allocation9 + $0x510] sm:$0xff]
      %v1266 = vld [vmem:[#allocation9 + $0x518] sm:$0xff]
      %v1267 = vld [vmem:[#allocation9 + $0x520] sm:$0xff]
      %v1268 = vld [vmem:[#allocation9 + $0x528] sm:$0xff]
      %v1269 = vld [vmem:[#allocation9 + $0x530] sm:$0xff]
      %v1270 = vld [vmem:[#allocation9 + $0x538] sm:$0xff]
      %v1271 = vld [vmem:[#allocation9 + $0x540] sm:$0xff]
      %v1272 = vld [vmem:[#allocation9 + $0x548] sm:$0xff]
      %v1273 = vld [vmem:[#allocation9 + $0x550] sm:$0xff]
      %v1274 = vld [vmem:[#allocation9 + $0x558] sm:$0xff]
      %v1275 = vld [vmem:[#allocation9 + $0x560] sm:$0xff]
      %v1276 = vld [vmem:[#allocation9 + $0x568] sm:$0xff]
      %v1277 = vld [vmem:[#allocation9 + $0x570] sm:$0xff]
      %v1278 = vld [vmem:[#allocation9 + $0x578] sm:$0xff]
      %v1279 = vld [vmem:[#allocation9 + $0x580] sm:$0xff]
      %v1280 = vld [vmem:[#allocation9 + $0x588] sm:$0xff]
      %v1281 = vld [vmem:[#allocation9 + $0x590] sm:$0xff]
      %v1282 = vld [vmem:[#allocation9 + $0x598] sm:$0xff]
      %v1283 = vld [vmem:[#allocation9 + $0x5a0] sm:$0xff]
      %v1284 = vld [vmem:[#allocation9 + $0x5a8] sm:$0xff]
      %v1285 = vld [vmem:[#allocation9 + $0x5b0] sm:$0xff]
      %v1286 = vld [vmem:[#allocation9 + $0x5b8] sm:$0xff]
      %v1287 = vld [vmem:[#allocation9 + $0x5c0] sm:$0xff]
      %v1288 = vld [vmem:[#allocation9 + $0x5c8] sm:$0xff]
      %v1289 = vld [vmem:[#allocation9 + $0x5d0] sm:$0xff]
      %v1290 = vld [vmem:[#allocation9 + $0x5d8] sm:$0xff]
      %v1291 = vld [vmem:[#allocation9 + $0x5e0] sm:$0xff]
      %v1292 = vld [vmem:[#allocation9 + $0x5e8] sm:$0xff]
      %v1293 = vld [vmem:[#allocation9 + $0x5f0] sm:$0xff]
      %v1294 = vld [vmem:[#allocation9 + $0x5f8] sm:$0xff]
      %v1295 = vld [vmem:[#allocation9 + $0x600] sm:$0xff]
      %v1296 = vld [vmem:[#allocation9 + $0x608] sm:$0xff]
      %v1297 = vld [vmem:[#allocation9 + $0x610] sm:$0xff]
      %v1298 = vld [vmem:[#allocation9 + $0x618] sm:$0xff]
      %v1299 = vld [vmem:[#allocation9 + $0x620] sm:$0xff]
      %v1300 = vld [vmem:[#allocation9 + $0x628] sm:$0xff]
      %v1301 = vld [vmem:[#allocation9 + $0x630] sm:$0xff]
      %v1302 = vld [vmem:[#allocation9 + $0x638] sm:$0xff]
      %v1303 = vld [vmem:[#allocation9 + $0x640] sm:$0xff]
      %v1304 = vld [vmem:[#allocation9 + $0x648] sm:$0xff]
      %v1305 = vld [vmem:[#allocation9 + $0x650] sm:$0xff]
      %v1306 = vld [vmem:[#allocation9 + $0x658] sm:$0xff]
      %v1307 = vld [vmem:[#allocation9 + $0x660] sm:$0xff]
      %v1308 = vld [vmem:[#allocation9 + $0x668] sm:$0xff]
      %v1309 = vld [vmem:[#allocation9 + $0x670] sm:$0xff]
      %v1310 = vld [vmem:[#allocation9 + $0x678] sm:$0xff]
      %v1311 = vld [vmem:[#allocation9 + $0x680] sm:$0xff]
      %v1312 = vld [vmem:[#allocation9 + $0x688] sm:$0xff]
      %v1313 = vld [vmem:[#allocation9 + $0x690] sm:$0xff]
      %v1314 = vld [vmem:[#allocation9 + $0x698] sm:$0xff]
      %v1315 = vld [vmem:[#allocation9 + $0x6a0] sm:$0xff]
      %v1316 = vld [vmem:[#allocation9 + $0x6a8] sm:$0xff]
      %v1317 = vld [vmem:[#allocation9 + $0x6b0] sm:$0xff]
      %v1318 = vld [vmem:[#allocation9 + $0x6b8] sm:$0xff]
      %v1319 = vld [vmem:[#allocation9 + $0x6c0] sm:$0xff]
      %v1320 = vld [vmem:[#allocation9 + $0x6c8] sm:$0xff]
      %v1321 = vld [vmem:[#allocation9 + $0x6d0] sm:$0xff]
      %v1322 = vld [vmem:[#allocation9 + $0x6d8] sm:$0xff]
      %v1323 = vld [vmem:[#allocation9 + $0x6e0] sm:$0xff]
      %v1324 = vld [vmem:[#allocation9 + $0x6e8] sm:$0xff]
      %v1325 = vld [vmem:[#allocation9 + $0x6f0] sm:$0xff]
      %v1326 = vld [vmem:[#allocation9 + $0x6f8] sm:$0xff]
      %v1327 = vld [vmem:[#allocation9 + $0x700] sm:$0xff]
      %v1328 = vld [vmem:[#allocation9 + $0x708] sm:$0xff]
      %v1329 = vld [vmem:[#allocation9 + $0x710] sm:$0xff]
      %v1330 = vld [vmem:[#allocation9 + $0x718] sm:$0xff]
      %v1331 = vld [vmem:[#allocation9 + $0x720] sm:$0xff]
      %v1332 = vld [vmem:[#allocation9 + $0x728] sm:$0xff]
      %v1333 = vld [vmem:[#allocation9 + $0x730] sm:$0xff]
      %v1334 = vld [vmem:[#allocation9 + $0x738] sm:$0xff]
      %v1335 = vld [vmem:[#allocation9 + $0x740] sm:$0xff]
      %v1336 = vld [vmem:[#allocation9 + $0x748] sm:$0xff]
      %v1337 = vld [vmem:[#allocation9 + $0x750] sm:$0xff]
      %v1338 = vld [vmem:[#allocation9 + $0x758] sm:$0xff]
      %v1339 = vld [vmem:[#allocation9 + $0x760] sm:$0xff]
      %v1340 = vld [vmem:[#allocation9 + $0x768] sm:$0xff]
      %v1341 = vld [vmem:[#allocation9 + $0x770] sm:$0xff]
      %v1342 = vld [vmem:[#allocation9 + $0x778] sm:$0xff]
      %v1343 = vld [vmem:[#allocation9 + $0x780] sm:$0xff]
      %v1344 = vld [vmem:[#allocation9 + $0x788] sm:$0xff]
      %v1345 = vld [vmem:[#allocation9 + $0x790] sm:$0xff]
      %v1346 = vld [vmem:[#allocation9 + $0x798] sm:$0xff]
      %v1347 = vld [vmem:[#allocation9 + $0x7a0] sm:$0xff]
      %v1348 = vld [vmem:[#allocation9 + $0x7a8] sm:$0xff]
      %v1349 = vld [vmem:[#allocation9 + $0x7b0] sm:$0xff]
      %v1350 = vld [vmem:[#allocation9 + $0x7b8] sm:$0xff]
      %v1351 = vld [vmem:[#allocation9 + $0x7c0] sm:$0xff]
      %v1352 = vld [vmem:[#allocation9 + $0x7c8] sm:$0xff]
      %v1353 = vld [vmem:[#allocation9 + $0x7d0] sm:$0xff]
      %v1354 = vld [vmem:[#allocation9 + $0x7d8] sm:$0xff]
      %v1355 = vld [vmem:[#allocation9 + $0x7e0] sm:$0xff]
      %v1356 = vld [vmem:[#allocation9 + $0x7e8] sm:$0xff]
      %v1357 = vld [vmem:[#allocation9 + $0x7f0] sm:$0xff]
      %v1358 = vld [vmem:[#allocation9 + $0x7f8] sm:$0xff]
      %v1359 = vld [vmem:[#allocation9 + $0x800] sm:$0xff]
      %v1360 = vld [vmem:[#allocation9 + $0x808] sm:$0xff]
      %v1361 = vld [vmem:[#allocation9 + $0x810] sm:$0xff]
      %v1362 = vld [vmem:[#allocation9 + $0x818] sm:$0xff]
      %v1363 = vld [vmem:[#allocation9 + $0x820] sm:$0xff]
      %v1364 = vld [vmem:[#allocation9 + $0x828] sm:$0xff]
      %v1365 = vld [vmem:[#allocation9 + $0x830] sm:$0xff]
      %v1366 = vld [vmem:[#allocation9 + $0x838] sm:$0xff]
      %v1367 = vld [vmem:[#allocation9 + $0x840] sm:$0xff]
      %v1368 = vld [vmem:[#allocation9 + $0x848] sm:$0xff]
      %v1369 = vld [vmem:[#allocation9 + $0x850] sm:$0xff]
      %v1370 = vld [vmem:[#allocation9 + $0x858] sm:$0xff]
      %v1371 = vld [vmem:[#allocation9 + $0x860] sm:$0xff]
      %v1372 = vld [vmem:[#allocation9 + $0x868] sm:$0xff]
      %v1373 = vld [vmem:[#allocation9 + $0x870] sm:$0xff]
      %v1374 = vld [vmem:[#allocation9 + $0x878] sm:$0xff]
      %v1375 = vld [vmem:[#allocation9 + $0x880] sm:$0xff]
      %v1376 = vld [vmem:[#allocation9 + $0x888] sm:$0xff]
      %v1377 = vld [vmem:[#allocation9 + $0x890] sm:$0xff]
      %v1378 = vld [vmem:[#allocation9 + $0x898] sm:$0xff]
      %v1379 = vld [vmem:[#allocation9 + $0x8a0] sm:$0xff]
      %v1380 = vld [vmem:[#allocation9 + $0x8a8] sm:$0xff]
      %v1381 = vld [vmem:[#allocation9 + $0x8b0] sm:$0xff]
      %v1382 = vld [vmem:[#allocation9 + $0x8b8] sm:$0xff]
      %v1383 = vld [vmem:[#allocation9 + $0x8c0] sm:$0xff]
      %v1384 = vld [vmem:[#allocation9 + $0x8c8] sm:$0xff]
      %v1385 = vld [vmem:[#allocation9 + $0x8d0] sm:$0xff]
      %v1386 = vld [vmem:[#allocation9 + $0x8d8] sm:$0xff]
      %v1387 = vld [vmem:[#allocation9 + $0x8e0] sm:$0xff]
      %v1388 = vld [vmem:[#allocation9 + $0x8e8] sm:$0xff]
      %v1389 = vld [vmem:[#allocation9 + $0x8f0] sm:$0xff]
      %v1390 = vld [vmem:[#allocation9 + $0x8f8] sm:$0xff]
      %v1391 = vld [vmem:[#allocation9 + $0x900] sm:$0xff]
      %v1392 = vld [vmem:[#allocation9 + $0x908] sm:$0xff]
      %v1393 = vld [vmem:[#allocation9 + $0x910] sm:$0xff]
      %v1394 = vld [vmem:[#allocation9 + $0x918] sm:$0xff]
      %v1395 = vld [vmem:[#allocation9 + $0x920] sm:$0xff]
      %v1396 = vld [vmem:[#allocation9 + $0x928] sm:$0xff]
      %v1397 = vld [vmem:[#allocation9 + $0x930] sm:$0xff]
      %v1398 = vld [vmem:[#allocation9 + $0x938] sm:$0xff]
      %v1399 = vld [vmem:[#allocation9 + $0x940] sm:$0xff]
      %v1400 = vld [vmem:[#allocation9 + $0x948] sm:$0xff]
      %v1401 = vld [vmem:[#allocation9 + $0x950] sm:$0xff]
      %v1402 = vld [vmem:[#allocation9 + $0x958] sm:$0xff]
      %v1403 = vld [vmem:[#allocation9 + $0x960] sm:$0xff]
      %v1404 = vld [vmem:[#allocation9 + $0x968] sm:$0xff]
      %v1405 = vld [vmem:[#allocation9 + $0x970] sm:$0xff]
      %v1406 = vld [vmem:[#allocation9 + $0x978] sm:$0xff]
      %v1407 = vld [vmem:[#allocation9 + $0x980] sm:$0xff]
      %v1408 = vld [vmem:[#allocation9 + $0x988] sm:$0xff]
      %v1409 = vld [vmem:[#allocation9 + $0x990] sm:$0xff]
      %v1410 = vld [vmem:[#allocation9 + $0x998] sm:$0xff]
      %v1411 = vld [vmem:[#allocation9 + $0x9a0] sm:$0xff]
      %v1412 = vld [vmem:[#allocation9 + $0x9a8] sm:$0xff]
      %v1413 = vld [vmem:[#allocation9 + $0x9b0] sm:$0xff]
      %v1414 = vld [vmem:[#allocation9 + $0x9b8] sm:$0xff]
      %v1415 = vld [vmem:[#allocation9 + $0x9c0] sm:$0xff]
      %v1416 = vld [vmem:[#allocation9 + $0x9c8] sm:$0xff]
      %v1417 = vld [vmem:[#allocation9 + $0x9d0] sm:$0xff]
      %v1418 = vld [vmem:[#allocation9 + $0x9d8] sm:$0xff]
      %v1419 = vld [vmem:[#allocation9 + $0x9e0] sm:$0xff]
      %v1420 = vld [vmem:[#allocation9 + $0x9e8] sm:$0xff]
      %v1421 = vld [vmem:[#allocation9 + $0x9f0] sm:$0xff]
      %v1422 = vld [vmem:[#allocation9 + $0x9f8] sm:$0xff]
      %v1423 = vld [vmem:[#allocation9 + $0xa00] sm:$0xff]
      %v1424 = vld [vmem:[#allocation9 + $0xa08] sm:$0xff]
      %v1425 = vld [vmem:[#allocation9 + $0xa10] sm:$0xff]
      %v1426 = vld [vmem:[#allocation9 + $0xa18] sm:$0xff]
      %v1427 = vld [vmem:[#allocation9 + $0xa20] sm:$0xff]
      %v1428 = vld [vmem:[#allocation9 + $0xa28] sm:$0xff]
      %v1429 = vld [vmem:[#allocation9 + $0xa30] sm:$0xff]
      %v1430 = vld [vmem:[#allocation9 + $0xa38] sm:$0xff]
      %v1431 = vld [vmem:[#allocation9 + $0xa40] sm:$0xff]
      %v1432 = vld [vmem:[#allocation9 + $0xa48] sm:$0xff]
      %v1433 = vld [vmem:[#allocation9 + $0xa50] sm:$0xff]
      %v1434 = vld [vmem:[#allocation9 + $0xa58] sm:$0xff]
      %v1435 = vld [vmem:[#allocation9 + $0xa60] sm:$0xff]
      %v1436 = vld [vmem:[#allocation9 + $0xa68] sm:$0xff]
      %v1437 = vld [vmem:[#allocation9 + $0xa70] sm:$0xff]
      %v1438 = vld [vmem:[#allocation9 + $0xa78] sm:$0xff]
      %v1439 = vld [vmem:[#allocation9 + $0xa80] sm:$0xff]
      %v1440 = vld [vmem:[#allocation9 + $0xa88] sm:$0xff]
      %v1441 = vld [vmem:[#allocation9 + $0xa90] sm:$0xff]
      %v1442 = vld [vmem:[#allocation9 + $0xa98] sm:$0xff]
      %v1443 = vld [vmem:[#allocation9 + $0xaa0] sm:$0xff]
      %v1444 = vld [vmem:[#allocation9 + $0xaa8] sm:$0xff]
      %v1445 = vld [vmem:[#allocation9 + $0xab0] sm:$0xff]
      %v1446 = vld [vmem:[#allocation9 + $0xab8] sm:$0xff]
      %v1447 = vld [vmem:[#allocation9 + $0xac0] sm:$0xff]
      %v1448 = vld [vmem:[#allocation9 + $0xac8] sm:$0xff]
      %v1449 = vld [vmem:[#allocation9 + $0xad0] sm:$0xff]
      %v1450 = vld [vmem:[#allocation9 + $0xad8] sm:$0xff]
      %v1451 = vld [vmem:[#allocation9 + $0xae0] sm:$0xff]
      %v1452 = vld [vmem:[#allocation9 + $0xae8] sm:$0xff]
      %v1453 = vld [vmem:[#allocation9 + $0xaf0] sm:$0xff]
      %v1454 = vld [vmem:[#allocation9 + $0xaf8] sm:$0xff]
      %v1455 = vld [vmem:[#allocation9 + $0xb00] sm:$0xff]
      %v1456 = vld [vmem:[#allocation9 + $0xb08] sm:$0xff]
      %v1457 = vld [vmem:[#allocation9 + $0xb10] sm:$0xff]
      %v1458 = vld [vmem:[#allocation9 + $0xb18] sm:$0xff]
      %v1459 = vld [vmem:[#allocation9 + $0xb20] sm:$0xff]
      %v1460 = vld [vmem:[#allocation9 + $0xb28] sm:$0xff]
      %v1461 = vld [vmem:[#allocation9 + $0xb30] sm:$0xff]
      %v1462 = vld [vmem:[#allocation9 + $0xb38] sm:$0xff]
      %v1463 = vld [vmem:[#allocation9 + $0xb40] sm:$0xff]
      %v1464 = vld [vmem:[#allocation9 + $0xb48] sm:$0xff]
      %v1465 = vld [vmem:[#allocation9 + $0xb50] sm:$0xff]
      %v1466 = vld [vmem:[#allocation9 + $0xb58] sm:$0xff]
      %v1467 = vld [vmem:[#allocation9 + $0xb60] sm:$0xff]
      %v1468 = vld [vmem:[#allocation9 + $0xb68] sm:$0xff]
      %v1469 = vld [vmem:[#allocation9 + $0xb70] sm:$0xff]
      %v1470 = vld [vmem:[#allocation9 + $0xb78] sm:$0xff]
      %v1471 = vld [vmem:[#allocation9 + $0xb80] sm:$0xff]
      %v1472 = vld [vmem:[#allocation9 + $0xb88] sm:$0xff]
      %v1473 = vld [vmem:[#allocation9 + $0xb90] sm:$0xff]
      %v1474 = vld [vmem:[#allocation9 + $0xb98] sm:$0xff]
      %v1475 = vld [vmem:[#allocation9 + $0xba0] sm:$0xff]
      %v1476 = vld [vmem:[#allocation9 + $0xba8] sm:$0xff]
      %v1477 = vld [vmem:[#allocation9 + $0xbb0] sm:$0xff]
      %v1478 = vld [vmem:[#allocation9 + $0xbb8] sm:$0xff]
      %v1479 = vld [vmem:[#allocation9 + $0xbc0] sm:$0xff]
      %v1480 = vld [vmem:[#allocation9 + $0xbc8] sm:$0xff]
      %v1481 = vld [vmem:[#allocation9 + $0xbd0] sm:$0xff]
      %v1482 = vld [vmem:[#allocation9 + $0xbd8] sm:$0xff]
      %v1483 = vld [vmem:[#allocation9 + $0xbe0] sm:$0xff]
      %v1484 = vld [vmem:[#allocation9 + $0xbe8] sm:$0xff]
      %v1485 = vld [vmem:[#allocation9 + $0xbf0] sm:$0xff]
      %v1486 = vld [vmem:[#allocation9 + $0xbf8] sm:$0xff]
      %v1487 = vld [vmem:[#allocation10] sm:$0x3f]
      %v1489 = vlaneseq
      %v1490 = vshrl.u32 %v1489, 7
      %v1491 = vsub.s32 0, %v1490
      %v1492 = vrot.slane %v1487, %v1491
      %v1493 = vlaneseq
      %v1494 = vshrl.u32 %v1493, 7
      %v1495 = vsub.s32 1, %v1494
      %v1496 = vrot.slane %v1487, %v1495
      %v1497 = vlaneseq
      %v1498 = vshrl.u32 %v1497, 7
      %v1499 = vsub.s32 2, %v1498
      %v1500 = vrot.slane %v1487, %v1499
      %v1501 = vlaneseq
      %v1502 = vshrl.u32 %v1501, 7
      %v1503 = vsub.s32 3, %v1502
      %v1504 = vrot.slane %v1487, %v1503
      %v1505 = vlaneseq
      %v1506 = vshrl.u32 %v1505, 7
      %v1507 = vsub.s32 4, %v1506
      %v1508 = vrot.slane %v1487, %v1507
      %v1509 = vlaneseq
      %v1510 = vshrl.u32 %v1509, 7
      %v1511 = vsub.s32 5, %v1510
      %v1512 = vrot.slane %v1487, %v1511
      %v1903 = vunpack.c.l.b16 %v1103
      %v1904 = vunpack.c.h.b16 %v1103
      %v1905 = vunpack.c.l.b16 %v1104
      %v1906 = vunpack.c.h.b16 %v1104
      %v1907 = vunpack.c.l.b16 %v1105
      %v1908 = vunpack.c.h.b16 %v1105
      %v1909 = vunpack.c.l.b16 %v1106
      %v1910 = vunpack.c.h.b16 %v1106
      %v1911 = vunpack.c.l.b16 %v1107
      %v1912 = vunpack.c.h.b16 %v1107
      %v1913 = vunpack.c.l.b16 %v1108
      %v1914 = vunpack.c.h.b16 %v1108
      %v1915 = vunpack.c.l.b16 %v1109
      %v1916 = vunpack.c.h.b16 %v1109
      %v1917 = vunpack.c.l.b16 %v1110
      %v1918 = vunpack.c.h.b16 %v1110
      %v1919 = vunpack.c.l.b16 %v1111
      %v1920 = vunpack.c.h.b16 %v1111
      %v1921 = vunpack.c.l.b16 %v1112
      %v1922 = vunpack.c.h.b16 %v1112
      %v1923 = vunpack.c.l.b16 %v1113
      %v1924 = vunpack.c.h.b16 %v1113
      %v1925 = vunpack.c.l.b16 %v1114
      %v1926 = vunpack.c.h.b16 %v1114
      %v1927 = vunpack.c.l.b16 %v1115
      %v1928 = vunpack.c.h.b16 %v1115
      %v1929 = vunpack.c.l.b16 %v1116
      %v1930 = vunpack.c.h.b16 %v1116
      %v1931 = vunpack.c.l.b16 %v1117
      %v1932 = vunpack.c.h.b16 %v1117
      %v1933 = vunpack.c.l.b16 %v1118
      %v1934 = vunpack.c.h.b16 %v1118
      %v1935 = vunpack.c.l.b16 %v1119
      %v1936 = vunpack.c.h.b16 %v1119
      %v1937 = vunpack.c.l.b16 %v1120
      %v1938 = vunpack.c.h.b16 %v1120
      %v1939 = vunpack.c.l.b16 %v1121
      %v1940 = vunpack.c.h.b16 %v1121
      %v1941 = vunpack.c.l.b16 %v1122
      %v1942 = vunpack.c.h.b16 %v1122
      %v1943 = vunpack.c.l.b16 %v1123
      %v1944 = vunpack.c.h.b16 %v1123
      %v1945 = vunpack.c.l.b16 %v1124
      %v1946 = vunpack.c.h.b16 %v1124
      %v1947 = vunpack.c.l.b16 %v1125
      %v1948 = vunpack.c.h.b16 %v1125
      %v1949 = vunpack.c.l.b16 %v1126
      %v1950 = vunpack.c.h.b16 %v1126
      %v1951 = vunpack.c.l.b16 %v1127
      %v1952 = vunpack.c.h.b16 %v1127
      %v1953 = vunpack.c.l.b16 %v1128
      %v1954 = vunpack.c.h.b16 %v1128
      %v1955 = vunpack.c.l.b16 %v1129
      %v1956 = vunpack.c.h.b16 %v1129
      %v1957 = vunpack.c.l.b16 %v1130
      %v1958 = vunpack.c.h.b16 %v1130
      %v1959 = vunpack.c.l.b16 %v1131
      %v1960 = vunpack.c.h.b16 %v1131
      %v1961 = vunpack.c.l.b16 %v1132
      %v1962 = vunpack.c.h.b16 %v1132
      %v1963 = vunpack.c.l.b16 %v1133
      %v1964 = vunpack.c.h.b16 %v1133
      %v1965 = vunpack.c.l.b16 %v1134
      %v1966 = vunpack.c.h.b16 %v1134
      %v1967 = vunpack.c.l.b16 %v1135
      %v1968 = vunpack.c.h.b16 %v1135
      %v1969 = vunpack.c.l.b16 %v1136
      %v1970 = vunpack.c.h.b16 %v1136
      %v1971 = vunpack.c.l.b16 %v1137
      %v1972 = vunpack.c.h.b16 %v1137
      %v1973 = vunpack.c.l.b16 %v1138
      %v1974 = vunpack.c.h.b16 %v1138
      %v1975 = vunpack.c.l.b16 %v1139
      %v1976 = vunpack.c.h.b16 %v1139
      %v1977 = vunpack.c.l.b16 %v1140
      %v1978 = vunpack.c.h.b16 %v1140
      %v1979 = vunpack.c.l.b16 %v1141
      %v1980 = vunpack.c.h.b16 %v1141
      %v1981 = vunpack.c.l.b16 %v1142
      %v1982 = vunpack.c.h.b16 %v1142
      %v1983 = vunpack.c.l.b16 %v1143
      %v1984 = vunpack.c.h.b16 %v1143
      %v1985 = vunpack.c.l.b16 %v1144
      %v1986 = vunpack.c.h.b16 %v1144
      %v1987 = vunpack.c.l.b16 %v1145
      %v1988 = vunpack.c.h.b16 %v1145
      %v1989 = vunpack.c.l.b16 %v1146
      %v1990 = vunpack.c.h.b16 %v1146
      %v1991 = vunpack.c.l.b16 %v1147
      %v1992 = vunpack.c.h.b16 %v1147
      %v1993 = vunpack.c.l.b16 %v1148
      %v1994 = vunpack.c.h.b16 %v1148
      %v1995 = vunpack.c.l.b16 %v1149
      %v1996 = vunpack.c.h.b16 %v1149
      %v1997 = vunpack.c.l.b16 %v1150
      %v1998 = vunpack.c.h.b16 %v1150
      %v1999 = vunpack.c.l.b16 %v1151
      %v2000 = vunpack.c.h.b16 %v1151
      %v2001 = vunpack.c.l.b16 %v1152
      %v2002 = vunpack.c.h.b16 %v1152
      %v2003 = vunpack.c.l.b16 %v1153
      %v2004 = vunpack.c.h.b16 %v1153
      %v2005 = vunpack.c.l.b16 %v1154
      %v2006 = vunpack.c.h.b16 %v1154
      %v2007 = vunpack.c.l.b16 %v1155
      %v2008 = vunpack.c.h.b16 %v1155
      %v2009 = vunpack.c.l.b16 %v1156
      %v2010 = vunpack.c.h.b16 %v1156
      %v2011 = vunpack.c.l.b16 %v1157
      %v2012 = vunpack.c.h.b16 %v1157
      %v2013 = vunpack.c.l.b16 %v1158
      %v2014 = vunpack.c.h.b16 %v1158
      %v2015 = vunpack.c.l.b16 %v1159
      %v2016 = vunpack.c.h.b16 %v1159
      %v2017 = vunpack.c.l.b16 %v1160
      %v2018 = vunpack.c.h.b16 %v1160
      %v2019 = vunpack.c.l.b16 %v1161
      %v2020 = vunpack.c.h.b16 %v1161
      %v2021 = vunpack.c.l.b16 %v1162
      %v2022 = vunpack.c.h.b16 %v1162
      %v2023 = vunpack.c.l.b16 %v1163
      %v2024 = vunpack.c.h.b16 %v1163
      %v2025 = vunpack.c.l.b16 %v1164
      %v2026 = vunpack.c.h.b16 %v1164
      %v2027 = vunpack.c.l.b16 %v1165
      %v2028 = vunpack.c.h.b16 %v1165
      %v2029 = vunpack.c.l.b16 %v1166
      %v2030 = vunpack.c.h.b16 %v1166
      %v2031 = vunpack.c.l.b16 %v1167
      %v2032 = vunpack.c.h.b16 %v1167
      %v2033 = vunpack.c.l.b16 %v1168
      %v2034 = vunpack.c.h.b16 %v1168
      %v2035 = vunpack.c.l.b16 %v1169
      %v2036 = vunpack.c.h.b16 %v1169
      %v2037 = vunpack.c.l.b16 %v1170
      %v2038 = vunpack.c.h.b16 %v1170
      %v2039 = vunpack.c.l.b16 %v1171
      %v2040 = vunpack.c.h.b16 %v1171
      %v2041 = vunpack.c.l.b16 %v1172
      %v2042 = vunpack.c.h.b16 %v1172
      %v2043 = vunpack.c.l.b16 %v1173
      %v2044 = vunpack.c.h.b16 %v1173
      %v2045 = vunpack.c.l.b16 %v1174
      %v2046 = vunpack.c.h.b16 %v1174
      %v2047 = vunpack.c.l.b16 %v1175
      %v2048 = vunpack.c.h.b16 %v1175
      %v2049 = vunpack.c.l.b16 %v1176
      %v2050 = vunpack.c.h.b16 %v1176
      %v2051 = vunpack.c.l.b16 %v1177
      %v2052 = vunpack.c.h.b16 %v1177
      %v2053 = vunpack.c.l.b16 %v1178
      %v2054 = vunpack.c.h.b16 %v1178
      %v2055 = vunpack.c.l.b16 %v1179
      %v2056 = vunpack.c.h.b16 %v1179
      %v2057 = vunpack.c.l.b16 %v1180
      %v2058 = vunpack.c.h.b16 %v1180
      %v2059 = vunpack.c.l.b16 %v1181
      %v2060 = vunpack.c.h.b16 %v1181
      %v2061 = vunpack.c.l.b16 %v1182
      %v2062 = vunpack.c.h.b16 %v1182
      %v2063 = vunpack.c.l.b16 %v1183
      %v2064 = vunpack.c.h.b16 %v1183
      %v2065 = vunpack.c.l.b16 %v1184
      %v2066 = vunpack.c.h.b16 %v1184
      %v2067 = vunpack.c.l.b16 %v1185
      %v2068 = vunpack.c.h.b16 %v1185
      %v2069 = vunpack.c.l.b16 %v1186
      %v2070 = vunpack.c.h.b16 %v1186
      %v2071 = vunpack.c.l.b16 %v1187
      %v2072 = vunpack.c.h.b16 %v1187
      %v2073 = vunpack.c.l.b16 %v1188
      %v2074 = vunpack.c.h.b16 %v1188
      %v2075 = vunpack.c.l.b16 %v1189
      %v2076 = vunpack.c.h.b16 %v1189
      %v2077 = vunpack.c.l.b16 %v1190
      %v2078 = vunpack.c.h.b16 %v1190
      %v2079 = vunpack.c.l.b16 %v1191
      %v2080 = vunpack.c.h.b16 %v1191
      %v2081 = vunpack.c.l.b16 %v1192
      %v2082 = vunpack.c.h.b16 %v1192
      %v2083 = vunpack.c.l.b16 %v1193
      %v2084 = vunpack.c.h.b16 %v1193
      %v2085 = vunpack.c.l.b16 %v1194
      %v2086 = vunpack.c.h.b16 %v1194
      %v2087 = vunpack.c.l.b16 %v1195
      %v2088 = vunpack.c.h.b16 %v1195
      %v2089 = vunpack.c.l.b16 %v1196
      %v2090 = vunpack.c.h.b16 %v1196
      %v2091 = vunpack.c.l.b16 %v1197
      %v2092 = vunpack.c.h.b16 %v1197
      %v2093 = vunpack.c.l.b16 %v1198
      %v2094 = vunpack.c.h.b16 %v1198
      %v2095 = vunpack.c.l.b16 %v1199
      %v2096 = vunpack.c.h.b16 %v1199
      %v2097 = vunpack.c.l.b16 %v1200
      %v2098 = vunpack.c.h.b16 %v1200
      %v2099 = vunpack.c.l.b16 %v1201
      %v2100 = vunpack.c.h.b16 %v1201
      %v2101 = vunpack.c.l.b16 %v1202
      %v2102 = vunpack.c.h.b16 %v1202
      %v2103 = vunpack.c.l.b16 %v1203
      %v2104 = vunpack.c.h.b16 %v1203
      %v2105 = vunpack.c.l.b16 %v1204
      %v2106 = vunpack.c.h.b16 %v1204
      %v2107 = vunpack.c.l.b16 %v1205
      %v2108 = vunpack.c.h.b16 %v1205
      %v2109 = vunpack.c.l.b16 %v1206
      %v2110 = vunpack.c.h.b16 %v1206
      %v2111 = vunpack.c.l.b16 %v1207
      %v2112 = vunpack.c.h.b16 %v1207
      %v2113 = vunpack.c.l.b16 %v1208
      %v2114 = vunpack.c.h.b16 %v1208
      %v2115 = vunpack.c.l.b16 %v1209
      %v2116 = vunpack.c.h.b16 %v1209
      %v2117 = vunpack.c.l.b16 %v1210
      %v2118 = vunpack.c.h.b16 %v1210
      %v2119 = vunpack.c.l.b16 %v1211
      %v2120 = vunpack.c.h.b16 %v1211
      %v2121 = vunpack.c.l.b16 %v1212
      %v2122 = vunpack.c.h.b16 %v1212
      %v2123 = vunpack.c.l.b16 %v1213
      %v2124 = vunpack.c.h.b16 %v1213
      %v2125 = vunpack.c.l.b16 %v1214
      %v2126 = vunpack.c.h.b16 %v1214
      %v2127 = vunpack.c.l.b16 %v1215
      %v2128 = vunpack.c.h.b16 %v1215
      %v2129 = vunpack.c.l.b16 %v1216
      %v2130 = vunpack.c.h.b16 %v1216
      %v2131 = vunpack.c.l.b16 %v1217
      %v2132 = vunpack.c.h.b16 %v1217
      %v2133 = vunpack.c.l.b16 %v1218
      %v2134 = vunpack.c.h.b16 %v1218
      %v2135 = vunpack.c.l.b16 %v1219
      %v2136 = vunpack.c.h.b16 %v1219
      %v2137 = vunpack.c.l.b16 %v1220
      %v2138 = vunpack.c.h.b16 %v1220
      %v2139 = vunpack.c.l.b16 %v1221
      %v2140 = vunpack.c.h.b16 %v1221
      %v2141 = vunpack.c.l.b16 %v1222
      %v2142 = vunpack.c.h.b16 %v1222
      %v2143 = vunpack.c.l.b16 %v1223
      %v2144 = vunpack.c.h.b16 %v1223
      %v2145 = vunpack.c.l.b16 %v1224
      %v2146 = vunpack.c.h.b16 %v1224
      %v2147 = vunpack.c.l.b16 %v1225
      %v2148 = vunpack.c.h.b16 %v1225
      %v2149 = vunpack.c.l.b16 %v1226
      %v2150 = vunpack.c.h.b16 %v1226
      %v2151 = vunpack.c.l.b16 %v1227
      %v2152 = vunpack.c.h.b16 %v1227
      %v2153 = vunpack.c.l.b16 %v1228
      %v2154 = vunpack.c.h.b16 %v1228
      %v2155 = vunpack.c.l.b16 %v1229
      %v2156 = vunpack.c.h.b16 %v1229
      %v2157 = vunpack.c.l.b16 %v1230
      %v2158 = vunpack.c.h.b16 %v1230
      %v2159 = vunpack.c.l.b16 %v1231
      %v2160 = vunpack.c.h.b16 %v1231
      %v2161 = vunpack.c.l.b16 %v1232
      %v2162 = vunpack.c.h.b16 %v1232
      %v2163 = vunpack.c.l.b16 %v1233
      %v2164 = vunpack.c.h.b16 %v1233
      %v2165 = vunpack.c.l.b16 %v1234
      %v2166 = vunpack.c.h.b16 %v1234
      %v2167 = vunpack.c.l.b16 %v1235
      %v2168 = vunpack.c.h.b16 %v1235
      %v2169 = vunpack.c.l.b16 %v1236
      %v2170 = vunpack.c.h.b16 %v1236
      %v2171 = vunpack.c.l.b16 %v1237
      %v2172 = vunpack.c.h.b16 %v1237
      %v2173 = vunpack.c.l.b16 %v1238
      %v2174 = vunpack.c.h.b16 %v1238
      %v2175 = vunpack.c.l.b16 %v1239
      %v2176 = vunpack.c.h.b16 %v1239
      %v2177 = vunpack.c.l.b16 %v1240
      %v2178 = vunpack.c.h.b16 %v1240
      %v2179 = vunpack.c.l.b16 %v1241
      %v2180 = vunpack.c.h.b16 %v1241
      %v2181 = vunpack.c.l.b16 %v1242
      %v2182 = vunpack.c.h.b16 %v1242
      %v2183 = vunpack.c.l.b16 %v1243
      %v2184 = vunpack.c.h.b16 %v1243
      %v2185 = vunpack.c.l.b16 %v1244
      %v2186 = vunpack.c.h.b16 %v1244
      %v2187 = vunpack.c.l.b16 %v1245
      %v2188 = vunpack.c.h.b16 %v1245
      %v2189 = vunpack.c.l.b16 %v1246
      %v2190 = vunpack.c.h.b16 %v1246
      %v2191 = vunpack.c.l.b16 %v1247
      %v2192 = vunpack.c.h.b16 %v1247
      %v2193 = vunpack.c.l.b16 %v1248
      %v2194 = vunpack.c.h.b16 %v1248
      %v2195 = vunpack.c.l.b16 %v1249
      %v2196 = vunpack.c.h.b16 %v1249
      %v2197 = vunpack.c.l.b16 %v1250
      %v2198 = vunpack.c.h.b16 %v1250
      %v2199 = vunpack.c.l.b16 %v1251
      %v2200 = vunpack.c.h.b16 %v1251
      %v2201 = vunpack.c.l.b16 %v1252
      %v2202 = vunpack.c.h.b16 %v1252
      %v2203 = vunpack.c.l.b16 %v1253
      %v2204 = vunpack.c.h.b16 %v1253
      %v2205 = vunpack.c.l.b16 %v1254
      %v2206 = vunpack.c.h.b16 %v1254
      %v2207 = vunpack.c.l.b16 %v1255
      %v2208 = vunpack.c.h.b16 %v1255
      %v2209 = vunpack.c.l.b16 %v1256
      %v2210 = vunpack.c.h.b16 %v1256
      %v2211 = vunpack.c.l.b16 %v1257
      %v2212 = vunpack.c.h.b16 %v1257
      %v2213 = vunpack.c.l.b16 %v1258
      %v2214 = vunpack.c.h.b16 %v1258
      %v2215 = vunpack.c.l.b16 %v1259
      %v2216 = vunpack.c.h.b16 %v1259
      %v2217 = vunpack.c.l.b16 %v1260
      %v2218 = vunpack.c.h.b16 %v1260
      %v2219 = vunpack.c.l.b16 %v1261
      %v2220 = vunpack.c.h.b16 %v1261
      %v2221 = vunpack.c.l.b16 %v1262
      %v2222 = vunpack.c.h.b16 %v1262
      %v2223 = vunpack.c.l.b16 %v1263
      %v2224 = vunpack.c.h.b16 %v1263
      %v2225 = vunpack.c.l.b16 %v1264
      %v2226 = vunpack.c.h.b16 %v1264
      %v2227 = vunpack.c.l.b16 %v1265
      %v2228 = vunpack.c.h.b16 %v1265
      %v2229 = vunpack.c.l.b16 %v1266
      %v2230 = vunpack.c.h.b16 %v1266
      %v2231 = vunpack.c.l.b16 %v1267
      %v2232 = vunpack.c.h.b16 %v1267
      %v2233 = vunpack.c.l.b16 %v1268
      %v2234 = vunpack.c.h.b16 %v1268
      %v2235 = vunpack.c.l.b16 %v1269
      %v2236 = vunpack.c.h.b16 %v1269
      %v2237 = vunpack.c.l.b16 %v1270
      %v2238 = vunpack.c.h.b16 %v1270
      %v2239 = vunpack.c.l.b16 %v1271
      %v2240 = vunpack.c.h.b16 %v1271
      %v2241 = vunpack.c.l.b16 %v1272
      %v2242 = vunpack.c.h.b16 %v1272
      %v2243 = vunpack.c.l.b16 %v1273
      %v2244 = vunpack.c.h.b16 %v1273
      %v2245 = vunpack.c.l.b16 %v1274
      %v2246 = vunpack.c.h.b16 %v1274
      %v2247 = vunpack.c.l.b16 %v1275
      %v2248 = vunpack.c.h.b16 %v1275
      %v2249 = vunpack.c.l.b16 %v1276
      %v2250 = vunpack.c.h.b16 %v1276
      %v2251 = vunpack.c.l.b16 %v1277
      %v2252 = vunpack.c.h.b16 %v1277
      %v2253 = vunpack.c.l.b16 %v1278
      %v2254 = vunpack.c.h.b16 %v1278
      %v2255 = vunpack.c.l.b16 %v1279
      %v2256 = vunpack.c.h.b16 %v1279
      %v2257 = vunpack.c.l.b16 %v1280
      %v2258 = vunpack.c.h.b16 %v1280
      %v2259 = vunpack.c.l.b16 %v1281
      %v2260 = vunpack.c.h.b16 %v1281
      %v2261 = vunpack.c.l.b16 %v1282
      %v2262 = vunpack.c.h.b16 %v1282
      %v2263 = vunpack.c.l.b16 %v1283
      %v2264 = vunpack.c.h.b16 %v1283
      %v2265 = vunpack.c.l.b16 %v1284
      %v2266 = vunpack.c.h.b16 %v1284
      %v2267 = vunpack.c.l.b16 %v1285
      %v2268 = vunpack.c.h.b16 %v1285
      %v2269 = vunpack.c.l.b16 %v1286
      %v2270 = vunpack.c.h.b16 %v1286
      %v2271 = vunpack.c.l.b16 %v1287
      %v2272 = vunpack.c.h.b16 %v1287
      %v2273 = vunpack.c.l.b16 %v1288
      %v2274 = vunpack.c.h.b16 %v1288
      %v2275 = vunpack.c.l.b16 %v1289
      %v2276 = vunpack.c.h.b16 %v1289
      %v2277 = vunpack.c.l.b16 %v1290
      %v2278 = vunpack.c.h.b16 %v1290
      %v2279 = vunpack.c.l.b16 %v1291
      %v2280 = vunpack.c.h.b16 %v1291
      %v2281 = vunpack.c.l.b16 %v1292
      %v2282 = vunpack.c.h.b16 %v1292
      %v2283 = vunpack.c.l.b16 %v1293
      %v2284 = vunpack.c.h.b16 %v1293
      %v2285 = vunpack.c.l.b16 %v1294
      %v2286 = vunpack.c.h.b16 %v1294
      %v2287 = vunpack.c.l.b16 %v1295
      %v2288 = vunpack.c.h.b16 %v1295
      %v2289 = vunpack.c.l.b16 %v1296
      %v2290 = vunpack.c.h.b16 %v1296
      %v2291 = vunpack.c.l.b16 %v1297
      %v2292 = vunpack.c.h.b16 %v1297
      %v2293 = vunpack.c.l.b16 %v1298
      %v2294 = vunpack.c.h.b16 %v1298
      %v2295 = vunpack.c.l.b16 %v1299
      %v2296 = vunpack.c.h.b16 %v1299
      %v2297 = vunpack.c.l.b16 %v1300
      %v2298 = vunpack.c.h.b16 %v1300
      %v2299 = vunpack.c.l.b16 %v1301
      %v2300 = vunpack.c.h.b16 %v1301
      %v2301 = vunpack.c.l.b16 %v1302
      %v2302 = vunpack.c.h.b16 %v1302
      %v2303 = vunpack.c.l.b16 %v1303
      %v2304 = vunpack.c.h.b16 %v1303
      %v2305 = vunpack.c.l.b16 %v1304
      %v2306 = vunpack.c.h.b16 %v1304
      %v2307 = vunpack.c.l.b16 %v1305
      %v2308 = vunpack.c.h.b16 %v1305
      %v2309 = vunpack.c.l.b16 %v1306
      %v2310 = vunpack.c.h.b16 %v1306
      %v2311 = vunpack.c.l.b16 %v1307
      %v2312 = vunpack.c.h.b16 %v1307
      %v2313 = vunpack.c.l.b16 %v1308
      %v2314 = vunpack.c.h.b16 %v1308
      %v2315 = vunpack.c.l.b16 %v1309
      %v2316 = vunpack.c.h.b16 %v1309
      %v2317 = vunpack.c.l.b16 %v1310
      %v2318 = vunpack.c.h.b16 %v1310
      %v2319 = vunpack.c.l.b16 %v1311
      %v2320 = vunpack.c.h.b16 %v1311
      %v2321 = vunpack.c.l.b16 %v1312
      %v2322 = vunpack.c.h.b16 %v1312
      %v2323 = vunpack.c.l.b16 %v1313
      %v2324 = vunpack.c.h.b16 %v1313
      %v2325 = vunpack.c.l.b16 %v1314
      %v2326 = vunpack.c.h.b16 %v1314
      %v2327 = vunpack.c.l.b16 %v1315
      %v2328 = vunpack.c.h.b16 %v1315
      %v2329 = vunpack.c.l.b16 %v1316
      %v2330 = vunpack.c.h.b16 %v1316
      %v2331 = vunpack.c.l.b16 %v1317
      %v2332 = vunpack.c.h.b16 %v1317
      %v2333 = vunpack.c.l.b16 %v1318
      %v2334 = vunpack.c.h.b16 %v1318
      %v2335 = vunpack.c.l.b16 %v1319
      %v2336 = vunpack.c.h.b16 %v1319
      %v2337 = vunpack.c.l.b16 %v1320
      %v2338 = vunpack.c.h.b16 %v1320
      %v2339 = vunpack.c.l.b16 %v1321
      %v2340 = vunpack.c.h.b16 %v1321
      %v2341 = vunpack.c.l.b16 %v1322
      %v2342 = vunpack.c.h.b16 %v1322
      %v2343 = vunpack.c.l.b16 %v1323
      %v2344 = vunpack.c.h.b16 %v1323
      %v2345 = vunpack.c.l.b16 %v1324
      %v2346 = vunpack.c.h.b16 %v1324
      %v2347 = vunpack.c.l.b16 %v1325
      %v2348 = vunpack.c.h.b16 %v1325
      %v2349 = vunpack.c.l.b16 %v1326
      %v2350 = vunpack.c.h.b16 %v1326
      %v2351 = vunpack.c.l.b16 %v1327
      %v2352 = vunpack.c.h.b16 %v1327
      %v2353 = vunpack.c.l.b16 %v1328
      %v2354 = vunpack.c.h.b16 %v1328
      %v2355 = vunpack.c.l.b16 %v1329
      %v2356 = vunpack.c.h.b16 %v1329
      %v2357 = vunpack.c.l.b16 %v1330
      %v2358 = vunpack.c.h.b16 %v1330
      %v2359 = vunpack.c.l.b16 %v1331
      %v2360 = vunpack.c.h.b16 %v1331
      %v2361 = vunpack.c.l.b16 %v1332
      %v2362 = vunpack.c.h.b16 %v1332
      %v2363 = vunpack.c.l.b16 %v1333
      %v2364 = vunpack.c.h.b16 %v1333
      %v2365 = vunpack.c.l.b16 %v1334
      %v2366 = vunpack.c.h.b16 %v1334
      %v2367 = vunpack.c.l.b16 %v1335
      %v2368 = vunpack.c.h.b16 %v1335
      %v2369 = vunpack.c.l.b16 %v1336
      %v2370 = vunpack.c.h.b16 %v1336
      %v2371 = vunpack.c.l.b16 %v1337
      %v2372 = vunpack.c.h.b16 %v1337
      %v2373 = vunpack.c.l.b16 %v1338
      %v2374 = vunpack.c.h.b16 %v1338
      %v2375 = vunpack.c.l.b16 %v1339
      %v2376 = vunpack.c.h.b16 %v1339
      %v2377 = vunpack.c.l.b16 %v1340
      %v2378 = vunpack.c.h.b16 %v1340
      %v2379 = vunpack.c.l.b16 %v1341
      %v2380 = vunpack.c.h.b16 %v1341
      %v2381 = vunpack.c.l.b16 %v1342
      %v2382 = vunpack.c.h.b16 %v1342
      %v2383 = vunpack.c.l.b16 %v1343
      %v2384 = vunpack.c.h.b16 %v1343
      %v2385 = vunpack.c.l.b16 %v1344
      %v2386 = vunpack.c.h.b16 %v1344
      %v2387 = vunpack.c.l.b16 %v1345
      %v2388 = vunpack.c.h.b16 %v1345
      %v2389 = vunpack.c.l.b16 %v1346
      %v2390 = vunpack.c.h.b16 %v1346
      %v2391 = vunpack.c.l.b16 %v1347
      %v2392 = vunpack.c.h.b16 %v1347
      %v2393 = vunpack.c.l.b16 %v1348
      %v2394 = vunpack.c.h.b16 %v1348
      %v2395 = vunpack.c.l.b16 %v1349
      %v2396 = vunpack.c.h.b16 %v1349
      %v2397 = vunpack.c.l.b16 %v1350
      %v2398 = vunpack.c.h.b16 %v1350
      %v2399 = vunpack.c.l.b16 %v1351
      %v2400 = vunpack.c.h.b16 %v1351
      %v2401 = vunpack.c.l.b16 %v1352
      %v2402 = vunpack.c.h.b16 %v1352
      %v2403 = vunpack.c.l.b16 %v1353
      %v2404 = vunpack.c.h.b16 %v1353
      %v2405 = vunpack.c.l.b16 %v1354
      %v2406 = vunpack.c.h.b16 %v1354
      %v2407 = vunpack.c.l.b16 %v1355
      %v2408 = vunpack.c.h.b16 %v1355
      %v2409 = vunpack.c.l.b16 %v1356
      %v2410 = vunpack.c.h.b16 %v1356
      %v2411 = vunpack.c.l.b16 %v1357
      %v2412 = vunpack.c.h.b16 %v1357
      %v2413 = vunpack.c.l.b16 %v1358
      %v2414 = vunpack.c.h.b16 %v1358
      %v2415 = vunpack.c.l.b16 %v1359
      %v2416 = vunpack.c.h.b16 %v1359
      %v2417 = vunpack.c.l.b16 %v1360
      %v2418 = vunpack.c.h.b16 %v1360
      %v2419 = vunpack.c.l.b16 %v1361
      %v2420 = vunpack.c.h.b16 %v1361
      %v2421 = vunpack.c.l.b16 %v1362
      %v2422 = vunpack.c.h.b16 %v1362
      %v2423 = vunpack.c.l.b16 %v1363
      %v2424 = vunpack.c.h.b16 %v1363
      %v2425 = vunpack.c.l.b16 %v1364
      %v2426 = vunpack.c.h.b16 %v1364
      %v2427 = vunpack.c.l.b16 %v1365
      %v2428 = vunpack.c.h.b16 %v1365
      %v2429 = vunpack.c.l.b16 %v1366
      %v2430 = vunpack.c.h.b16 %v1366
      %v2431 = vunpack.c.l.b16 %v1367
      %v2432 = vunpack.c.h.b16 %v1367
      %v2433 = vunpack.c.l.b16 %v1368
      %v2434 = vunpack.c.h.b16 %v1368
      %v2435 = vunpack.c.l.b16 %v1369
      %v2436 = vunpack.c.h.b16 %v1369
      %v2437 = vunpack.c.l.b16 %v1370
      %v2438 = vunpack.c.h.b16 %v1370
      %v2439 = vunpack.c.l.b16 %v1371
      %v2440 = vunpack.c.h.b16 %v1371
      %v2441 = vunpack.c.l.b16 %v1372
      %v2442 = vunpack.c.h.b16 %v1372
      %v2443 = vunpack.c.l.b16 %v1373
      %v2444 = vunpack.c.h.b16 %v1373
      %v2445 = vunpack.c.l.b16 %v1374
      %v2446 = vunpack.c.h.b16 %v1374
      %v2447 = vunpack.c.l.b16 %v1375
      %v2448 = vunpack.c.h.b16 %v1375
      %v2449 = vunpack.c.l.b16 %v1376
      %v2450 = vunpack.c.h.b16 %v1376
      %v2451 = vunpack.c.l.b16 %v1377
      %v2452 = vunpack.c.h.b16 %v1377
      %v2453 = vunpack.c.l.b16 %v1378
      %v2454 = vunpack.c.h.b16 %v1378
      %v2455 = vunpack.c.l.b16 %v1379
      %v2456 = vunpack.c.h.b16 %v1379
      %v2457 = vunpack.c.l.b16 %v1380
      %v2458 = vunpack.c.h.b16 %v1380
      %v2459 = vunpack.c.l.b16 %v1381
      %v2460 = vunpack.c.h.b16 %v1381
      %v2461 = vunpack.c.l.b16 %v1382
      %v2462 = vunpack.c.h.b16 %v1382
      %v2463 = vunpack.c.l.b16 %v1383
      %v2464 = vunpack.c.h.b16 %v1383
      %v2465 = vunpack.c.l.b16 %v1384
      %v2466 = vunpack.c.h.b16 %v1384
      %v2467 = vunpack.c.l.b16 %v1385
      %v2468 = vunpack.c.h.b16 %v1385
      %v2469 = vunpack.c.l.b16 %v1386
      %v2470 = vunpack.c.h.b16 %v1386
      %v2471 = vunpack.c.l.b16 %v1387
      %v2472 = vunpack.c.h.b16 %v1387
      %v2473 = vunpack.c.l.b16 %v1388
      %v2474 = vunpack.c.h.b16 %v1388
      %v2475 = vunpack.c.l.b16 %v1389
      %v2476 = vunpack.c.h.b16 %v1389
      %v2477 = vunpack.c.l.b16 %v1390
      %v2478 = vunpack.c.h.b16 %v1390
      %v2479 = vunpack.c.l.b16 %v1391
      %v2480 = vunpack.c.h.b16 %v1391
      %v2481 = vunpack.c.l.b16 %v1392
      %v2482 = vunpack.c.h.b16 %v1392
      %v2483 = vunpack.c.l.b16 %v1393
      %v2484 = vunpack.c.h.b16 %v1393
      %v2485 = vunpack.c.l.b16 %v1394
      %v2486 = vunpack.c.h.b16 %v1394
      %v2487 = vunpack.c.l.b16 %v1395
      %v2488 = vunpack.c.h.b16 %v1395
      %v2489 = vunpack.c.l.b16 %v1396
      %v2490 = vunpack.c.h.b16 %v1396
      %v2491 = vunpack.c.l.b16 %v1397
      %v2492 = vunpack.c.h.b16 %v1397
      %v2493 = vunpack.c.l.b16 %v1398
      %v2494 = vunpack.c.h.b16 %v1398
      %v2495 = vunpack.c.l.b16 %v1399
      %v2496 = vunpack.c.h.b16 %v1399
      %v2497 = vunpack.c.l.b16 %v1400
      %v2498 = vunpack.c.h.b16 %v1400
      %v2499 = vunpack.c.l.b16 %v1401
      %v2500 = vunpack.c.h.b16 %v1401
      %v2501 = vunpack.c.l.b16 %v1402
      %v2502 = vunpack.c.h.b16 %v1402
      %v2503 = vunpack.c.l.b16 %v1403
      %v2504 = vunpack.c.h.b16 %v1403
      %v2505 = vunpack.c.l.b16 %v1404
      %v2506 = vunpack.c.h.b16 %v1404
      %v2507 = vunpack.c.l.b16 %v1405
      %v2508 = vunpack.c.h.b16 %v1405
      %v2509 = vunpack.c.l.b16 %v1406
      %v2510 = vunpack.c.h.b16 %v1406
      %v2511 = vunpack.c.l.b16 %v1407
      %v2512 = vunpack.c.h.b16 %v1407
      %v2513 = vunpack.c.l.b16 %v1408
      %v2514 = vunpack.c.h.b16 %v1408
      %v2515 = vunpack.c.l.b16 %v1409
      %v2516 = vunpack.c.h.b16 %v1409
      %v2517 = vunpack.c.l.b16 %v1410
      %v2518 = vunpack.c.h.b16 %v1410
      %v2519 = vunpack.c.l.b16 %v1411
      %v2520 = vunpack.c.h.b16 %v1411
      %v2521 = vunpack.c.l.b16 %v1412
      %v2522 = vunpack.c.h.b16 %v1412
      %v2523 = vunpack.c.l.b16 %v1413
      %v2524 = vunpack.c.h.b16 %v1413
      %v2525 = vunpack.c.l.b16 %v1414
      %v2526 = vunpack.c.h.b16 %v1414
      %v2527 = vunpack.c.l.b16 %v1415
      %v2528 = vunpack.c.h.b16 %v1415
      %v2529 = vunpack.c.l.b16 %v1416
      %v2530 = vunpack.c.h.b16 %v1416
      %v2531 = vunpack.c.l.b16 %v1417
      %v2532 = vunpack.c.h.b16 %v1417
      %v2533 = vunpack.c.l.b16 %v1418
      %v2534 = vunpack.c.h.b16 %v1418
      %v2535 = vunpack.c.l.b16 %v1419
      %v2536 = vunpack.c.h.b16 %v1419
      %v2537 = vunpack.c.l.b16 %v1420
      %v2538 = vunpack.c.h.b16 %v1420
      %v2539 = vunpack.c.l.b16 %v1421
      %v2540 = vunpack.c.h.b16 %v1421
      %v2541 = vunpack.c.l.b16 %v1422
      %v2542 = vunpack.c.h.b16 %v1422
      %v2543 = vunpack.c.l.b16 %v1423
      %v2544 = vunpack.c.h.b16 %v1423
      %v2545 = vunpack.c.l.b16 %v1424
      %v2546 = vunpack.c.h.b16 %v1424
      %v2547 = vunpack.c.l.b16 %v1425
      %v2548 = vunpack.c.h.b16 %v1425
      %v2549 = vunpack.c.l.b16 %v1426
      %v2550 = vunpack.c.h.b16 %v1426
      %v2551 = vunpack.c.l.b16 %v1427
      %v2552 = vunpack.c.h.b16 %v1427
      %v2553 = vunpack.c.l.b16 %v1428
      %v2554 = vunpack.c.h.b16 %v1428
      %v2555 = vunpack.c.l.b16 %v1429
      %v2556 = vunpack.c.h.b16 %v1429
      %v2557 = vunpack.c.l.b16 %v1430
      %v2558 = vunpack.c.h.b16 %v1430
      %v2559 = vunpack.c.l.b16 %v1431
      %v2560 = vunpack.c.h.b16 %v1431
      %v2561 = vunpack.c.l.b16 %v1432
      %v2562 = vunpack.c.h.b16 %v1432
      %v2563 = vunpack.c.l.b16 %v1433
      %v2564 = vunpack.c.h.b16 %v1433
      %v2565 = vunpack.c.l.b16 %v1434
      %v2566 = vunpack.c.h.b16 %v1434
      %v2567 = vunpack.c.l.b16 %v1435
      %v2568 = vunpack.c.h.b16 %v1435
      %v2569 = vunpack.c.l.b16 %v1436
      %v2570 = vunpack.c.h.b16 %v1436
      %v2571 = vunpack.c.l.b16 %v1437
      %v2572 = vunpack.c.h.b16 %v1437
      %v2573 = vunpack.c.l.b16 %v1438
      %v2574 = vunpack.c.h.b16 %v1438
      %v2575 = vunpack.c.l.b16 %v1439
      %v2576 = vunpack.c.h.b16 %v1439
      %v2577 = vunpack.c.l.b16 %v1440
      %v2578 = vunpack.c.h.b16 %v1440
      %v2579 = vunpack.c.l.b16 %v1441
      %v2580 = vunpack.c.h.b16 %v1441
      %v2581 = vunpack.c.l.b16 %v1442
      %v2582 = vunpack.c.h.b16 %v1442
      %v2583 = vunpack.c.l.b16 %v1443
      %v2584 = vunpack.c.h.b16 %v1443
      %v2585 = vunpack.c.l.b16 %v1444
      %v2586 = vunpack.c.h.b16 %v1444
      %v2587 = vunpack.c.l.b16 %v1445
      %v2588 = vunpack.c.h.b16 %v1445
      %v2589 = vunpack.c.l.b16 %v1446
      %v2590 = vunpack.c.h.b16 %v1446
      %v2591 = vunpack.c.l.b16 %v1447
      %v2592 = vunpack.c.h.b16 %v1447
      %v2593 = vunpack.c.l.b16 %v1448
      %v2594 = vunpack.c.h.b16 %v1448
      %v2595 = vunpack.c.l.b16 %v1449
      %v2596 = vunpack.c.h.b16 %v1449
      %v2597 = vunpack.c.l.b16 %v1450
      %v2598 = vunpack.c.h.b16 %v1450
      %v2599 = vunpack.c.l.b16 %v1451
      %v2600 = vunpack.c.h.b16 %v1451
      %v2601 = vunpack.c.l.b16 %v1452
      %v2602 = vunpack.c.h.b16 %v1452
      %v2603 = vunpack.c.l.b16 %v1453
      %v2604 = vunpack.c.h.b16 %v1453
      %v2605 = vunpack.c.l.b16 %v1454
      %v2606 = vunpack.c.h.b16 %v1454
      %v2607 = vunpack.c.l.b16 %v1455
      %v2608 = vunpack.c.h.b16 %v1455
      %v2609 = vunpack.c.l.b16 %v1456
      %v2610 = vunpack.c.h.b16 %v1456
      %v2611 = vunpack.c.l.b16 %v1457
      %v2612 = vunpack.c.h.b16 %v1457
      %v2613 = vunpack.c.l.b16 %v1458
      %v2614 = vunpack.c.h.b16 %v1458
      %v2615 = vunpack.c.l.b16 %v1459
      %v2616 = vunpack.c.h.b16 %v1459
      %v2617 = vunpack.c.l.b16 %v1460
      %v2618 = vunpack.c.h.b16 %v1460
      %v2619 = vunpack.c.l.b16 %v1461
      %v2620 = vunpack.c.h.b16 %v1461
      %v2621 = vunpack.c.l.b16 %v1462
      %v2622 = vunpack.c.h.b16 %v1462
      %v2623 = vunpack.c.l.b16 %v1463
      %v2624 = vunpack.c.h.b16 %v1463
      %v2625 = vunpack.c.l.b16 %v1464
      %v2626 = vunpack.c.h.b16 %v1464
      %v2627 = vunpack.c.l.b16 %v1465
      %v2628 = vunpack.c.h.b16 %v1465
      %v2629 = vunpack.c.l.b16 %v1466
      %v2630 = vunpack.c.h.b16 %v1466
      %v2631 = vunpack.c.l.b16 %v1467
      %v2632 = vunpack.c.h.b16 %v1467
      %v2633 = vunpack.c.l.b16 %v1468
      %v2634 = vunpack.c.h.b16 %v1468
      %v2635 = vunpack.c.l.b16 %v1469
      %v2636 = vunpack.c.h.b16 %v1469
      %v2637 = vunpack.c.l.b16 %v1470
      %v2638 = vunpack.c.h.b16 %v1470
      %v2639 = vunpack.c.l.b16 %v1471
      %v2640 = vunpack.c.h.b16 %v1471
      %v2641 = vunpack.c.l.b16 %v1472
      %v2642 = vunpack.c.h.b16 %v1472
      %v2643 = vunpack.c.l.b16 %v1473
      %v2644 = vunpack.c.h.b16 %v1473
      %v2645 = vunpack.c.l.b16 %v1474
      %v2646 = vunpack.c.h.b16 %v1474
      %v2647 = vunpack.c.l.b16 %v1475
      %v2648 = vunpack.c.h.b16 %v1475
      %v2649 = vunpack.c.l.b16 %v1476
      %v2650 = vunpack.c.h.b16 %v1476
      %v2651 = vunpack.c.l.b16 %v1477
      %v2652 = vunpack.c.h.b16 %v1477
      %v2653 = vunpack.c.l.b16 %v1478
      %v2654 = vunpack.c.h.b16 %v1478
      %v2655 = vunpack.c.l.b16 %v1479
      %v2656 = vunpack.c.h.b16 %v1479
      %v2657 = vunpack.c.l.b16 %v1480
      %v2658 = vunpack.c.h.b16 %v1480
      %v2659 = vunpack.c.l.b16 %v1481
      %v2660 = vunpack.c.h.b16 %v1481
      %v2661 = vunpack.c.l.b16 %v1482
      %v2662 = vunpack.c.h.b16 %v1482
      %v2663 = vunpack.c.l.b16 %v1483
      %v2664 = vunpack.c.h.b16 %v1483
      %v2665 = vunpack.c.l.b16 %v1484
      %v2666 = vunpack.c.h.b16 %v1484
      %v2667 = vunpack.c.l.b16 %v1485
      %v2668 = vunpack.c.h.b16 %v1485
      %v2669 = vunpack.c.l.b16 %v1486
      %v2670 = vunpack.c.h.b16 %v1486
      %v2671 = vpack.c.b16 %v1909, %v1903
      %v2672 = vpack.c.b16 %v1910, %v1904
      %v2673 = vpack.c.b16 %v1911, %v1905
      %v2674 = vpack.c.b16 %v1912, %v1906
      %v2675 = vpack.c.b16 %v1913, %v1907
      %v2676 = vpack.c.b16 %v1914, %v1908
      %v2677 = vpack.c.b16 %v1921, %v1915
      %v2678 = vpack.c.b16 %v1922, %v1916
      %v2679 = vpack.c.b16 %v1923, %v1917
      %v2680 = vpack.c.b16 %v1924, %v1918
      %v2681 = vpack.c.b16 %v1925, %v1919
      %v2682 = vpack.c.b16 %v1926, %v1920
      %v2683 = vpack.c.b16 %v1933, %v1927
      %v2684 = vpack.c.b16 %v1934, %v1928
      %v2685 = vpack.c.b16 %v1935, %v1929
      %v2686 = vpack.c.b16 %v1936, %v1930
      %v2687 = vpack.c.b16 %v1937, %v1931
      %v2688 = vpack.c.b16 %v1938, %v1932
      %v2689 = vpack.c.b16 %v1945, %v1939
      %v2690 = vpack.c.b16 %v1946, %v1940
      %v2691 = vpack.c.b16 %v1947, %v1941
      %v2692 = vpack.c.b16 %v1948, %v1942
      %v2693 = vpack.c.b16 %v1949, %v1943
      %v2694 = vpack.c.b16 %v1950, %v1944
      %v2695 = vpack.c.b16 %v1957, %v1951
      %v2696 = vpack.c.b16 %v1958, %v1952
      %v2697 = vpack.c.b16 %v1959, %v1953
      %v2698 = vpack.c.b16 %v1960, %v1954
      %v2699 = vpack.c.b16 %v1961, %v1955
      %v2700 = vpack.c.b16 %v1962, %v1956
      %v2701 = vpack.c.b16 %v1969, %v1963
      %v2702 = vpack.c.b16 %v1970, %v1964
      %v2703 = vpack.c.b16 %v1971, %v1965
      %v2704 = vpack.c.b16 %v1972, %v1966
      %v2705 = vpack.c.b16 %v1973, %v1967
      %v2706 = vpack.c.b16 %v1974, %v1968
      %v2707 = vpack.c.b16 %v1981, %v1975
      %v2708 = vpack.c.b16 %v1982, %v1976
      %v2709 = vpack.c.b16 %v1983, %v1977
      %v2710 = vpack.c.b16 %v1984, %v1978
      %v2711 = vpack.c.b16 %v1985, %v1979
      %v2712 = vpack.c.b16 %v1986, %v1980
      %v2713 = vpack.c.b16 %v1993, %v1987
      %v2714 = vpack.c.b16 %v1994, %v1988
      %v2715 = vpack.c.b16 %v1995, %v1989
      %v2716 = vpack.c.b16 %v1996, %v1990
      %v2717 = vpack.c.b16 %v1997, %v1991
      %v2718 = vpack.c.b16 %v1998, %v1992
      %v2719 = vpack.c.b16 %v2005, %v1999
      %v2720 = vpack.c.b16 %v2006, %v2000
      %v2721 = vpack.c.b16 %v2007, %v2001
      %v2722 = vpack.c.b16 %v2008, %v2002
      %v2723 = vpack.c.b16 %v2009, %v2003
      %v2724 = vpack.c.b16 %v2010, %v2004
      %v2725 = vpack.c.b16 %v2017, %v2011
      %v2726 = vpack.c.b16 %v2018, %v2012
      %v2727 = vpack.c.b16 %v2019, %v2013
      %v2728 = vpack.c.b16 %v2020, %v2014
      %v2729 = vpack.c.b16 %v2021, %v2015
      %v2730 = vpack.c.b16 %v2022, %v2016
      %v2731 = vpack.c.b16 %v2029, %v2023
      %v2732 = vpack.c.b16 %v2030, %v2024
      %v2733 = vpack.c.b16 %v2031, %v2025
      %v2734 = vpack.c.b16 %v2032, %v2026
      %v2735 = vpack.c.b16 %v2033, %v2027
      %v2736 = vpack.c.b16 %v2034, %v2028
      %v2737 = vpack.c.b16 %v2041, %v2035
      %v2738 = vpack.c.b16 %v2042, %v2036
      %v2739 = vpack.c.b16 %v2043, %v2037
      %v2740 = vpack.c.b16 %v2044, %v2038
      %v2741 = vpack.c.b16 %v2045, %v2039
      %v2742 = vpack.c.b16 %v2046, %v2040
      %v2743 = vpack.c.b16 %v2053, %v2047
      %v2744 = vpack.c.b16 %v2054, %v2048
      %v2745 = vpack.c.b16 %v2055, %v2049
      %v2746 = vpack.c.b16 %v2056, %v2050
      %v2747 = vpack.c.b16 %v2057, %v2051
      %v2748 = vpack.c.b16 %v2058, %v2052
      %v2749 = vpack.c.b16 %v2065, %v2059
      %v2750 = vpack.c.b16 %v2066, %v2060
      %v2751 = vpack.c.b16 %v2067, %v2061
      %v2752 = vpack.c.b16 %v2068, %v2062
      %v2753 = vpack.c.b16 %v2069, %v2063
      %v2754 = vpack.c.b16 %v2070, %v2064
      %v2755 = vpack.c.b16 %v2077, %v2071
      %v2756 = vpack.c.b16 %v2078, %v2072
      %v2757 = vpack.c.b16 %v2079, %v2073
      %v2758 = vpack.c.b16 %v2080, %v2074
      %v2759 = vpack.c.b16 %v2081, %v2075
      %v2760 = vpack.c.b16 %v2082, %v2076
      %v2761 = vpack.c.b16 %v2089, %v2083
      %v2762 = vpack.c.b16 %v2090, %v2084
      %v2763 = vpack.c.b16 %v2091, %v2085
      %v2764 = vpack.c.b16 %v2092, %v2086
      %v2765 = vpack.c.b16 %v2093, %v2087
      %v2766 = vpack.c.b16 %v2094, %v2088
      %v2767 = vpack.c.b16 %v2101, %v2095
      %v2768 = vpack.c.b16 %v2102, %v2096
      %v2769 = vpack.c.b16 %v2103, %v2097
      %v2770 = vpack.c.b16 %v2104, %v2098
      %v2771 = vpack.c.b16 %v2105, %v2099
      %v2772 = vpack.c.b16 %v2106, %v2100
      %v2773 = vpack.c.b16 %v2113, %v2107
      %v2774 = vpack.c.b16 %v2114, %v2108
      %v2775 = vpack.c.b16 %v2115, %v2109
      %v2776 = vpack.c.b16 %v2116, %v2110
      %v2777 = vpack.c.b16 %v2117, %v2111
      %v2778 = vpack.c.b16 %v2118, %v2112
      %v2779 = vpack.c.b16 %v2125, %v2119
      %v2780 = vpack.c.b16 %v2126, %v2120
      %v2781 = vpack.c.b16 %v2127, %v2121
      %v2782 = vpack.c.b16 %v2128, %v2122
      %v2783 = vpack.c.b16 %v2129, %v2123
      %v2784 = vpack.c.b16 %v2130, %v2124
      %v2785 = vpack.c.b16 %v2137, %v2131
      %v2786 = vpack.c.b16 %v2138, %v2132
      %v2787 = vpack.c.b16 %v2139, %v2133
      %v2788 = vpack.c.b16 %v2140, %v2134
      %v2789 = vpack.c.b16 %v2141, %v2135
      %v2790 = vpack.c.b16 %v2142, %v2136
      %v2791 = vpack.c.b16 %v2149, %v2143
      %v2792 = vpack.c.b16 %v2150, %v2144
      %v2793 = vpack.c.b16 %v2151, %v2145
      %v2794 = vpack.c.b16 %v2152, %v2146
      %v2795 = vpack.c.b16 %v2153, %v2147
      %v2796 = vpack.c.b16 %v2154, %v2148
      %v2797 = vpack.c.b16 %v2161, %v2155
      %v2798 = vpack.c.b16 %v2162, %v2156
      %v2799 = vpack.c.b16 %v2163, %v2157
      %v2800 = vpack.c.b16 %v2164, %v2158
      %v2801 = vpack.c.b16 %v2165, %v2159
      %v2802 = vpack.c.b16 %v2166, %v2160
      %v2803 = vpack.c.b16 %v2173, %v2167
      %v2804 = vpack.c.b16 %v2174, %v2168
      %v2805 = vpack.c.b16 %v2175, %v2169
      %v2806 = vpack.c.b16 %v2176, %v2170
      %v2807 = vpack.c.b16 %v2177, %v2171
      %v2808 = vpack.c.b16 %v2178, %v2172
      %v2809 = vpack.c.b16 %v2185, %v2179
      %v2810 = vpack.c.b16 %v2186, %v2180
      %v2811 = vpack.c.b16 %v2187, %v2181
      %v2812 = vpack.c.b16 %v2188, %v2182
      %v2813 = vpack.c.b16 %v2189, %v2183
      %v2814 = vpack.c.b16 %v2190, %v2184
      %v2815 = vpack.c.b16 %v2197, %v2191
      %v2816 = vpack.c.b16 %v2198, %v2192
      %v2817 = vpack.c.b16 %v2199, %v2193
      %v2818 = vpack.c.b16 %v2200, %v2194
      %v2819 = vpack.c.b16 %v2201, %v2195
      %v2820 = vpack.c.b16 %v2202, %v2196
      %v2821 = vpack.c.b16 %v2209, %v2203
      %v2822 = vpack.c.b16 %v2210, %v2204
      %v2823 = vpack.c.b16 %v2211, %v2205
      %v2824 = vpack.c.b16 %v2212, %v2206
      %v2825 = vpack.c.b16 %v2213, %v2207
      %v2826 = vpack.c.b16 %v2214, %v2208
      %v2827 = vpack.c.b16 %v2221, %v2215
      %v2828 = vpack.c.b16 %v2222, %v2216
      %v2829 = vpack.c.b16 %v2223, %v2217
      %v2830 = vpack.c.b16 %v2224, %v2218
      %v2831 = vpack.c.b16 %v2225, %v2219
      %v2832 = vpack.c.b16 %v2226, %v2220
      %v2833 = vpack.c.b16 %v2233, %v2227
      %v2834 = vpack.c.b16 %v2234, %v2228
      %v2835 = vpack.c.b16 %v2235, %v2229
      %v2836 = vpack.c.b16 %v2236, %v2230
      %v2837 = vpack.c.b16 %v2237, %v2231
      %v2838 = vpack.c.b16 %v2238, %v2232
      %v2839 = vpack.c.b16 %v2245, %v2239
      %v2840 = vpack.c.b16 %v2246, %v2240
      %v2841 = vpack.c.b16 %v2247, %v2241
      %v2842 = vpack.c.b16 %v2248, %v2242
      %v2843 = vpack.c.b16 %v2249, %v2243
      %v2844 = vpack.c.b16 %v2250, %v2244
      %v2845 = vpack.c.b16 %v2257, %v2251
      %v2846 = vpack.c.b16 %v2258, %v2252
      %v2847 = vpack.c.b16 %v2259, %v2253
      %v2848 = vpack.c.b16 %v2260, %v2254
      %v2849 = vpack.c.b16 %v2261, %v2255
      %v2850 = vpack.c.b16 %v2262, %v2256
      %v2851 = vpack.c.b16 %v2269, %v2263
      %v2852 = vpack.c.b16 %v2270, %v2264
      %v2853 = vpack.c.b16 %v2271, %v2265
      %v2854 = vpack.c.b16 %v2272, %v2266
      %v2855 = vpack.c.b16 %v2273, %v2267
      %v2856 = vpack.c.b16 %v2274, %v2268
      %v2857 = vpack.c.b16 %v2281, %v2275
      %v2858 = vpack.c.b16 %v2282, %v2276
      %v2859 = vpack.c.b16 %v2283, %v2277
      %v2860 = vpack.c.b16 %v2284, %v2278
      %v2861 = vpack.c.b16 %v2285, %v2279
      %v2862 = vpack.c.b16 %v2286, %v2280
      %v2863 = vpack.c.b16 %v2293, %v2287
      %v2864 = vpack.c.b16 %v2294, %v2288
      %v2865 = vpack.c.b16 %v2295, %v2289
      %v2866 = vpack.c.b16 %v2296, %v2290
      %v2867 = vpack.c.b16 %v2297, %v2291
      %v2868 = vpack.c.b16 %v2298, %v2292
      %v2869 = vpack.c.b16 %v2305, %v2299
      %v2870 = vpack.c.b16 %v2306, %v2300
      %v2871 = vpack.c.b16 %v2307, %v2301
      %v2872 = vpack.c.b16 %v2308, %v2302
      %v2873 = vpack.c.b16 %v2309, %v2303
      %v2874 = vpack.c.b16 %v2310, %v2304
      %v2875 = vpack.c.b16 %v2317, %v2311
      %v2876 = vpack.c.b16 %v2318, %v2312
      %v2877 = vpack.c.b16 %v2319, %v2313
      %v2878 = vpack.c.b16 %v2320, %v2314
      %v2879 = vpack.c.b16 %v2321, %v2315
      %v2880 = vpack.c.b16 %v2322, %v2316
      %v2881 = vpack.c.b16 %v2329, %v2323
      %v2882 = vpack.c.b16 %v2330, %v2324
      %v2883 = vpack.c.b16 %v2331, %v2325
      %v2884 = vpack.c.b16 %v2332, %v2326
      %v2885 = vpack.c.b16 %v2333, %v2327
      %v2886 = vpack.c.b16 %v2334, %v2328
      %v2887 = vpack.c.b16 %v2341, %v2335
      %v2888 = vpack.c.b16 %v2342, %v2336
      %v2889 = vpack.c.b16 %v2343, %v2337
      %v2890 = vpack.c.b16 %v2344, %v2338
      %v2891 = vpack.c.b16 %v2345, %v2339
      %v2892 = vpack.c.b16 %v2346, %v2340
      %v2893 = vpack.c.b16 %v2353, %v2347
      %v2894 = vpack.c.b16 %v2354, %v2348
      %v2895 = vpack.c.b16 %v2355, %v2349
      %v2896 = vpack.c.b16 %v2356, %v2350
      %v2897 = vpack.c.b16 %v2357, %v2351
      %v2898 = vpack.c.b16 %v2358, %v2352
      %v2899 = vpack.c.b16 %v2365, %v2359
      %v2900 = vpack.c.b16 %v2366, %v2360
      %v2901 = vpack.c.b16 %v2367, %v2361
      %v2902 = vpack.c.b16 %v2368, %v2362
      %v2903 = vpack.c.b16 %v2369, %v2363
      %v2904 = vpack.c.b16 %v2370, %v2364
      %v2905 = vpack.c.b16 %v2377, %v2371
      %v2906 = vpack.c.b16 %v2378, %v2372
      %v2907 = vpack.c.b16 %v2379, %v2373
      %v2908 = vpack.c.b16 %v2380, %v2374
      %v2909 = vpack.c.b16 %v2381, %v2375
      %v2910 = vpack.c.b16 %v2382, %v2376
      %v2911 = vpack.c.b16 %v2389, %v2383
      %v2912 = vpack.c.b16 %v2390, %v2384
      %v2913 = vpack.c.b16 %v2391, %v2385
      %v2914 = vpack.c.b16 %v2392, %v2386
      %v2915 = vpack.c.b16 %v2393, %v2387
      %v2916 = vpack.c.b16 %v2394, %v2388
      %v2917 = vpack.c.b16 %v2401, %v2395
      %v2918 = vpack.c.b16 %v2402, %v2396
      %v2919 = vpack.c.b16 %v2403, %v2397
      %v2920 = vpack.c.b16 %v2404, %v2398
      %v2921 = vpack.c.b16 %v2405, %v2399
      %v2922 = vpack.c.b16 %v2406, %v2400
      %v2923 = vpack.c.b16 %v2413, %v2407
      %v2924 = vpack.c.b16 %v2414, %v2408
      %v2925 = vpack.c.b16 %v2415, %v2409
      %v2926 = vpack.c.b16 %v2416, %v2410
      %v2927 = vpack.c.b16 %v2417, %v2411
      %v2928 = vpack.c.b16 %v2418, %v2412
      %v2929 = vpack.c.b16 %v2425, %v2419
      %v2930 = vpack.c.b16 %v2426, %v2420
      %v2931 = vpack.c.b16 %v2427, %v2421
      %v2932 = vpack.c.b16 %v2428, %v2422
      %v2933 = vpack.c.b16 %v2429, %v2423
      %v2934 = vpack.c.b16 %v2430, %v2424
      %v2935 = vpack.c.b16 %v2437, %v2431
      %v2936 = vpack.c.b16 %v2438, %v2432
      %v2937 = vpack.c.b16 %v2439, %v2433
      %v2938 = vpack.c.b16 %v2440, %v2434
      %v2939 = vpack.c.b16 %v2441, %v2435
      %v2940 = vpack.c.b16 %v2442, %v2436
      %v2941 = vpack.c.b16 %v2449, %v2443
      %v2942 = vpack.c.b16 %v2450, %v2444
      %v2943 = vpack.c.b16 %v2451, %v2445
      %v2944 = vpack.c.b16 %v2452, %v2446
      %v2945 = vpack.c.b16 %v2453, %v2447
      %v2946 = vpack.c.b16 %v2454, %v2448
      %v2947 = vpack.c.b16 %v2461, %v2455
      %v2948 = vpack.c.b16 %v2462, %v2456
      %v2949 = vpack.c.b16 %v2463, %v2457
      %v2950 = vpack.c.b16 %v2464, %v2458
      %v2951 = vpack.c.b16 %v2465, %v2459
      %v2952 = vpack.c.b16 %v2466, %v2460
      %v2953 = vpack.c.b16 %v2473, %v2467
      %v2954 = vpack.c.b16 %v2474, %v2468
      %v2955 = vpack.c.b16 %v2475, %v2469
      %v2956 = vpack.c.b16 %v2476, %v2470
      %v2957 = vpack.c.b16 %v2477, %v2471
      %v2958 = vpack.c.b16 %v2478, %v2472
      %v2959 = vpack.c.b16 %v2485, %v2479
      %v2960 = vpack.c.b16 %v2486, %v2480
      %v2961 = vpack.c.b16 %v2487, %v2481
      %v2962 = vpack.c.b16 %v2488, %v2482
      %v2963 = vpack.c.b16 %v2489, %v2483
      %v2964 = vpack.c.b16 %v2490, %v2484
      %v2965 = vpack.c.b16 %v2497, %v2491
      %v2966 = vpack.c.b16 %v2498, %v2492
      %v2967 = vpack.c.b16 %v2499, %v2493
      %v2968 = vpack.c.b16 %v2500, %v2494
      %v2969 = vpack.c.b16 %v2501, %v2495
      %v2970 = vpack.c.b16 %v2502, %v2496
      %v2971 = vpack.c.b16 %v2509, %v2503
      %v2972 = vpack.c.b16 %v2510, %v2504
      %v2973 = vpack.c.b16 %v2511, %v2505
      %v2974 = vpack.c.b16 %v2512, %v2506
      %v2975 = vpack.c.b16 %v2513, %v2507
      %v2976 = vpack.c.b16 %v2514, %v2508
      %v2977 = vpack.c.b16 %v2521, %v2515
      %v2978 = vpack.c.b16 %v2522, %v2516
      %v2979 = vpack.c.b16 %v2523, %v2517
      %v2980 = vpack.c.b16 %v2524, %v2518
      %v2981 = vpack.c.b16 %v2525, %v2519
      %v2982 = vpack.c.b16 %v2526, %v2520
      %v2983 = vpack.c.b16 %v2533, %v2527
      %v2984 = vpack.c.b16 %v2534, %v2528
      %v2985 = vpack.c.b16 %v2535, %v2529
      %v2986 = vpack.c.b16 %v2536, %v2530
      %v2987 = vpack.c.b16 %v2537, %v2531
      %v2988 = vpack.c.b16 %v2538, %v2532
      %v2989 = vpack.c.b16 %v2545, %v2539
      %v2990 = vpack.c.b16 %v2546, %v2540
      %v2991 = vpack.c.b16 %v2547, %v2541
      %v2992 = vpack.c.b16 %v2548, %v2542
      %v2993 = vpack.c.b16 %v2549, %v2543
      %v2994 = vpack.c.b16 %v2550, %v2544
      %v2995 = vpack.c.b16 %v2557, %v2551
      %v2996 = vpack.c.b16 %v2558, %v2552
      %v2997 = vpack.c.b16 %v2559, %v2553
      %v2998 = vpack.c.b16 %v2560, %v2554
      %v2999 = vpack.c.b16 %v2561, %v2555
      %v3000 = vpack.c.b16 %v2562, %v2556
      %v3001 = vpack.c.b16 %v2569, %v2563
      %v3002 = vpack.c.b16 %v2570, %v2564
      %v3003 = vpack.c.b16 %v2571, %v2565
      %v3004 = vpack.c.b16 %v2572, %v2566
      %v3005 = vpack.c.b16 %v2573, %v2567
      %v3006 = vpack.c.b16 %v2574, %v2568
      %v3007 = vpack.c.b16 %v2581, %v2575
      %v3008 = vpack.c.b16 %v2582, %v2576
      %v3009 = vpack.c.b16 %v2583, %v2577
      %v3010 = vpack.c.b16 %v2584, %v2578
      %v3011 = vpack.c.b16 %v2585, %v2579
      %v3012 = vpack.c.b16 %v2586, %v2580
      %v3013 = vpack.c.b16 %v2593, %v2587
      %v3014 = vpack.c.b16 %v2594, %v2588
      %v3015 = vpack.c.b16 %v2595, %v2589
      %v3016 = vpack.c.b16 %v2596, %v2590
      %v3017 = vpack.c.b16 %v2597, %v2591
      %v3018 = vpack.c.b16 %v2598, %v2592
      %v3019 = vpack.c.b16 %v2605, %v2599
      %v3020 = vpack.c.b16 %v2606, %v2600
      %v3021 = vpack.c.b16 %v2607, %v2601
      %v3022 = vpack.c.b16 %v2608, %v2602
      %v3023 = vpack.c.b16 %v2609, %v2603
      %v3024 = vpack.c.b16 %v2610, %v2604
      %v3025 = vpack.c.b16 %v2617, %v2611
      %v3026 = vpack.c.b16 %v2618, %v2612
      %v3027 = vpack.c.b16 %v2619, %v2613
      %v3028 = vpack.c.b16 %v2620, %v2614
      %v3029 = vpack.c.b16 %v2621, %v2615
      %v3030 = vpack.c.b16 %v2622, %v2616
      %v3031 = vpack.c.b16 %v2629, %v2623
      %v3032 = vpack.c.b16 %v2630, %v2624
      %v3033 = vpack.c.b16 %v2631, %v2625
      %v3034 = vpack.c.b16 %v2632, %v2626
      %v3035 = vpack.c.b16 %v2633, %v2627
      %v3036 = vpack.c.b16 %v2634, %v2628
      %v3037 = vpack.c.b16 %v2641, %v2635
      %v3038 = vpack.c.b16 %v2642, %v2636
      %v3039 = vpack.c.b16 %v2643, %v2637
      %v3040 = vpack.c.b16 %v2644, %v2638
      %v3041 = vpack.c.b16 %v2645, %v2639
      %v3042 = vpack.c.b16 %v2646, %v2640
      %v3043 = vpack.c.b16 %v2653, %v2647
      %v3044 = vpack.c.b16 %v2654, %v2648
      %v3045 = vpack.c.b16 %v2655, %v2649
      %v3046 = vpack.c.b16 %v2656, %v2650
      %v3047 = vpack.c.b16 %v2657, %v2651
      %v3048 = vpack.c.b16 %v2658, %v2652
      %v3049 = vpack.c.b16 %v2665, %v2659
      %v3050 = vpack.c.b16 %v2666, %v2660
      %v3051 = vpack.c.b16 %v2667, %v2661
      %v3052 = vpack.c.b16 %v2668, %v2662
      %v3053 = vpack.c.b16 %v2669, %v2663
      %v3054 = vpack.c.b16 %v2670, %v2664
      %3439 = vmatprep.subr.bf16.mxu0 %v2714
      %3440 = vmatpush1.bf16.msra.mxu0 %v2713
      %3441 = vmatprep.subr.bf16.mxu0 %v2708
      %3442 = vmatpush1.bf16.msra.mxu0 %v2707
      %3443 = vmatprep.subr.bf16.mxu0 %v2702
      %3444 = vmatpush1.bf16.msra.mxu0 %v2701
      %3445 = vmatprep.subr.bf16.mxu0 %v2696
      %3446 = vmatpush1.bf16.msra.mxu0 %v2695
      %3447 = vmatprep.subr.bf16.mxu0 %v2690
      %3448 = vmatpush1.bf16.msra.mxu0 %v2689
      %3449 = vmatprep.subr.bf16.mxu0 %v2684
      %3450 = vmatpush1.bf16.msra.mxu0 %v2683
      %3451 = vmatprep.subr.bf16.mxu0 %v2678
      %3452 = vmatpush1.bf16.msra.mxu0 %v2677
      %3453 = vmatprep.subr.bf16.mxu0 %v2672
      %3454 = vmatpush1.bf16.msra.mxu0 %v2671
      %3455 = vmatprep.subr.bf16.mxu0 %v2762
      %3456 = vmatpush2.bf16.msra.mxu0 %v2761
      %3457 = vmatprep.subr.bf16.mxu0 %v2756
      %3458 = vmatpush2.bf16.msra.mxu0 %v2755
      %3459 = vmatprep.subr.bf16.mxu0 %v2750
      %3460 = vmatpush2.bf16.msra.mxu0 %v2749
      %3461 = vmatprep.subr.bf16.mxu0 %v2744
      %3462 = vmatpush2.bf16.msra.mxu0 %v2743
      %3463 = vmatprep.subr.bf16.mxu0 %v2738
      %3464 = vmatpush2.bf16.msra.mxu0 %v2737
      %3465 = vmatprep.subr.bf16.mxu0 %v2732
      %3466 = vmatpush2.bf16.msra.mxu0 %v2731
      %3467 = vmatprep.subr.bf16.mxu0 %v2726
      %3468 = vmatpush2.bf16.msra.mxu0 %v2725
      %3469 = vmatprep.subr.bf16.mxu0 %v2720
      %3470 = vmatpush2.bf16.msra.mxu0 %v2719
      %3471 = vmatprep.mubr.bf16.mxu0 %v1096
      %3472 = vmatmul.mubr.bf16.gmra.mxu0 %v1095
      %v3473 = vpop.f32.mrf.mxu0
      %v3474 = vadd.f32 %v1492, %v3473
      %v3475 = vpop.f32.mrf.mxu0
      %v3476 = vadd.f32 %v1496, %v3475
      %v3477 = vpop.f32.mrf.mxu0
      %v3478 = vpop.f32.mrf.mxu0
      %3479 = vdwg.mxu0
      %3480 = vmatprep.subr.bf16.mxu0 %v2810
      %3481 = vmatpush1.bf16.msra.mxu0 %v2809
      %3482 = vmatprep.subr.bf16.mxu0 %v2804
      %3483 = vmatpush1.bf16.msra.mxu0 %v2803
      %3484 = vmatprep.subr.bf16.mxu0 %v2798
      %3485 = vmatpush1.bf16.msra.mxu0 %v2797
      %3486 = vmatprep.subr.bf16.mxu0 %v2792
      %3487 = vmatpush1.bf16.msra.mxu0 %v2791
      %3488 = vmatprep.subr.bf16.mxu0 %v2786
      %3489 = vmatpush1.bf16.msra.mxu0 %v2785
      %3490 = vmatprep.subr.bf16.mxu0 %v2780
      %3491 = vmatpush1.bf16.msra.mxu0 %v2779
      %3492 = vmatprep.subr.bf16.mxu0 %v2774
      %3493 = vmatpush1.bf16.msra.mxu0 %v2773
      %3494 = vmatprep.subr.bf16.mxu0 %v2768
      %3495 = vmatpush1.bf16.msra.mxu0 %v2767
      %3496 = vmatprep.subr.bf16.mxu0 %v2858
      %3497 = vmatpush2.bf16.msra.mxu0 %v2857
      %3498 = vmatprep.subr.bf16.mxu0 %v2852
      %3499 = vmatpush2.bf16.msra.mxu0 %v2851
      %3500 = vmatprep.subr.bf16.mxu0 %v2846
      %3501 = vmatpush2.bf16.msra.mxu0 %v2845
      %3502 = vmatprep.subr.bf16.mxu0 %v2840
      %3503 = vmatpush2.bf16.msra.mxu0 %v2839
      %3504 = vmatprep.subr.bf16.mxu0 %v2834
      %3505 = vmatpush2.bf16.msra.mxu0 %v2833
      %3506 = vmatprep.subr.bf16.mxu0 %v2828
      %3507 = vmatpush2.bf16.msra.mxu0 %v2827
      %3508 = vmatprep.subr.bf16.mxu0 %v2822
      %3509 = vmatpush2.bf16.msra.mxu0 %v2821
      %3510 = vmatprep.subr.bf16.mxu0 %v2816
      %3511 = vmatpush2.bf16.msra.mxu0 %v2815
      %3512 = vmatprep.mubr.bf16.mxu0 %v1098
      %3513 = vmatmul.mubr.bf16.gmra.mxu0 %v1097
      %v3514 = vpop.f32.mrf.mxu0
      %v3515 = vadd.f32 %v3474, %v3514
      %v3516 = vpop.f32.mrf.mxu0
      %v3517 = vadd.f32 %v3476, %v3516
      %v3518 = vpop.f32.mrf.mxu0
      %v3519 = vpop.f32.mrf.mxu0
      %3520 = vdwg.mxu0
      %3521 = vmatprep.subr.bf16.mxu0 %v2906
      %3522 = vmatpush1.bf16.msra.mxu0 %v2905
      %3523 = vmatprep.subr.bf16.mxu0 %v2900
      %3524 = vmatpush1.bf16.msra.mxu0 %v2899
      %3525 = vmatprep.subr.bf16.mxu0 %v2894
      %3526 = vmatpush1.bf16.msra.mxu0 %v2893
      %3527 = vmatprep.subr.bf16.mxu0 %v2888
      %3528 = vmatpush1.bf16.msra.mxu0 %v2887
      %3529 = vmatprep.subr.bf16.mxu0 %v2882
      %3530 = vmatpush1.bf16.msra.mxu0 %v2881
      %3531 = vmatprep.subr.bf16.mxu0 %v2876
      %3532 = vmatpush1.bf16.msra.mxu0 %v2875
      %3533 = vmatprep.subr.bf16.mxu0 %v2870
      %3534 = vmatpush1.bf16.msra.mxu0 %v2869
      %3535 = vmatprep.subr.bf16.mxu0 %v2864
      %3536 = vmatpush1.bf16.msra.mxu0 %v2863
      %3537 = vmatprep.subr.bf16.mxu0 %v2954
      %3538 = vmatpush2.bf16.msra.mxu0 %v2953
      %3539 = vmatprep.subr.bf16.mxu0 %v2948
      %3540 = vmatpush2.bf16.msra.mxu0 %v2947
      %3541 = vmatprep.subr.bf16.mxu0 %v2942
      %3542 = vmatpush2.bf16.msra.mxu0 %v2941
      %3543 = vmatprep.subr.bf16.mxu0 %v2936
      %3544 = vmatpush2.bf16.msra.mxu0 %v2935
      %3545 = vmatprep.subr.bf16.mxu0 %v2930
      %3546 = vmatpush2.bf16.msra.mxu0 %v2929
      %3547 = vmatprep.subr.bf16.mxu0 %v2924
      %3548 = vmatpush2.bf16.msra.mxu0 %v2923
      %3549 = vmatprep.subr.bf16.mxu0 %v2918
      %3550 = vmatpush2.bf16.msra.mxu0 %v2917
      %3551 = vmatprep.subr.bf16.mxu0 %v2912
      %3552 = vmatpush2.bf16.msra.mxu0 %v2911
      %3553 = vmatprep.mubr.bf16.mxu0 %v1100
      %3554 = vmatmul.mubr.bf16.gmra.mxu0 %v1099
      %v3555 = vpop.f32.mrf.mxu0
      %v3556 = vadd.f32 %v3515, %v3555
      %v3557 = vpop.f32.mrf.mxu0
      %v3558 = vadd.f32 %v3517, %v3557
      %v3559 = vpop.f32.mrf.mxu0
      %v3560 = vpop.f32.mrf.mxu0
      %3561 = vdwg.mxu0
      %3562 = vmatprep.subr.bf16.mxu0 %v3002
      %3563 = vmatpush1.bf16.msra.mxu0 %v3001
      %3564 = vmatprep.subr.bf16.mxu0 %v2996
      %3565 = vmatpush1.bf16.msra.mxu0 %v2995
      %3566 = vmatprep.subr.bf16.mxu0 %v2990
      %3567 = vmatpush1.bf16.msra.mxu0 %v2989
      %3568 = vmatprep.subr.bf16.mxu0 %v2984
      %3569 = vmatpush1.bf16.msra.mxu0 %v2983
      %3570 = vmatprep.subr.bf16.mxu0 %v2978
      %3571 = vmatpush1.bf16.msra.mxu0 %v2977
      %3572 = vmatprep.subr.bf16.mxu0 %v2972
      %3573 = vmatpush1.bf16.msra.mxu0 %v2971
      %3574 = vmatprep.subr.bf16.mxu0 %v2966
      %3575 = vmatpush1.bf16.msra.mxu0 %v2965
      %3576 = vmatprep.subr.bf16.mxu0 %v2960
      %3577 = vmatpush1.bf16.msra.mxu0 %v2959
      %3578 = vmatprep.subr.bf16.mxu0 %v3050
      %3579 = vmatpush2.bf16.msra.mxu0 %v3049
      %3580 = vmatprep.subr.bf16.mxu0 %v3044
      %3581 = vmatpush2.bf16.msra.mxu0 %v3043
      %3582 = vmatprep.subr.bf16.mxu0 %v3038
      %3583 = vmatpush2.bf16.msra.mxu0 %v3037
      %3584 = vmatprep.subr.bf16.mxu0 %v3032
      %3585 = vmatpush2.bf16.msra.mxu0 %v3031
      %3586 = vmatprep.subr.bf16.mxu0 %v3026
      %3587 = vmatpush2.bf16.msra.mxu0 %v3025
      %3588 = vmatprep.subr.bf16.mxu0 %v3020
      %3589 = vmatpush2.bf16.msra.mxu0 %v3019
      %3590 = vmatprep.subr.bf16.mxu0 %v3014
      %3591 = vmatpush2.bf16.msra.mxu0 %v3013
      %3592 = vmatprep.subr.bf16.mxu0 %v3008
      %3593 = vmatpush2.bf16.msra.mxu0 %v3007
      %3594 = vmatprep.mubr.bf16.mxu0 %v1102
      %3595 = vmatmul.mubr.bf16.gmra.mxu0 %v1101
      %v3596 = vpop.f32.mrf.mxu0
      %v3597 = vadd.f32 %v3556, %v3596
      %v3598 = vpop.f32.mrf.mxu0
      %v3599 = vadd.f32 %v3558, %v3598
      %v3600 = vpop.f32.mrf.mxu0
      %v3601 = vpop.f32.mrf.mxu0
      %3602 = vdwg.mxu0
      %3603 = vmatprep.subr.bf16.mxu0 %v2716
      %3604 = vmatpush1.bf16.msra.mxu0 %v2715
      %3605 = vmatprep.subr.bf16.mxu0 %v2710
      %3606 = vmatpush1.bf16.msra.mxu0 %v2709
      %3607 = vmatprep.subr.bf16.mxu0 %v2704
      %3608 = vmatpush1.bf16.msra.mxu0 %v2703
      %3609 = vmatprep.subr.bf16.mxu0 %v2698
      %3610 = vmatpush1.bf16.msra.mxu0 %v2697
      %3611 = vmatprep.subr.bf16.mxu0 %v2692
      %3612 = vmatpush1.bf16.msra.mxu0 %v2691
      %3613 = vmatprep.subr.bf16.mxu0 %v2686
      %3614 = vmatpush1.bf16.msra.mxu0 %v2685
      %3615 = vmatprep.subr.bf16.mxu0 %v2680
      %3616 = vmatpush1.bf16.msra.mxu0 %v2679
      %3617 = vmatprep.subr.bf16.mxu0 %v2674
      %3618 = vmatpush1.bf16.msra.mxu0 %v2673
      %3619 = vmatprep.subr.bf16.mxu0 %v2764
      %3620 = vmatpush2.bf16.msra.mxu0 %v2763
      %3621 = vmatprep.subr.bf16.mxu0 %v2758
      %3622 = vmatpush2.bf16.msra.mxu0 %v2757
      %3623 = vmatprep.subr.bf16.mxu0 %v2752
      %3624 = vmatpush2.bf16.msra.mxu0 %v2751
      %3625 = vmatprep.subr.bf16.mxu0 %v2746
      %3626 = vmatpush2.bf16.msra.mxu0 %v2745
      %3627 = vmatprep.subr.bf16.mxu0 %v2740
      %3628 = vmatpush2.bf16.msra.mxu0 %v2739
      %3629 = vmatprep.subr.bf16.mxu0 %v2734
      %3630 = vmatpush2.bf16.msra.mxu0 %v2733
      %3631 = vmatprep.subr.bf16.mxu0 %v2728
      %3632 = vmatpush2.bf16.msra.mxu0 %v2727
      %3633 = vmatprep.subr.bf16.mxu0 %v2722
      %3634 = vmatpush2.bf16.msra.mxu0 %v2721
      %3635 = vmatprep.mubr.bf16.mxu0 %v1096
      %3636 = vmatmul.mubr.bf16.gmra.mxu0 %v1095
      %v3637 = vpop.f32.mrf.mxu0
      %v3638 = vadd.f32 %v1500, %v3637
      %v3639 = vpop.f32.mrf.mxu0
      %v3640 = vadd.f32 %v1504, %v3639
      %v3641 = vpop.f32.mrf.mxu0
      %v3642 = vpop.f32.mrf.mxu0
      %3643 = vdwg.mxu0
      %3644 = vmatprep.subr.bf16.mxu0 %v2812
      %3645 = vmatpush1.bf16.msra.mxu0 %v2811
      %3646 = vmatprep.subr.bf16.mxu0 %v2806
      %3647 = vmatpush1.bf16.msra.mxu0 %v2805
      %3648 = vmatprep.subr.bf16.mxu0 %v2800
      %3649 = vmatpush1.bf16.msra.mxu0 %v2799
      %3650 = vmatprep.subr.bf16.mxu0 %v2794
      %3651 = vmatpush1.bf16.msra.mxu0 %v2793
      %3652 = vmatprep.subr.bf16.mxu0 %v2788
      %3653 = vmatpush1.bf16.msra.mxu0 %v2787
      %3654 = vmatprep.subr.bf16.mxu0 %v2782
      %3655 = vmatpush1.bf16.msra.mxu0 %v2781
      %3656 = vmatprep.subr.bf16.mxu0 %v2776
      %3657 = vmatpush1.bf16.msra.mxu0 %v2775
      %3658 = vmatprep.subr.bf16.mxu0 %v2770
      %3659 = vmatpush1.bf16.msra.mxu0 %v2769
      %3660 = vmatprep.subr.bf16.mxu0 %v2860
      %3661 = vmatpush2.bf16.msra.mxu0 %v2859
      %3662 = vmatprep.subr.bf16.mxu0 %v2854
      %3663 = vmatpush2.bf16.msra.mxu0 %v2853
      %3664 = vmatprep.subr.bf16.mxu0 %v2848
      %3665 = vmatpush2.bf16.msra.mxu0 %v2847
      %3666 = vmatprep.subr.bf16.mxu0 %v2842
      %3667 = vmatpush2.bf16.msra.mxu0 %v2841
      %3668 = vmatprep.subr.bf16.mxu0 %v2836
      %3669 = vmatpush2.bf16.msra.mxu0 %v2835
      %3670 = vmatprep.subr.bf16.mxu0 %v2830
      %3671 = vmatpush2.bf16.msra.mxu0 %v2829
      %3672 = vmatprep.subr.bf16.mxu0 %v2824
      %3673 = vmatpush2.bf16.msra.mxu0 %v2823
      %3674 = vmatprep.subr.bf16.mxu0 %v2818
      %3675 = vmatpush2.bf16.msra.mxu0 %v2817
      %3676 = vmatprep.mubr.bf16.mxu0 %v1098
      %3677 = vmatmul.mubr.bf16.gmra.mxu0 %v1097
      %v3678 = vpop.f32.mrf.mxu0
      %v3679 = vadd.f32 %v3638, %v3678
      %v3680 = vpop.f32.mrf.mxu0
      %v3681 = vadd.f32 %v3640, %v3680
      %v3682 = vpop.f32.mrf.mxu0
      %v3683 = vpop.f32.mrf.mxu0
      %3684 = vdwg.mxu0
      %3685 = vmatprep.subr.bf16.mxu0 %v2908
      %3686 = vmatpush1.bf16.msra.mxu0 %v2907
      %3687 = vmatprep.subr.bf16.mxu0 %v2902
      %3688 = vmatpush1.bf16.msra.mxu0 %v2901
      %3689 = vmatprep.subr.bf16.mxu0 %v2896
      %3690 = vmatpush1.bf16.msra.mxu0 %v2895
      %3691 = vmatprep.subr.bf16.mxu0 %v2890
      %3692 = vmatpush1.bf16.msra.mxu0 %v2889
      %3693 = vmatprep.subr.bf16.mxu0 %v2884
      %3694 = vmatpush1.bf16.msra.mxu0 %v2883
      %3695 = vmatprep.subr.bf16.mxu0 %v2878
      %3696 = vmatpush1.bf16.msra.mxu0 %v2877
      %3697 = vmatprep.subr.bf16.mxu0 %v2872
      %3698 = vmatpush1.bf16.msra.mxu0 %v2871
      %3699 = vmatprep.subr.bf16.mxu0 %v2866
      %3700 = vmatpush1.bf16.msra.mxu0 %v2865
      %3701 = vmatprep.subr.bf16.mxu0 %v2956
      %3702 = vmatpush2.bf16.msra.mxu0 %v2955
      %3703 = vmatprep.subr.bf16.mxu0 %v2950
      %3704 = vmatpush2.bf16.msra.mxu0 %v2949
      %3705 = vmatprep.subr.bf16.mxu0 %v2944
      %3706 = vmatpush2.bf16.msra.mxu0 %v2943
      %3707 = vmatprep.subr.bf16.mxu0 %v2938
      %3708 = vmatpush2.bf16.msra.mxu0 %v2937
      %3709 = vmatprep.subr.bf16.mxu0 %v2932
      %3710 = vmatpush2.bf16.msra.mxu0 %v2931
      %3711 = vmatprep.subr.bf16.mxu0 %v2926
      %3712 = vmatpush2.bf16.msra.mxu0 %v2925
      %3713 = vmatprep.subr.bf16.mxu0 %v2920
      %3714 = vmatpush2.bf16.msra.mxu0 %v2919
      %3715 = vmatprep.subr.bf16.mxu0 %v2914
      %3716 = vmatpush2.bf16.msra.mxu0 %v2913
      %3717 = vmatprep.mubr.bf16.mxu0 %v1100
      %3718 = vmatmul.mubr.bf16.gmra.mxu0 %v1099
      %v3719 = vpop.f32.mrf.mxu0
      %v3720 = vadd.f32 %v3679, %v3719
      %v3721 = vpop.f32.mrf.mxu0
      %v3722 = vadd.f32 %v3681, %v3721
      %v3723 = vpop.f32.mrf.mxu0
      %v3724 = vpop.f32.mrf.mxu0
      %3725 = vdwg.mxu0
      %3726 = vmatprep.subr.bf16.mxu0 %v3004
      %3727 = vmatpush1.bf16.msra.mxu0 %v3003
      %3728 = vmatprep.subr.bf16.mxu0 %v2998
      %3729 = vmatpush1.bf16.msra.mxu0 %v2997
      %3730 = vmatprep.subr.bf16.mxu0 %v2992
      %3731 = vmatpush1.bf16.msra.mxu0 %v2991
      %3732 = vmatprep.subr.bf16.mxu0 %v2986
      %3733 = vmatpush1.bf16.msra.mxu0 %v2985
      %3734 = vmatprep.subr.bf16.mxu0 %v2980
      %3735 = vmatpush1.bf16.msra.mxu0 %v2979
      %3736 = vmatprep.subr.bf16.mxu0 %v2974
      %3737 = vmatpush1.bf16.msra.mxu0 %v2973
      %3738 = vmatprep.subr.bf16.mxu0 %v2968
      %3739 = vmatpush1.bf16.msra.mxu0 %v2967
      %3740 = vmatprep.subr.bf16.mxu0 %v2962
      %3741 = vmatpush1.bf16.msra.mxu0 %v2961
      %3742 = vmatprep.subr.bf16.mxu0 %v3052
      %3743 = vmatpush2.bf16.msra.mxu0 %v3051
      %3744 = vmatprep.subr.bf16.mxu0 %v3046
      %3745 = vmatpush2.bf16.msra.mxu0 %v3045
      %3746 = vmatprep.subr.bf16.mxu0 %v3040
      %3747 = vmatpush2.bf16.msra.mxu0 %v3039
      %3748 = vmatprep.subr.bf16.mxu0 %v3034
      %3749 = vmatpush2.bf16.msra.mxu0 %v3033
      %3750 = vmatprep.subr.bf16.mxu0 %v3028
      %3751 = vmatpush2.bf16.msra.mxu0 %v3027
      %3752 = vmatprep.subr.bf16.mxu0 %v3022
      %3753 = vmatpush2.bf16.msra.mxu0 %v3021
      %3754 = vmatprep.subr.bf16.mxu0 %v3016
      %3755 = vmatpush2.bf16.msra.mxu0 %v3015
      %3756 = vmatprep.subr.bf16.mxu0 %v3010
      %3757 = vmatpush2.bf16.msra.mxu0 %v3009
      %3758 = vmatprep.mubr.bf16.mxu0 %v1102
      %3759 = vmatmul.mubr.bf16.gmra.mxu0 %v1101
      %v3760 = vpop.f32.mrf.mxu0
      %v3761 = vadd.f32 %v3720, %v3760
      %v3762 = vpop.f32.mrf.mxu0
      %v3763 = vadd.f32 %v3722, %v3762
      %v3764 = vpop.f32.mrf.mxu0
      %v3765 = vpop.f32.mrf.mxu0
      %3766 = vdwg.mxu0
      %3767 = vmatprep.subr.bf16.mxu0 %v2718
      %3768 = vmatpush1.bf16.msra.mxu0 %v2717
      %3769 = vmatprep.subr.bf16.mxu0 %v2712
      %3770 = vmatpush1.bf16.msra.mxu0 %v2711
      %3771 = vmatprep.subr.bf16.mxu0 %v2706
      %3772 = vmatpush1.bf16.msra.mxu0 %v2705
      %3773 = vmatprep.subr.bf16.mxu0 %v2700
      %3774 = vmatpush1.bf16.msra.mxu0 %v2699
      %3775 = vmatprep.subr.bf16.mxu0 %v2694
      %3776 = vmatpush1.bf16.msra.mxu0 %v2693
      %3777 = vmatprep.subr.bf16.mxu0 %v2688
      %3778 = vmatpush1.bf16.msra.mxu0 %v2687
      %3779 = vmatprep.subr.bf16.mxu0 %v2682
      %3780 = vmatpush1.bf16.msra.mxu0 %v2681
      %3781 = vmatprep.subr.bf16.mxu0 %v2676
      %3782 = vmatpush1.bf16.msra.mxu0 %v2675
      %3783 = vmatprep.subr.bf16.mxu0 %v2766
      %3784 = vmatpush2.bf16.msra.mxu0 %v2765
      %3785 = vmatprep.subr.bf16.mxu0 %v2760
      %3786 = vmatpush2.bf16.msra.mxu0 %v2759
      %3787 = vmatprep.subr.bf16.mxu0 %v2754
      %3788 = vmatpush2.bf16.msra.mxu0 %v2753
      %3789 = vmatprep.subr.bf16.mxu0 %v2748
      %3790 = vmatpush2.bf16.msra.mxu0 %v2747
      %3791 = vmatprep.subr.bf16.mxu0 %v2742
      %3792 = vmatpush2.bf16.msra.mxu0 %v2741
      %3793 = vmatprep.subr.bf16.mxu0 %v2736
      %3794 = vmatpush2.bf16.msra.mxu0 %v2735
      %3795 = vmatprep.subr.bf16.mxu0 %v2730
      %3796 = vmatpush2.bf16.msra.mxu0 %v2729
      %3797 = vmatprep.subr.bf16.mxu0 %v2724
      %3798 = vmatpush2.bf16.msra.mxu0 %v2723
      %3799 = vmatprep.mubr.bf16.mxu0 %v1096
      %3800 = vmatmul.mubr.bf16.gmra.mxu0 %v1095
      %v3801 = vpop.f32.mrf.mxu0
      %v3802 = vadd.f32 %v1508, %v3801
      %v3803 = vpop.f32.mrf.mxu0
      %v3804 = vadd.f32 %v1512, %v3803
      %v3805 = vpop.f32.mrf.mxu0
      %v3806 = vpop.f32.mrf.mxu0
      %3807 = vdwg.mxu0
      %3808 = vmatprep.subr.bf16.mxu0 %v2814
      %3809 = vmatpush1.bf16.msra.mxu0 %v2813
      %3810 = vmatprep.subr.bf16.mxu0 %v2808
      %3811 = vmatpush1.bf16.msra.mxu0 %v2807
      %3812 = vmatprep.subr.bf16.mxu0 %v2802
      %3813 = vmatpush1.bf16.msra.mxu0 %v2801
      %3814 = vmatprep.subr.bf16.mxu0 %v2796
      %3815 = vmatpush1.bf16.msra.mxu0 %v2795
      %3816 = vmatprep.subr.bf16.mxu0 %v2790
      %3817 = vmatpush1.bf16.msra.mxu0 %v2789
      %3818 = vmatprep.subr.bf16.mxu0 %v2784
      %3819 = vmatpush1.bf16.msra.mxu0 %v2783
      %3820 = vmatprep.subr.bf16.mxu0 %v2778
      %3821 = vmatpush1.bf16.msra.mxu0 %v2777
      %3822 = vmatprep.subr.bf16.mxu0 %v2772
      %3823 = vmatpush1.bf16.msra.mxu0 %v2771
      %3824 = vmatprep.subr.bf16.mxu0 %v2862
      %3825 = vmatpush2.bf16.msra.mxu0 %v2861
      %3826 = vmatprep.subr.bf16.mxu0 %v2856
      %3827 = vmatpush2.bf16.msra.mxu0 %v2855
      %3828 = vmatprep.subr.bf16.mxu0 %v2850
      %3829 = vmatpush2.bf16.msra.mxu0 %v2849
      %3830 = vmatprep.subr.bf16.mxu0 %v2844
      %3831 = vmatpush2.bf16.msra.mxu0 %v2843
      %3832 = vmatprep.subr.bf16.mxu0 %v2838
      %3833 = vmatpush2.bf16.msra.mxu0 %v2837
      %3834 = vmatprep.subr.bf16.mxu0 %v2832
      %3835 = vmatpush2.bf16.msra.mxu0 %v2831
      %3836 = vmatprep.subr.bf16.mxu0 %v2826
      %3837 = vmatpush2.bf16.msra.mxu0 %v2825
      %3838 = vmatprep.subr.bf16.mxu0 %v2820
      %3839 = vmatpush2.bf16.msra.mxu0 %v2819
      %3840 = vmatprep.mubr.bf16.mxu0 %v1098
      %3841 = vmatmul.mubr.bf16.gmra.mxu0 %v1097
      %v3842 = vpop.f32.mrf.mxu0
      %v3843 = vadd.f32 %v3802, %v3842
      %v3844 = vpop.f32.mrf.mxu0
      %v3845 = vadd.f32 %v3804, %v3844
      %v3846 = vpop.f32.mrf.mxu0
      %v3847 = vpop.f32.mrf.mxu0
      %3848 = vdwg.mxu0
      %3849 = vmatprep.subr.bf16.mxu0 %v2910
      %3850 = vmatpush1.bf16.msra.mxu0 %v2909
      %3851 = vmatprep.subr.bf16.mxu0 %v2904
      %3852 = vmatpush1.bf16.msra.mxu0 %v2903
      %3853 = vmatprep.subr.bf16.mxu0 %v2898
      %3854 = vmatpush1.bf16.msra.mxu0 %v2897
      %3855 = vmatprep.subr.bf16.mxu0 %v2892
      %3856 = vmatpush1.bf16.msra.mxu0 %v2891
      %3857 = vmatprep.subr.bf16.mxu0 %v2886
      %3858 = vmatpush1.bf16.msra.mxu0 %v2885
      %3859 = vmatprep.subr.bf16.mxu0 %v2880
      %3860 = vmatpush1.bf16.msra.mxu0 %v2879
      %3861 = vmatprep.subr.bf16.mxu0 %v2874
      %3862 = vmatpush1.bf16.msra.mxu0 %v2873
      %3863 = vmatprep.subr.bf16.mxu0 %v2868
      %3864 = vmatpush1.bf16.msra.mxu0 %v2867
      %3865 = vmatprep.subr.bf16.mxu0 %v2958
      %3866 = vmatpush2.bf16.msra.mxu0 %v2957
      %3867 = vmatprep.subr.bf16.mxu0 %v2952
      %3868 = vmatpush2.bf16.msra.mxu0 %v2951
      %3869 = vmatprep.subr.bf16.mxu0 %v2946
      %3870 = vmatpush2.bf16.msra.mxu0 %v2945
      %3871 = vmatprep.subr.bf16.mxu0 %v2940
      %3872 = vmatpush2.bf16.msra.mxu0 %v2939
      %3873 = vmatprep.subr.bf16.mxu0 %v2934
      %3874 = vmatpush2.bf16.msra.mxu0 %v2933
      %3875 = vmatprep.subr.bf16.mxu0 %v2928
      %3876 = vmatpush2.bf16.msra.mxu0 %v2927
      %3877 = vmatprep.subr.bf16.mxu0 %v2922
      %3878 = vmatpush2.bf16.msra.mxu0 %v2921
      %3879 = vmatprep.subr.bf16.mxu0 %v2916
      %3880 = vmatpush2.bf16.msra.mxu0 %v2915
      %3881 = vmatprep.mubr.bf16.mxu0 %v1100
      %3882 = vmatmul.mubr.bf16.gmra.mxu0 %v1099
      %v3883 = vpop.f32.mrf.mxu0
      %v3884 = vadd.f32 %v3843, %v3883
      %v3885 = vpop.f32.mrf.mxu0
      %v3886 = vadd.f32 %v3845, %v3885
      %v3887 = vpop.f32.mrf.mxu0
      %v3888 = vpop.f32.mrf.mxu0
      %3889 = vdwg.mxu0
      %3890 = vmatprep.subr.bf16.mxu0 %v3006
      %3891 = vmatpush1.bf16.msra.mxu0 %v3005
      %3892 = vmatprep.subr.bf16.mxu0 %v3000
      %3893 = vmatpush1.bf16.msra.mxu0 %v2999
      %3894 = vmatprep.subr.bf16.mxu0 %v2994
      %3895 = vmatpush1.bf16.msra.mxu0 %v2993
      %3896 = vmatprep.subr.bf16.mxu0 %v2988
      %3897 = vmatpush1.bf16.msra.mxu0 %v2987
      %3898 = vmatprep.subr.bf16.mxu0 %v2982
      %3899 = vmatpush1.bf16.msra.mxu0 %v2981
      %3900 = vmatprep.subr.bf16.mxu0 %v2976
      %3901 = vmatpush1.bf16.msra.mxu0 %v2975
      %3902 = vmatprep.subr.bf16.mxu0 %v2970
      %3903 = vmatpush1.bf16.msra.mxu0 %v2969
      %3904 = vmatprep.subr.bf16.mxu0 %v2964
      %3905 = vmatpush1.bf16.msra.mxu0 %v2963
      %3906 = vmatprep.subr.bf16.mxu0 %v3054
      %3907 = vmatpush2.bf16.msra.mxu0 %v3053
      %3908 = vmatprep.subr.bf16.mxu0 %v3048
      %3909 = vmatpush2.bf16.msra.mxu0 %v3047
      %3910 = vmatprep.subr.bf16.mxu0 %v3042
      %3911 = vmatpush2.bf16.msra.mxu0 %v3041
      %3912 = vmatprep.subr.bf16.mxu0 %v3036
      %3913 = vmatpush2.bf16.msra.mxu0 %v3035
      %3914 = vmatprep.subr.bf16.mxu0 %v3030
      %3915 = vmatpush2.bf16.msra.mxu0 %v3029
      %3916 = vmatprep.subr.bf16.mxu0 %v3024
      %3917 = vmatpush2.bf16.msra.mxu0 %v3023
      %3918 = vmatprep.subr.bf16.mxu0 %v3018
      %3919 = vmatpush2.bf16.msra.mxu0 %v3017
      %3920 = vmatprep.subr.bf16.mxu0 %v3012
      %3921 = vmatpush2.bf16.msra.mxu0 %v3011
      %3922 = vmatprep.mubr.bf16.mxu0 %v1102
      %3923 = vmatmul.mubr.bf16.gmra.mxu0 %v1101
      %v3924 = vpop.f32.mrf.mxu0
      %v3925 = vadd.f32 %v3884, %v3924
      %v3926 = vpop.f32.mrf.mxu0
      %v3927 = vadd.f32 %v3886, %v3926
      %v3928 = vpop.f32.mrf.mxu0
      %v3929 = vpop.f32.mrf.mxu0
      %3930 = vdwg.mxu0
      %v3931 = vpack.c.bf16 %v1071, %v1071
      %v3932 = vpack.c.bf16 %v1072, %v1072
      %v3933 = vpack.c.bf16 %v1073, %v1073
      %v3934 = vpack.c.bf16 %v1074, %v1074
      %v3935 = vpack.c.bf16 %v1075, %v1075
      %v3936 = vpack.c.bf16 %v1076, %v1076
      %v3937 = vpack.c.bf16 %v1077, %v1077
      %v3938 = vpack.c.bf16 %v1078, %v1078
      %v3939 = vpack.c.bf16 %v1079, %v1079
      %v3940 = vpack.c.bf16 %v1080, %v1080
      %v3941 = vpack.c.bf16 %v1081, %v1081
      %v3942 = vpack.c.bf16 %v1082, %v1082
      %v3943 = vpack.c.bf16 %v1083, %v1083
      %v3944 = vpack.c.bf16 %v1084, %v1084
      %v3945 = vpack.c.bf16 %v1085, %v1085
      %v3946 = vpack.c.bf16 %v1086, %v1086
      %v3947 = vpack.c.bf16 %v1087, %v1087
      %v3948 = vpack.c.bf16 %v1088, %v1088
      %v3949 = vpack.c.bf16 %v1089, %v1089
      %v3950 = vpack.c.bf16 %v1090, %v1090
      %v3951 = vpack.c.bf16 %v1091, %v1091
      %v3952 = vpack.c.bf16 %v1092, %v1092
      %v3953 = vpack.c.bf16 %v1093, %v1093
      %v3954 = vpack.c.bf16 %v1094, %v1094
      %v3955 = vld [vmem:[#allocation12] sm:$0xff]
      %v3956 = vld [vmem:[#allocation12 + $0x8] sm:$0xff]
      %v3957 = vld [vmem:[#allocation12 + $0x10] sm:$0xff]
      %v3958 = vld [vmem:[#allocation12 + $0x18] sm:$0xff]
      %v3959 = vld [vmem:[#allocation12 + $0x20] sm:$0xff]
      %v3960 = vld [vmem:[#allocation12 + $0x28] sm:$0xff]
      %v3961 = vld [vmem:[#allocation12 + $0x30] sm:$0xff]
      %v3962 = vld [vmem:[#allocation12 + $0x38] sm:$0xff]
      %v3963 = vld [vmem:[#allocation12 + $0x40] sm:$0xff]
      %v3964 = vld [vmem:[#allocation12 + $0x48] sm:$0xff]
      %v3965 = vld [vmem:[#allocation12 + $0x50] sm:$0xff]
      %v3966 = vld [vmem:[#allocation12 + $0x58] sm:$0xff]
      %v3967 = vld [vmem:[#allocation12 + $0x60] sm:$0xff]
      %v3968 = vld [vmem:[#allocation12 + $0x68] sm:$0xff]
      %v3969 = vld [vmem:[#allocation12 + $0x70] sm:$0xff]
      %v3970 = vld [vmem:[#allocation12 + $0x78] sm:$0xff]
      %v3971 = vld [vmem:[#allocation12 + $0x80] sm:$0xff]
      %v3972 = vld [vmem:[#allocation12 + $0x88] sm:$0xff]
      %v3973 = vld [vmem:[#allocation12 + $0x90] sm:$0xff]
      %v3974 = vld [vmem:[#allocation12 + $0x98] sm:$0xff]
      %v3975 = vld [vmem:[#allocation12 + $0xa0] sm:$0xff]
      %v3976 = vld [vmem:[#allocation12 + $0xa8] sm:$0xff]
      %v3977 = vld [vmem:[#allocation12 + $0xb0] sm:$0xff]
      %v3978 = vld [vmem:[#allocation12 + $0xb8] sm:$0xff]
      %v3979 = vld [vmem:[#allocation12 + $0xc0] sm:$0xff]
      %v3980 = vld [vmem:[#allocation12 + $0xc8] sm:$0xff]
      %v3981 = vld [vmem:[#allocation12 + $0xd0] sm:$0xff]
      %v3982 = vld [vmem:[#allocation12 + $0xd8] sm:$0xff]
      %v3983 = vld [vmem:[#allocation12 + $0xe0] sm:$0xff]
      %v3984 = vld [vmem:[#allocation12 + $0xe8] sm:$0xff]
      %v3985 = vld [vmem:[#allocation12 + $0xf0] sm:$0xff]
      %v3986 = vld [vmem:[#allocation12 + $0xf8] sm:$0xff]
      %v3987 = vld [vmem:[#allocation12 + $0x100] sm:$0xff]
      %v3988 = vld [vmem:[#allocation12 + $0x108] sm:$0xff]
      %v3989 = vld [vmem:[#allocation12 + $0x110] sm:$0xff]
      %v3990 = vld [vmem:[#allocation12 + $0x118] sm:$0xff]
      %v3991 = vld [vmem:[#allocation12 + $0x120] sm:$0xff]
      %v3992 = vld [vmem:[#allocation12 + $0x128] sm:$0xff]
      %v3993 = vld [vmem:[#allocation12 + $0x130] sm:$0xff]
      %v3994 = vld [vmem:[#allocation12 + $0x138] sm:$0xff]
      %v3995 = vld [vmem:[#allocation12 + $0x140] sm:$0xff]
      %v3996 = vld [vmem:[#allocation12 + $0x148] sm:$0xff]
      %v3997 = vld [vmem:[#allocation12 + $0x150] sm:$0xff]
      %v3998 = vld [vmem:[#allocation12 + $0x158] sm:$0xff]
      %v3999 = vld [vmem:[#allocation12 + $0x160] sm:$0xff]
      %v4000 = vld [vmem:[#allocation12 + $0x168] sm:$0xff]
      %v4001 = vld [vmem:[#allocation12 + $0x170] sm:$0xff]
      %v4002 = vld [vmem:[#allocation12 + $0x178] sm:$0xff]
      %v4003 = vld [vmem:[#allocation12 + $0x180] sm:$0xff]
      %v4004 = vld [vmem:[#allocation12 + $0x188] sm:$0xff]
      %v4005 = vld [vmem:[#allocation12 + $0x190] sm:$0xff]
      %v4006 = vld [vmem:[#allocation12 + $0x198] sm:$0xff]
      %v4007 = vld [vmem:[#allocation12 + $0x1a0] sm:$0xff]
      %v4008 = vld [vmem:[#allocation12 + $0x1a8] sm:$0xff]
      %v4009 = vld [vmem:[#allocation12 + $0x1b0] sm:$0xff]
      %v4010 = vld [vmem:[#allocation12 + $0x1b8] sm:$0xff]
      %v4011 = vld [vmem:[#allocation12 + $0x1c0] sm:$0xff]
      %v4012 = vld [vmem:[#allocation12 + $0x1c8] sm:$0xff]
      %v4013 = vld [vmem:[#allocation12 + $0x1d0] sm:$0xff]
      %v4014 = vld [vmem:[#allocation12 + $0x1d8] sm:$0xff]
      %v4015 = vld [vmem:[#allocation12 + $0x1e0] sm:$0xff]
      %v4016 = vld [vmem:[#allocation12 + $0x1e8] sm:$0xff]
      %v4017 = vld [vmem:[#allocation12 + $0x1f0] sm:$0xff]
      %v4018 = vld [vmem:[#allocation12 + $0x1f8] sm:$0xff]
      %v4019 = vld [vmem:[#allocation12 + $0x200] sm:$0xff]
      %v4020 = vld [vmem:[#allocation12 + $0x208] sm:$0xff]
      %v4021 = vld [vmem:[#allocation12 + $0x210] sm:$0xff]
      %v4022 = vld [vmem:[#allocation12 + $0x218] sm:$0xff]
      %v4023 = vld [vmem:[#allocation12 + $0x220] sm:$0xff]
      %v4024 = vld [vmem:[#allocation12 + $0x228] sm:$0xff]
      %v4025 = vld [vmem:[#allocation12 + $0x230] sm:$0xff]
      %v4026 = vld [vmem:[#allocation12 + $0x238] sm:$0xff]
      %v4027 = vld [vmem:[#allocation12 + $0x240] sm:$0xff]
      %v4028 = vld [vmem:[#allocation12 + $0x248] sm:$0xff]
      %v4029 = vld [vmem:[#allocation12 + $0x250] sm:$0xff]
      %v4030 = vld [vmem:[#allocation12 + $0x258] sm:$0xff]
      %v4031 = vld [vmem:[#allocation12 + $0x260] sm:$0xff]
      %v4032 = vld [vmem:[#allocation12 + $0x268] sm:$0xff]
      %v4033 = vld [vmem:[#allocation12 + $0x270] sm:$0xff]
      %v4034 = vld [vmem:[#allocation12 + $0x278] sm:$0xff]
      %v4035 = vld [vmem:[#allocation12 + $0x280] sm:$0xff]
      %v4036 = vld [vmem:[#allocation12 + $0x288] sm:$0xff]
      %v4037 = vld [vmem:[#allocation12 + $0x290] sm:$0xff]
      %v4038 = vld [vmem:[#allocation12 + $0x298] sm:$0xff]
      %v4039 = vld [vmem:[#allocation12 + $0x2a0] sm:$0xff]
      %v4040 = vld [vmem:[#allocation12 + $0x2a8] sm:$0xff]
      %v4041 = vld [vmem:[#allocation12 + $0x2b0] sm:$0xff]
      %v4042 = vld [vmem:[#allocation12 + $0x2b8] sm:$0xff]
      %v4043 = vld [vmem:[#allocation12 + $0x2c0] sm:$0xff]
      %v4044 = vld [vmem:[#allocation12 + $0x2c8] sm:$0xff]
      %v4045 = vld [vmem:[#allocation12 + $0x2d0] sm:$0xff]
      %v4046 = vld [vmem:[#allocation12 + $0x2d8] sm:$0xff]
      %v4047 = vld [vmem:[#allocation12 + $0x2e0] sm:$0xff]
      %v4048 = vld [vmem:[#allocation12 + $0x2e8] sm:$0xff]
      %v4049 = vld [vmem:[#allocation12 + $0x2f0] sm:$0xff]
      %v4050 = vld [vmem:[#allocation12 + $0x2f8] sm:$0xff]
      %v4051 = vld [vmem:[#allocation12 + $0x300] sm:$0xff]
      %v4052 = vld [vmem:[#allocation12 + $0x308] sm:$0xff]
      %v4053 = vld [vmem:[#allocation12 + $0x310] sm:$0xff]
      %v4054 = vld [vmem:[#allocation12 + $0x318] sm:$0xff]
      %v4055 = vld [vmem:[#allocation12 + $0x320] sm:$0xff]
      %v4056 = vld [vmem:[#allocation12 + $0x328] sm:$0xff]
      %v4057 = vld [vmem:[#allocation12 + $0x330] sm:$0xff]
      %v4058 = vld [vmem:[#allocation12 + $0x338] sm:$0xff]
      %v4059 = vld [vmem:[#allocation12 + $0x340] sm:$0xff]
      %v4060 = vld [vmem:[#allocation12 + $0x348] sm:$0xff]
      %v4061 = vld [vmem:[#allocation12 + $0x350] sm:$0xff]
      %v4062 = vld [vmem:[#allocation12 + $0x358] sm:$0xff]
      %v4063 = vld [vmem:[#allocation12 + $0x360] sm:$0xff]
      %v4064 = vld [vmem:[#allocation12 + $0x368] sm:$0xff]
      %v4065 = vld [vmem:[#allocation12 + $0x370] sm:$0xff]
      %v4066 = vld [vmem:[#allocation12 + $0x378] sm:$0x33]
      %v4067 = vld [vmem:[#allocation12 + $0x380] sm:$0x33]
      %v4068 = vld [vmem:[#allocation12 + $0x388] sm:$0x33]
      %v4069 = vld [vmem:[#allocation13] sm:$0x3f]
      %v4071 = vlaneseq
      %v4072 = vshrl.u32 %v4071, 7
      %v4073 = vsub.s32 0, %v4072
      %v4074 = vrot.slane %v4069, %v4073
      %v4075 = vlaneseq
      %v4076 = vshrl.u32 %v4075, 7
      %v4077 = vsub.s32 1, %v4076
      %v4078 = vrot.slane %v4069, %v4077
      %v4079 = vlaneseq
      %v4080 = vshrl.u32 %v4079, 7
      %v4081 = vsub.s32 2, %v4080
      %v4082 = vrot.slane %v4069, %v4081
      %v4083 = vlaneseq
      %v4084 = vshrl.u32 %v4083, 7
      %v4085 = vsub.s32 3, %v4084
      %v4086 = vrot.slane %v4069, %v4085
      %v4087 = vlaneseq
      %v4088 = vshrl.u32 %v4087, 7
      %v4089 = vsub.s32 4, %v4088
      %v4090 = vrot.slane %v4069, %v4089
      %v4091 = vlaneseq
      %v4092 = vshrl.u32 %v4091, 7
      %v4093 = vsub.s32 5, %v4092
      %v4094 = vrot.slane %v4069, %v4093
      %v4125 = vunpack.c.l.b16 %v3931
      %v4126 = vunpack.c.l.b16 %v3932
      %v4127 = vunpack.c.l.b16 %v3933
      %v4128 = vunpack.c.l.b16 %v3934
      %v4129 = vunpack.c.l.b16 %v3935
      %v4130 = vunpack.c.l.b16 %v3936
      %v4131 = vunpack.c.l.b16 %v3937
      %v4132 = vunpack.c.l.b16 %v3938
      %v4133 = vunpack.c.l.b16 %v3939
      %v4134 = vunpack.c.l.b16 %v3940
      %v4135 = vunpack.c.l.b16 %v3941
      %v4136 = vunpack.c.l.b16 %v3942
      %v4137 = vunpack.c.l.b16 %v3943
      %v4138 = vunpack.c.l.b16 %v3944
      %v4139 = vunpack.c.l.b16 %v3945
      %v4140 = vunpack.c.l.b16 %v3946
      %v4141 = vunpack.c.l.b16 %v3947
      %v4142 = vunpack.c.l.b16 %v3948
      %v4143 = vunpack.c.l.b16 %v3949
      %v4144 = vunpack.c.l.b16 %v3950
      %v4145 = vunpack.c.l.b16 %v3951
      %v4146 = vunpack.c.l.b16 %v3952
      %v4147 = vunpack.c.l.b16 %v3953
      %v4148 = vunpack.c.l.b16 %v3954
      %v4149 = vsel %vm731, %v4128, %v4125
      %v4150 = vsel %vm733, %v4131, %v4149
      %v4151 = vsel %vm735, %v4134, %v4150
      %v4152 = vsel %vm737, %v4137, %v4151
      %v4153 = vsel %vm739, %v4140, %v4152
      %v4154 = vsel %vm741, %v4143, %v4153
      %v4155 = vsel %vm743, %v4146, %v4154
      %v4156 = vsel %vm731, %v4129, %v4126
      %v4157 = vsel %vm733, %v4132, %v4156
      %v4158 = vsel %vm735, %v4135, %v4157
      %v4159 = vsel %vm737, %v4138, %v4158
      %v4160 = vsel %vm739, %v4141, %v4159
      %v4161 = vsel %vm741, %v4144, %v4160
      %v4162 = vsel %vm743, %v4147, %v4161
      %v4163 = vsel %vm731, %v4130, %v4127
      %v4164 = vsel %vm733, %v4133, %v4163
      %v4165 = vsel %vm735, %v4136, %v4164
      %v4166 = vsel %vm737, %v4139, %v4165
      %v4167 = vsel %vm739, %v4142, %v4166
      %v4168 = vsel %vm741, %v4145, %v4167
      %v4169 = vsel %vm743, %v4148, %v4168
      %v4170 = vpack.c.b16 %v4155, %v4155
      %v4171 = vpack.c.b16 %v4162, %v4162
      %v4172 = vpack.c.b16 %v4169, %v4169
      %v4289 = vunpack.c.l.b16 %v3955
      %v4290 = vunpack.c.h.b16 %v3955
      %v4291 = vunpack.c.l.b16 %v3956
      %v4292 = vunpack.c.h.b16 %v3956
      %v4293 = vunpack.c.l.b16 %v3957
      %v4294 = vunpack.c.h.b16 %v3957
      %v4295 = vunpack.c.l.b16 %v3958
      %v4296 = vunpack.c.h.b16 %v3958
      %v4297 = vunpack.c.l.b16 %v3959
      %v4298 = vunpack.c.h.b16 %v3959
      %v4299 = vunpack.c.l.b16 %v3960
      %v4300 = vunpack.c.h.b16 %v3960
      %v4301 = vunpack.c.l.b16 %v3961
      %v4302 = vunpack.c.h.b16 %v3961
      %v4303 = vunpack.c.l.b16 %v3962
      %v4304 = vunpack.c.h.b16 %v3962
      %v4305 = vunpack.c.l.b16 %v3963
      %v4306 = vunpack.c.h.b16 %v3963
      %v4307 = vunpack.c.l.b16 %v3964
      %v4308 = vunpack.c.h.b16 %v3964
      %v4309 = vunpack.c.l.b16 %v3965
      %v4310 = vunpack.c.h.b16 %v3965
      %v4311 = vunpack.c.l.b16 %v3966
      %v4312 = vunpack.c.h.b16 %v3966
      %v4313 = vunpack.c.l.b16 %v3967
      %v4314 = vunpack.c.h.b16 %v3967
      %v4315 = vunpack.c.l.b16 %v3968
      %v4316 = vunpack.c.h.b16 %v3968
      %v4317 = vunpack.c.l.b16 %v3969
      %v4318 = vunpack.c.h.b16 %v3969
      %v4319 = vunpack.c.l.b16 %v3970
      %v4320 = vunpack.c.h.b16 %v3970
      %v4321 = vunpack.c.l.b16 %v3971
      %v4322 = vunpack.c.h.b16 %v3971
      %v4323 = vunpack.c.l.b16 %v3972
      %v4324 = vunpack.c.h.b16 %v3972
      %v4325 = vunpack.c.l.b16 %v3973
      %v4326 = vunpack.c.h.b16 %v3973
      %v4327 = vunpack.c.l.b16 %v3974
      %v4328 = vunpack.c.h.b16 %v3974
      %v4329 = vunpack.c.l.b16 %v3975
      %v4330 = vunpack.c.h.b16 %v3975
      %v4331 = vunpack.c.l.b16 %v3976
      %v4332 = vunpack.c.h.b16 %v3976
      %v4333 = vunpack.c.l.b16 %v3977
      %v4334 = vunpack.c.h.b16 %v3977
      %v4335 = vunpack.c.l.b16 %v3978
      %v4336 = vunpack.c.h.b16 %v3978
      %v4337 = vunpack.c.l.b16 %v3979
      %v4338 = vunpack.c.h.b16 %v3979
      %v4339 = vunpack.c.l.b16 %v3980
      %v4340 = vunpack.c.h.b16 %v3980
      %v4341 = vunpack.c.l.b16 %v3981
      %v4342 = vunpack.c.h.b16 %v3981
      %v4343 = vunpack.c.l.b16 %v3982
      %v4344 = vunpack.c.h.b16 %v3982
      %v4345 = vunpack.c.l.b16 %v3983
      %v4346 = vunpack.c.h.b16 %v3983
      %v4347 = vunpack.c.l.b16 %v3984
      %v4348 = vunpack.c.h.b16 %v3984
      %v4349 = vunpack.c.l.b16 %v3985
      %v4350 = vunpack.c.h.b16 %v3985
      %v4351 = vunpack.c.l.b16 %v3986
      %v4352 = vunpack.c.h.b16 %v3986
      %v4353 = vunpack.c.l.b16 %v3987
      %v4354 = vunpack.c.h.b16 %v3987
      %v4355 = vunpack.c.l.b16 %v3988
      %v4356 = vunpack.c.h.b16 %v3988
      %v4357 = vunpack.c.l.b16 %v3989
      %v4358 = vunpack.c.h.b16 %v3989
      %v4359 = vunpack.c.l.b16 %v3990
      %v4360 = vunpack.c.h.b16 %v3990
      %v4361 = vunpack.c.l.b16 %v3991
      %v4362 = vunpack.c.h.b16 %v3991
      %v4363 = vunpack.c.l.b16 %v3992
      %v4364 = vunpack.c.h.b16 %v3992
      %v4365 = vunpack.c.l.b16 %v3993
      %v4366 = vunpack.c.h.b16 %v3993
      %v4367 = vunpack.c.l.b16 %v3994
      %v4368 = vunpack.c.h.b16 %v3994
      %v4369 = vunpack.c.l.b16 %v3995
      %v4370 = vunpack.c.h.b16 %v3995
      %v4371 = vunpack.c.l.b16 %v3996
      %v4372 = vunpack.c.h.b16 %v3996
      %v4373 = vunpack.c.l.b16 %v3997
      %v4374 = vunpack.c.h.b16 %v3997
      %v4375 = vunpack.c.l.b16 %v3998
      %v4376 = vunpack.c.h.b16 %v3998
      %v4377 = vunpack.c.l.b16 %v3999
      %v4378 = vunpack.c.h.b16 %v3999
      %v4379 = vunpack.c.l.b16 %v4000
      %v4380 = vunpack.c.h.b16 %v4000
      %v4381 = vunpack.c.l.b16 %v4001
      %v4382 = vunpack.c.h.b16 %v4001
      %v4383 = vunpack.c.l.b16 %v4002
      %v4384 = vunpack.c.h.b16 %v4002
      %v4385 = vunpack.c.l.b16 %v4003
      %v4386 = vunpack.c.h.b16 %v4003
      %v4387 = vunpack.c.l.b16 %v4004
      %v4388 = vunpack.c.h.b16 %v4004
      %v4389 = vunpack.c.l.b16 %v4005
      %v4390 = vunpack.c.h.b16 %v4005
      %v4391 = vunpack.c.l.b16 %v4006
      %v4392 = vunpack.c.h.b16 %v4006
      %v4393 = vunpack.c.l.b16 %v4007
      %v4394 = vunpack.c.h.b16 %v4007
      %v4395 = vunpack.c.l.b16 %v4008
      %v4396 = vunpack.c.h.b16 %v4008
      %v4397 = vunpack.c.l.b16 %v4009
      %v4398 = vunpack.c.h.b16 %v4009
      %v4399 = vunpack.c.l.b16 %v4010
      %v4400 = vunpack.c.h.b16 %v4010
      %v4401 = vunpack.c.l.b16 %v4011
      %v4402 = vunpack.c.h.b16 %v4011
      %v4403 = vunpack.c.l.b16 %v4012
      %v4404 = vunpack.c.h.b16 %v4012
      %v4405 = vunpack.c.l.b16 %v4013
      %v4406 = vunpack.c.h.b16 %v4013
      %v4407 = vunpack.c.l.b16 %v4014
      %v4408 = vunpack.c.h.b16 %v4014
      %v4409 = vunpack.c.l.b16 %v4015
      %v4410 = vunpack.c.h.b16 %v4015
      %v4411 = vunpack.c.l.b16 %v4016
      %v4412 = vunpack.c.h.b16 %v4016
      %v4413 = vunpack.c.l.b16 %v4017
      %v4414 = vunpack.c.h.b16 %v4017
      %v4415 = vunpack.c.l.b16 %v4018
      %v4416 = vunpack.c.h.b16 %v4018
      %v4417 = vunpack.c.l.b16 %v4019
      %v4418 = vunpack.c.h.b16 %v4019
      %v4419 = vunpack.c.l.b16 %v4020
      %v4420 = vunpack.c.h.b16 %v4020
      %v4421 = vunpack.c.l.b16 %v4021
      %v4422 = vunpack.c.h.b16 %v4021
      %v4423 = vunpack.c.l.b16 %v4022
      %v4424 = vunpack.c.h.b16 %v4022
      %v4425 = vunpack.c.l.b16 %v4023
      %v4426 = vunpack.c.h.b16 %v4023
      %v4427 = vunpack.c.l.b16 %v4024
      %v4428 = vunpack.c.h.b16 %v4024
      %v4429 = vunpack.c.l.b16 %v4025
      %v4430 = vunpack.c.h.b16 %v4025
      %v4431 = vunpack.c.l.b16 %v4026
      %v4432 = vunpack.c.h.b16 %v4026
      %v4433 = vunpack.c.l.b16 %v4027
      %v4434 = vunpack.c.h.b16 %v4027
      %v4435 = vunpack.c.l.b16 %v4028
      %v4436 = vunpack.c.h.b16 %v4028
      %v4437 = vunpack.c.l.b16 %v4029
      %v4438 = vunpack.c.h.b16 %v4029
      %v4439 = vunpack.c.l.b16 %v4030
      %v4440 = vunpack.c.h.b16 %v4030
      %v4441 = vunpack.c.l.b16 %v4031
      %v4442 = vunpack.c.h.b16 %v4031
      %v4443 = vunpack.c.l.b16 %v4032
      %v4444 = vunpack.c.h.b16 %v4032
      %v4445 = vunpack.c.l.b16 %v4033
      %v4446 = vunpack.c.h.b16 %v4033
      %v4447 = vunpack.c.l.b16 %v4034
      %v4448 = vunpack.c.h.b16 %v4034
      %v4449 = vunpack.c.l.b16 %v4035
      %v4450 = vunpack.c.h.b16 %v4035
      %v4451 = vunpack.c.l.b16 %v4036
      %v4452 = vunpack.c.h.b16 %v4036
      %v4453 = vunpack.c.l.b16 %v4037
      %v4454 = vunpack.c.h.b16 %v4037
      %v4455 = vunpack.c.l.b16 %v4038
      %v4456 = vunpack.c.h.b16 %v4038
      %v4457 = vunpack.c.l.b16 %v4039
      %v4458 = vunpack.c.h.b16 %v4039
      %v4459 = vunpack.c.l.b16 %v4040
      %v4460 = vunpack.c.h.b16 %v4040
      %v4461 = vunpack.c.l.b16 %v4041
      %v4462 = vunpack.c.h.b16 %v4041
      %v4463 = vunpack.c.l.b16 %v4042
      %v4464 = vunpack.c.h.b16 %v4042
      %v4465 = vunpack.c.l.b16 %v4043
      %v4466 = vunpack.c.h.b16 %v4043
      %v4467 = vunpack.c.l.b16 %v4044
      %v4468 = vunpack.c.h.b16 %v4044
      %v4469 = vunpack.c.l.b16 %v4045
      %v4470 = vunpack.c.h.b16 %v4045
      %v4471 = vunpack.c.l.b16 %v4046
      %v4472 = vunpack.c.h.b16 %v4046
      %v4473 = vunpack.c.l.b16 %v4047
      %v4474 = vunpack.c.h.b16 %v4047
      %v4475 = vunpack.c.l.b16 %v4048
      %v4476 = vunpack.c.h.b16 %v4048
      %v4477 = vunpack.c.l.b16 %v4049
      %v4478 = vunpack.c.h.b16 %v4049
      %v4479 = vunpack.c.l.b16 %v4050
      %v4480 = vunpack.c.h.b16 %v4050
      %v4481 = vunpack.c.l.b16 %v4051
      %v4482 = vunpack.c.h.b16 %v4051
      %v4483 = vunpack.c.l.b16 %v4052
      %v4484 = vunpack.c.h.b16 %v4052
      %v4485 = vunpack.c.l.b16 %v4053
      %v4486 = vunpack.c.h.b16 %v4053
      %v4487 = vunpack.c.l.b16 %v4054
      %v4488 = vunpack.c.h.b16 %v4054
      %v4489 = vunpack.c.l.b16 %v4055
      %v4490 = vunpack.c.h.b16 %v4055
      %v4491 = vunpack.c.l.b16 %v4056
      %v4492 = vunpack.c.h.b16 %v4056
      %v4493 = vunpack.c.l.b16 %v4057
      %v4494 = vunpack.c.h.b16 %v4057
      %v4495 = vunpack.c.l.b16 %v4058
      %v4496 = vunpack.c.h.b16 %v4058
      %v4497 = vunpack.c.l.b16 %v4059
      %v4498 = vunpack.c.h.b16 %v4059
      %v4499 = vunpack.c.l.b16 %v4060
      %v4500 = vunpack.c.h.b16 %v4060
      %v4501 = vunpack.c.l.b16 %v4061
      %v4502 = vunpack.c.h.b16 %v4061
      %v4503 = vunpack.c.l.b16 %v4062
      %v4504 = vunpack.c.h.b16 %v4062
      %v4505 = vunpack.c.l.b16 %v4063
      %v4506 = vunpack.c.h.b16 %v4063
      %v4507 = vunpack.c.l.b16 %v4064
      %v4508 = vunpack.c.h.b16 %v4064
      %v4509 = vunpack.c.l.b16 %v4065
      %v4510 = vunpack.c.h.b16 %v4065
      %v4511 = vunpack.c.l.b16 %v4066
      %v4512 = vunpack.c.h.b16 %v4066
      %v4513 = vunpack.c.l.b16 %v4067
      %v4514 = vunpack.c.h.b16 %v4067
      %v4515 = vunpack.c.l.b16 %v4068
      %v4516 = vunpack.c.h.b16 %v4068
      %v4517 = vpack.c.b16 %v4295, %v4289
      %v4518 = vpack.c.b16 %v4296, %v4290
      %v4519 = vpack.c.b16 %v4297, %v4291
      %v4520 = vpack.c.b16 %v4298, %v4292
      %v4521 = vpack.c.b16 %v4299, %v4293
      %v4522 = vpack.c.b16 %v4300, %v4294
      %v4523 = vpack.c.b16 %v4307, %v4301
      %v4524 = vpack.c.b16 %v4308, %v4302
      %v4525 = vpack.c.b16 %v4309, %v4303
      %v4526 = vpack.c.b16 %v4310, %v4304
      %v4527 = vpack.c.b16 %v4311, %v4305
      %v4528 = vpack.c.b16 %v4312, %v4306
      %v4529 = vpack.c.b16 %v4319, %v4313
      %v4530 = vpack.c.b16 %v4320, %v4314
      %v4531 = vpack.c.b16 %v4321, %v4315
      %v4532 = vpack.c.b16 %v4322, %v4316
      %v4533 = vpack.c.b16 %v4323, %v4317
      %v4534 = vpack.c.b16 %v4324, %v4318
      %v4535 = vpack.c.b16 %v4331, %v4325
      %v4536 = vpack.c.b16 %v4332, %v4326
      %v4537 = vpack.c.b16 %v4333, %v4327
      %v4538 = vpack.c.b16 %v4334, %v4328
      %v4539 = vpack.c.b16 %v4335, %v4329
      %v4540 = vpack.c.b16 %v4336, %v4330
      %v4541 = vpack.c.b16 %v4343, %v4337
      %v4542 = vpack.c.b16 %v4344, %v4338
      %v4543 = vpack.c.b16 %v4345, %v4339
      %v4544 = vpack.c.b16 %v4346, %v4340
      %v4545 = vpack.c.b16 %v4347, %v4341
      %v4546 = vpack.c.b16 %v4348, %v4342
      %v4547 = vpack.c.b16 %v4355, %v4349
      %v4548 = vpack.c.b16 %v4356, %v4350
      %v4549 = vpack.c.b16 %v4357, %v4351
      %v4550 = vpack.c.b16 %v4358, %v4352
      %v4551 = vpack.c.b16 %v4359, %v4353
      %v4552 = vpack.c.b16 %v4360, %v4354
      %v4553 = vpack.c.b16 %v4367, %v4361
      %v4554 = vpack.c.b16 %v4368, %v4362
      %v4555 = vpack.c.b16 %v4369, %v4363
      %v4556 = vpack.c.b16 %v4370, %v4364
      %v4557 = vpack.c.b16 %v4371, %v4365
      %v4558 = vpack.c.b16 %v4372, %v4366
      %v4559 = vpack.c.b16 %v4379, %v4373
      %v4560 = vpack.c.b16 %v4380, %v4374
      %v4561 = vpack.c.b16 %v4381, %v4375
      %v4562 = vpack.c.b16 %v4382, %v4376
      %v4563 = vpack.c.b16 %v4383, %v4377
      %v4564 = vpack.c.b16 %v4384, %v4378
      %v4565 = vpack.c.b16 %v4391, %v4385
      %v4566 = vpack.c.b16 %v4392, %v4386
      %v4567 = vpack.c.b16 %v4393, %v4387
      %v4568 = vpack.c.b16 %v4394, %v4388
      %v4569 = vpack.c.b16 %v4395, %v4389
      %v4570 = vpack.c.b16 %v4396, %v4390
      %v4571 = vpack.c.b16 %v4403, %v4397
      %v4572 = vpack.c.b16 %v4404, %v4398
      %v4573 = vpack.c.b16 %v4405, %v4399
      %v4574 = vpack.c.b16 %v4406, %v4400
      %v4575 = vpack.c.b16 %v4407, %v4401
      %v4576 = vpack.c.b16 %v4408, %v4402
      %v4577 = vpack.c.b16 %v4415, %v4409
      %v4578 = vpack.c.b16 %v4416, %v4410
      %v4579 = vpack.c.b16 %v4417, %v4411
      %v4580 = vpack.c.b16 %v4418, %v4412
      %v4581 = vpack.c.b16 %v4419, %v4413
      %v4582 = vpack.c.b16 %v4420, %v4414
      %v4583 = vpack.c.b16 %v4427, %v4421
      %v4584 = vpack.c.b16 %v4428, %v4422
      %v4585 = vpack.c.b16 %v4429, %v4423
      %v4586 = vpack.c.b16 %v4430, %v4424
      %v4587 = vpack.c.b16 %v4431, %v4425
      %v4588 = vpack.c.b16 %v4432, %v4426
      %v4589 = vpack.c.b16 %v4439, %v4433
      %v4590 = vpack.c.b16 %v4440, %v4434
      %v4591 = vpack.c.b16 %v4441, %v4435
      %v4592 = vpack.c.b16 %v4442, %v4436
      %v4593 = vpack.c.b16 %v4443, %v4437
      %v4594 = vpack.c.b16 %v4444, %v4438
      %v4595 = vpack.c.b16 %v4451, %v4445
      %v4596 = vpack.c.b16 %v4452, %v4446
      %v4597 = vpack.c.b16 %v4453, %v4447
      %v4598 = vpack.c.b16 %v4454, %v4448
      %v4599 = vpack.c.b16 %v4455, %v4449
      %v4600 = vpack.c.b16 %v4456, %v4450
      %v4601 = vpack.c.b16 %v4463, %v4457
      %v4602 = vpack.c.b16 %v4464, %v4458
      %v4603 = vpack.c.b16 %v4465, %v4459
      %v4604 = vpack.c.b16 %v4466, %v4460
      %v4605 = vpack.c.b16 %v4467, %v4461
      %v4606 = vpack.c.b16 %v4468, %v4462
      %v4607 = vpack.c.b16 %v4475, %v4469
      %v4608 = vpack.c.b16 %v4476, %v4470
      %v4609 = vpack.c.b16 %v4477, %v4471
      %v4610 = vpack.c.b16 %v4478, %v4472
      %v4611 = vpack.c.b16 %v4479, %v4473
      %v4612 = vpack.c.b16 %v4480, %v4474
      %v4613 = vpack.c.b16 %v4487, %v4481
      %v4614 = vpack.c.b16 %v4488, %v4482
      %v4615 = vpack.c.b16 %v4489, %v4483
      %v4616 = vpack.c.b16 %v4490, %v4484
      %v4617 = vpack.c.b16 %v4491, %v4485
      %v4618 = vpack.c.b16 %v4492, %v4486
      %v4619 = vpack.c.b16 %v4499, %v4493
      %v4620 = vpack.c.b16 %v4500, %v4494
      %v4621 = vpack.c.b16 %v4501, %v4495
      %v4622 = vpack.c.b16 %v4502, %v4496
      %v4623 = vpack.c.b16 %v4503, %v4497
      %v4624 = vpack.c.b16 %v4504, %v4498
      %v4625 = vpack.c.b16 %v4511, %v4505
      %v4626 = vpack.c.b16 %v4512, %v4506
      %v4627 = vpack.c.b16 %v4513, %v4507
      %v4628 = vpack.c.b16 %v4514, %v4508
      %v4629 = vpack.c.b16 %v4515, %v4509
      %v4630 = vpack.c.b16 %v4516, %v4510
      %v4740 = vsel %vm899, %v4172, 0
      %vm4742 = vcmask 1045504
      %v4744 = vsel %vm4742, %v4625, 0
      %v4747 = vsel %vm4742, %v4626, 0
      %v4750 = vsel %vm4742, %v4627, 0
      %v4753 = vsel %vm4742, %v4628, 0
      %v4756 = vsel %vm4742, %v4629, 0
      %v4759 = vsel %vm4742, %v4630, 0
      %4761 = vmatprep.subr.bf16.mxu0 %v4560
      %4762 = vmatpush1.bf16.msra.mxu0 %v4559
      %4763 = vmatprep.subr.bf16.mxu0 %v4554
      %4764 = vmatpush1.bf16.msra.mxu0 %v4553
      %4765 = vmatprep.subr.bf16.mxu0 %v4548
      %4766 = vmatpush1.bf16.msra.mxu0 %v4547
      %4767 = vmatprep.subr.bf16.mxu0 %v4542
      %4768 = vmatpush1.bf16.msra.mxu0 %v4541
      %4769 = vmatprep.subr.bf16.mxu0 %v4536
      %4770 = vmatpush1.bf16.msra.mxu0 %v4535
      %4771 = vmatprep.subr.bf16.mxu0 %v4530
      %4772 = vmatpush1.bf16.msra.mxu0 %v4529
      %4773 = vmatprep.subr.bf16.mxu0 %v4524
      %4774 = vmatpush1.bf16.msra.mxu0 %v4523
      %4775 = vmatprep.subr.bf16.mxu0 %v4518
      %4776 = vmatpush1.bf16.msra.mxu0 %v4517
      %4777 = vmatprep.subr.bf16.mxu0 %v4608
      %4778 = vmatpush2.bf16.msra.mxu0 %v4607
      %4779 = vmatprep.subr.bf16.mxu0 %v4602
      %4780 = vmatpush2.bf16.msra.mxu0 %v4601
      %4781 = vmatprep.subr.bf16.mxu0 %v4596
      %4782 = vmatpush2.bf16.msra.mxu0 %v4595
      %4783 = vmatprep.subr.bf16.mxu0 %v4590
      %4784 = vmatpush2.bf16.msra.mxu0 %v4589
      %4785 = vmatprep.subr.bf16.mxu0 %v4584
      %4786 = vmatpush2.bf16.msra.mxu0 %v4583
      %4787 = vmatprep.subr.bf16.mxu0 %v4578
      %4788 = vmatpush2.bf16.msra.mxu0 %v4577
      %4789 = vmatprep.subr.bf16.mxu0 %v4572
      %4790 = vmatpush2.bf16.msra.mxu0 %v4571
      %4791 = vmatprep.subr.bf16.mxu0 %v4566
      %4792 = vmatpush2.bf16.msra.mxu0 %v4565
      %4793 = vmatprep.mubr.bf16.mxu0 %v4171
      %4794 = vmatmul.mubr.bf16.gmra.mxu0 %v4170
      %v4795 = vpop.f32.mrf.mxu0
      %v4796 = vadd.f32 %v4074, %v4795
      %v4797 = vpop.f32.mrf.mxu0
      %v4798 = vadd.f32 %v4078, %v4797
      %v4799 = vpop.f32.mrf.mxu0
      %v4800 = vpop.f32.mrf.mxu0
      %4801 = vdwg.mxu0
      %4802 = vmatprep.subr.bf16.mxu0 0
      %4803 = vmatpush1.bf16.msra.mxu0 0
      %4804 = vmatprep.subr.bf16.mxu0 0
      %4805 = vmatpush1.bf16.msra.mxu0 0
      %4806 = vmatprep.subr.bf16.mxu0 0
      %4807 = vmatpush1.bf16.msra.mxu0 0
      %4808 = vmatprep.subr.bf16.mxu0 0
      %4809 = vmatpush1.bf16.msra.mxu0 0
      %4810 = vmatprep.subr.bf16.mxu0 0
      %4811 = vmatpush1.bf16.msra.mxu0 0
      %4812 = vmatprep.subr.bf16.mxu0 %v4747
      %4813 = vmatpush1.bf16.msra.mxu0 %v4744
      %4814 = vmatprep.subr.bf16.mxu0 %v4620
      %4815 = vmatpush1.bf16.msra.mxu0 %v4619
      %4816 = vmatprep.subr.bf16.mxu0 %v4614
      %4817 = vmatpush1.bf16.msra.mxu0 %v4613
      %4818 = vmatprep.subr.bf16.mxu0 0
      %4819 = vmatpush2.bf16.msra.mxu0 0
      %4820 = vmatprep.subr.bf16.mxu0 0
      %4821 = vmatpush2.bf16.msra.mxu0 0
      %4822 = vmatprep.subr.bf16.mxu0 0
      %4823 = vmatpush2.bf16.msra.mxu0 0
      %4824 = vmatprep.subr.bf16.mxu0 0
      %4825 = vmatpush2.bf16.msra.mxu0 0
      %4826 = vmatprep.subr.bf16.mxu0 0
      %4827 = vmatpush2.bf16.msra.mxu0 0
      %4828 = vmatprep.subr.bf16.mxu0 0
      %4829 = vmatpush2.bf16.msra.mxu0 0
      %4830 = vmatprep.subr.bf16.mxu0 0
      %4831 = vmatpush2.bf16.msra.mxu0 0
      %4832 = vmatprep.subr.bf16.mxu0 0
      %4833 = vmatpush2.bf16.msra.mxu0 0
      %4834 = vmatprep.mubr.bf16.mxu0 0
      %4835 = vmatmul.mubr.bf16.gmra.mxu0 %v4740
      %v4836 = vpop.f32.mrf.mxu0
      %v4837 = vadd.f32 %v4796, %v4836
      %v4838 = vpop.f32.mrf.mxu0
      %v4839 = vadd.f32 %v4798, %v4838
      %v4840 = vpop.f32.mrf.mxu0
      %v4841 = vpop.f32.mrf.mxu0
      %4842 = vdwg.mxu0
      %4843 = vmatprep.subr.bf16.mxu0 %v4562
      %4844 = vmatpush1.bf16.msra.mxu0 %v4561
      %4845 = vmatprep.subr.bf16.mxu0 %v4556
      %4846 = vmatpush1.bf16.msra.mxu0 %v4555
      %4847 = vmatprep.subr.bf16.mxu0 %v4550
      %4848 = vmatpush1.bf16.msra.mxu0 %v4549
      %4849 = vmatprep.subr.bf16.mxu0 %v4544
      %4850 = vmatpush1.bf16.msra.mxu0 %v4543
      %4851 = vmatprep.subr.bf16.mxu0 %v4538
      %4852 = vmatpush1.bf16.msra.mxu0 %v4537
      %4853 = vmatprep.subr.bf16.mxu0 %v4532
      %4854 = vmatpush1.bf16.msra.mxu0 %v4531
      %4855 = vmatprep.subr.bf16.mxu0 %v4526
      %4856 = vmatpush1.bf16.msra.mxu0 %v4525
      %4857 = vmatprep.subr.bf16.mxu0 %v4520
      %4858 = vmatpush1.bf16.msra.mxu0 %v4519
      %4859 = vmatprep.subr.bf16.mxu0 %v4610
      %4860 = vmatpush2.bf16.msra.mxu0 %v4609
      %4861 = vmatprep.subr.bf16.mxu0 %v4604
      %4862 = vmatpush2.bf16.msra.mxu0 %v4603
      %4863 = vmatprep.subr.bf16.mxu0 %v4598
      %4864 = vmatpush2.bf16.msra.mxu0 %v4597
      %4865 = vmatprep.subr.bf16.mxu0 %v4592
      %4866 = vmatpush2.bf16.msra.mxu0 %v4591
      %4867 = vmatprep.subr.bf16.mxu0 %v4586
      %4868 = vmatpush2.bf16.msra.mxu0 %v4585
      %4869 = vmatprep.subr.bf16.mxu0 %v4580
      %4870 = vmatpush2.bf16.msra.mxu0 %v4579
      %4871 = vmatprep.subr.bf16.mxu0 %v4574
      %4872 = vmatpush2.bf16.msra.mxu0 %v4573
      %4873 = vmatprep.subr.bf16.mxu0 %v4568
      %4874 = vmatpush2.bf16.msra.mxu0 %v4567
      %4875 = vmatprep.mubr.bf16.mxu0 %v4171
      %4876 = vmatmul.mubr.bf16.gmra.mxu0 %v4170
      %v4877 = vpop.f32.mrf.mxu0
      %v4878 = vadd.f32 %v4082, %v4877
      %v4879 = vpop.f32.mrf.mxu0
      %v4880 = vadd.f32 %v4086, %v4879
      %v4881 = vpop.f32.mrf.mxu0
      %v4882 = vpop.f32.mrf.mxu0
      %4883 = vdwg.mxu0
      %4884 = vmatprep.subr.bf16.mxu0 0
      %4885 = vmatpush1.bf16.msra.mxu0 0
      %4886 = vmatprep.subr.bf16.mxu0 0
      %4887 = vmatpush1.bf16.msra.mxu0 0
      %4888 = vmatprep.subr.bf16.mxu0 0
      %4889 = vmatpush1.bf16.msra.mxu0 0
      %4890 = vmatprep.subr.bf16.mxu0 0
      %4891 = vmatpush1.bf16.msra.mxu0 0
      %4892 = vmatprep.subr.bf16.mxu0 0
      %4893 = vmatpush1.bf16.msra.mxu0 0
      %4894 = vmatprep.subr.bf16.mxu0 %v4753
      %4895 = vmatpush1.bf16.msra.mxu0 %v4750
      %4896 = vmatprep.subr.bf16.mxu0 %v4622
      %4897 = vmatpush1.bf16.msra.mxu0 %v4621
      %4898 = vmatprep.subr.bf16.mxu0 %v4616
      %4899 = vmatpush1.bf16.msra.mxu0 %v4615
      %4900 = vmatprep.subr.bf16.mxu0 0
      %4901 = vmatpush2.bf16.msra.mxu0 0
      %4902 = vmatprep.subr.bf16.mxu0 0
      %4903 = vmatpush2.bf16.msra.mxu0 0
      %4904 = vmatprep.subr.bf16.mxu0 0
      %4905 = vmatpush2.bf16.msra.mxu0 0
      %4906 = vmatprep.subr.bf16.mxu0 0
      %4907 = vmatpush2.bf16.msra.mxu0 0
      %4908 = vmatprep.subr.bf16.mxu0 0
      %4909 = vmatpush2.bf16.msra.mxu0 0
      %4910 = vmatprep.subr.bf16.mxu0 0
      %4911 = vmatpush2.bf16.msra.mxu0 0
      %4912 = vmatprep.subr.bf16.mxu0 0
      %4913 = vmatpush2.bf16.msra.mxu0 0
      %4914 = vmatprep.subr.bf16.mxu0 0
      %4915 = vmatpush2.bf16.msra.mxu0 0
      %4916 = vmatprep.mubr.bf16.mxu0 0
      %4917 = vmatmul.mubr.bf16.gmra.mxu0 %v4740
      %v4918 = vpop.f32.mrf.mxu0
      %v4919 = vadd.f32 %v4878, %v4918
      %v4920 = vpop.f32.mrf.mxu0
      %v4921 = vadd.f32 %v4880, %v4920
      %v4922 = vpop.f32.mrf.mxu0
      %v4923 = vpop.f32.mrf.mxu0
      %4924 = vdwg.mxu0
      %4925 = vmatprep.subr.bf16.mxu0 %v4564
      %4926 = vmatpush1.bf16.msra.mxu0 %v4563
      %4927 = vmatprep.subr.bf16.mxu0 %v4558
      %4928 = vmatpush1.bf16.msra.mxu0 %v4557
      %4929 = vmatprep.subr.bf16.mxu0 %v4552
      %4930 = vmatpush1.bf16.msra.mxu0 %v4551
      %4931 = vmatprep.subr.bf16.mxu0 %v4546
      %4932 = vmatpush1.bf16.msra.mxu0 %v4545
      %4933 = vmatprep.subr.bf16.mxu0 %v4540
      %4934 = vmatpush1.bf16.msra.mxu0 %v4539
      %4935 = vmatprep.subr.bf16.mxu0 %v4534
      %4936 = vmatpush1.bf16.msra.mxu0 %v4533
      %4937 = vmatprep.subr.bf16.mxu0 %v4528
      %4938 = vmatpush1.bf16.msra.mxu0 %v4527
      %4939 = vmatprep.subr.bf16.mxu0 %v4522
      %4940 = vmatpush1.bf16.msra.mxu0 %v4521
      %4941 = vmatprep.subr.bf16.mxu0 %v4612
      %4942 = vmatpush2.bf16.msra.mxu0 %v4611
      %4943 = vmatprep.subr.bf16.mxu0 %v4606
      %4944 = vmatpush2.bf16.msra.mxu0 %v4605
      %4945 = vmatprep.subr.bf16.mxu0 %v4600
      %4946 = vmatpush2.bf16.msra.mxu0 %v4599
      %4947 = vmatprep.subr.bf16.mxu0 %v4594
      %4948 = vmatpush2.bf16.msra.mxu0 %v4593
      %4949 = vmatprep.subr.bf16.mxu0 %v4588
      %4950 = vmatpush2.bf16.msra.mxu0 %v4587
      %4951 = vmatprep.subr.bf16.mxu0 %v4582
      %4952 = vmatpush2.bf16.msra.mxu0 %v4581
      %4953 = vmatprep.subr.bf16.mxu0 %v4576
      %4954 = vmatpush2.bf16.msra.mxu0 %v4575
      %4955 = vmatprep.subr.bf16.mxu0 %v4570
      %4956 = vmatpush2.bf16.msra.mxu0 %v4569
      %4957 = vmatprep.mubr.bf16.mxu0 %v4171
      %4958 = vmatmul.mubr.bf16.gmra.mxu0 %v4170
      %v4959 = vpop.f32.mrf.mxu0
      %v4960 = vadd.f32 %v4090, %v4959
      %v4961 = vpop.f32.mrf.mxu0
      %v4962 = vadd.f32 %v4094, %v4961
      %v4963 = vpop.f32.mrf.mxu0
      %v4964 = vpop.f32.mrf.mxu0
      %4965 = vdwg.mxu0
      %4966 = vmatprep.subr.bf16.mxu0 0
      %4967 = vmatpush1.bf16.msra.mxu0 0
      %4968 = vmatprep.subr.bf16.mxu0 0
      %4969 = vmatpush1.bf16.msra.mxu0 0
      %4970 = vmatprep.subr.bf16.mxu0 0
      %4971 = vmatpush1.bf16.msra.mxu0 0
      %4972 = vmatprep.subr.bf16.mxu0 0
      %4973 = vmatpush1.bf16.msra.mxu0 0
      %4974 = vmatprep.subr.bf16.mxu0 0
      %4975 = vmatpush1.bf16.msra.mxu0 0
      %4976 = vmatprep.subr.bf16.mxu0 %v4759
      %4977 = vmatpush1.bf16.msra.mxu0 %v4756
      %4978 = vmatprep.subr.bf16.mxu0 %v4624
      %4979 = vmatpush1.bf16.msra.mxu0 %v4623
      %4980 = vmatprep.subr.bf16.mxu0 %v4618
      %4981 = vmatpush1.bf16.msra.mxu0 %v4617
      %4982 = vmatprep.subr.bf16.mxu0 0
      %4983 = vmatpush2.bf16.msra.mxu0 0
      %4984 = vmatprep.subr.bf16.mxu0 0
      %4985 = vmatpush2.bf16.msra.mxu0 0
      %4986 = vmatprep.subr.bf16.mxu0 0
      %4987 = vmatpush2.bf16.msra.mxu0 0
      %4988 = vmatprep.subr.bf16.mxu0 0
      %4989 = vmatpush2.bf16.msra.mxu0 0
      %4990 = vmatprep.subr.bf16.mxu0 0
      %4991 = vmatpush2.bf16.msra.mxu0 0
      %4992 = vmatprep.subr.bf16.mxu0 0
      %4993 = vmatpush2.bf16.msra.mxu0 0
      %4994 = vmatprep.subr.bf16.mxu0 0
      %4995 = vmatpush2.bf16.msra.mxu0 0
      %4996 = vmatprep.subr.bf16.mxu0 0
      %4997 = vmatpush2.bf16.msra.mxu0 0
      %4998 = vmatprep.mubr.bf16.mxu0 0
      %4999 = vmatmul.mubr.bf16.gmra.mxu0 %v4740
      %v5000 = vpop.f32.mrf.mxu0
      %v5001 = vadd.f32 %v4960, %v5000
      %v5002 = vpop.f32.mrf.mxu0
      %v5003 = vadd.f32 %v4962, %v5002
      %v5004 = vpop.f32.mrf.mxu0
      %v5005 = vpop.f32.mrf.mxu0
      %5006 = vdwg.mxu0
      %v5007 = vld [vmem:[#allocation15] sm:$0x3f]
      %v5009 = vlaneseq
      %v5010 = vshrl.u32 %v5009, 7
      %v5011 = vsub.s32 0, %v5010
      %v5012 = vrot.slane %v5007, %v5011
      %v5013 = vlaneseq
      %v5014 = vshrl.u32 %v5013, 7
      %v5015 = vsub.s32 1, %v5014
      %v5016 = vrot.slane %v5007, %v5015
      %v5017 = vlaneseq
      %v5018 = vshrl.u32 %v5017, 7
      %v5019 = vsub.s32 2, %v5018
      %v5020 = vrot.slane %v5007, %v5019
      %v5021 = vlaneseq
      %v5022 = vshrl.u32 %v5021, 7
      %v5023 = vsub.s32 3, %v5022
      %v5024 = vrot.slane %v5007, %v5023
      %v5025 = vlaneseq
      %v5026 = vshrl.u32 %v5025, 7
      %v5027 = vsub.s32 4, %v5026
      %v5028 = vrot.slane %v5007, %v5027
      %v5029 = vlaneseq
      %v5030 = vshrl.u32 %v5029, 7
      %v5031 = vsub.s32 5, %v5030
      %v5032 = vrot.slane %v5007, %v5031
      %v5039 = vmul.f32 %v3597, %v5012
      %v5040 = vmul.f32 %v3599, %v5016
      %v5041 = vmul.f32 %v3761, %v5020
      %v5042 = vmul.f32 %v3763, %v5024
      %v5043 = vmul.f32 %v3925, %v5028
      %v5044 = vmul.f32 %v3927, %v5032
      %v5045 = vadd.f32 %v5039, %v5040
      %v5046 = vadd.f32 %v5045, %v5041
      %v5047 = vadd.f32 %v5046, %v5042
      %v5048 = vadd.f32 %v5047, %v5043
      %v5049 = vadd.f32 %v5048, %v5044
      %5050 = vadd.xlane.f32.xlu0 %v5049
      %v5051 = vpop.xlane.xlu0 %5050
      %v5052 = vld [vmem:[#allocation16] sm:$0x3f]
      %v5054 = vlaneseq
      %v5055 = vshrl.u32 %v5054, 7
      %v5056 = vsub.s32 0, %v5055
      %v5057 = vrot.slane %v5052, %v5056
      %v5058 = vlaneseq
      %v5059 = vshrl.u32 %v5058, 7
      %v5060 = vsub.s32 1, %v5059
      %v5061 = vrot.slane %v5052, %v5060
      %v5062 = vlaneseq
      %v5063 = vshrl.u32 %v5062, 7
      %v5064 = vsub.s32 2, %v5063
      %v5065 = vrot.slane %v5052, %v5064
      %v5066 = vlaneseq
      %v5067 = vshrl.u32 %v5066, 7
      %v5068 = vsub.s32 3, %v5067
      %v5069 = vrot.slane %v5052, %v5068
      %v5070 = vlaneseq
      %v5071 = vshrl.u32 %v5070, 7
      %v5072 = vsub.s32 4, %v5071
      %v5073 = vrot.slane %v5052, %v5072
      %v5074 = vlaneseq
      %v5075 = vshrl.u32 %v5074, 7
      %v5076 = vsub.s32 5, %v5075
      %v5077 = vrot.slane %v5052, %v5076
      %v5084 = vmul.f32 %v4837, %v5057
      %v5085 = vmul.f32 %v4839, %v5061
      %v5086 = vmul.f32 %v4919, %v5065
      %v5087 = vmul.f32 %v4921, %v5069
      %v5088 = vmul.f32 %v5001, %v5073
      %v5089 = vmul.f32 %v5003, %v5077
      %v5090 = vadd.f32 %v5084, %v5085
      %v5091 = vadd.f32 %v5090, %v5086
      %v5092 = vadd.f32 %v5091, %v5087
      %v5093 = vadd.f32 %v5092, %v5088
      %v5094 = vadd.f32 %v5093, %v5089
      %5095 = vadd.xlane.f32.xlu0 %v5094
      %v5096 = vpop.xlane.xlu0 %5095
      %v5097 = vadd.f32 %v5051, %v5096
      %v5098 = vld [vmem:[#allocation3] sm:$0x1]
      %v5100 = vlaneseq
      %v5101 = vshrl.u32 %v5100, 7
      %v5102 = vsub.s32 0, %v5101
      %v5103 = vrot.slane %v5098, %v5102
      %v5105 = vadd.f32 %v5097, %v5103
      %v5106 = vxor.u32 %v5105, 2147483648
      %v5107 = vmul.f32 %v5106, 1.442695
      %v5108 = vpow.pop %v5107
      %v5109 = vadd.f32 %v5108, 1.0
      %v5110 = vrcp.pop %v5109
      %v5111 = vmul.f32 1.0, %v5110
      %5113 = vset.pattern.permute.xlu0 0
      %5114 = vperm.xlu0 %5113, %v5111
      %v5115 = vpop.permute.xlu0 %5114
      %v5117 = vmul.f32 %v5115, %v3597
      %v5118 = vmul.f32 %v5115, %v3599
      %v5119 = vmul.f32 %v5115, %v3761
      %v5120 = vmul.f32 %v5115, %v3763
      %v5121 = vmul.f32 %v5115, %v3925
      %v5122 = vmul.f32 %v5115, %v3927
      %v5123 = vsub.f32 1.0, %v5111
      %5125 = vset.pattern.permute.xlu0 0
      %5126 = vperm.xlu0 %5125, %v5123
      %v5127 = vpop.permute.xlu0 %5126
      %v5129 = vmul.f32 %v5127, %v4837
      %v5130 = vmul.f32 %v5127, %v4839
      %v5131 = vmul.f32 %v5127, %v4919
      %v5132 = vmul.f32 %v5127, %v4921
      %v5133 = vmul.f32 %v5127, %v5001
      %v5134 = vmul.f32 %v5127, %v5003
      %v5135 = vadd.f32 %v5117, %v5129
      %v5136 = vadd.f32 %v5118, %v5130
      %v5137 = vadd.f32 %v5119, %v5131
      %v5138 = vadd.f32 %v5120, %v5132
      %v5139 = vadd.f32 %v5121, %v5133
      %v5140 = vadd.f32 %v5122, %v5134
      %v5141 = vpack.c.bf16 %v5135, %v5135
      %v5142 = vpack.c.bf16 %v5136, %v5136
      %v5143 = vpack.c.bf16 %v5137, %v5137
      %v5144 = vpack.c.bf16 %v5138, %v5138
      %v5145 = vpack.c.bf16 %v5139, %v5139
      %v5146 = vpack.c.bf16 %v5140, %v5140
      %v5147 = vld [vmem:[#allocation18] sm:$0xff]
      %v5148 = vld [vmem:[#allocation18 + $0x8] sm:$0xff]
      %v5149 = vld [vmem:[#allocation18 + $0x10] sm:$0xff]
      %v5150 = vld [vmem:[#allocation18 + $0x18] sm:$0xff]
      %v5151 = vld [vmem:[#allocation18 + $0x20] sm:$0xff]
      %v5152 = vld [vmem:[#allocation18 + $0x28] sm:$0xff]
      %v5153 = vld [vmem:[#allocation18 + $0x30] sm:$0xff]
      %v5154 = vld [vmem:[#allocation18 + $0x38] sm:$0xff]
      %v5155 = vld [vmem:[#allocation18 + $0x40] sm:$0xff]
      %v5156 = vld [vmem:[#allocation18 + $0x48] sm:$0xff]
      %v5157 = vld [vmem:[#allocation18 + $0x50] sm:$0xff]
      %v5158 = vld [vmem:[#allocation18 + $0x58] sm:$0xff]
      %v5159 = vld [vmem:[#allocation18 + $0x60] sm:$0xff]
      %v5160 = vld [vmem:[#allocation18 + $0x68] sm:$0xff]
      %v5161 = vld [vmem:[#allocation18 + $0x70] sm:$0xff]
      %v5162 = vld [vmem:[#allocation18 + $0x78] sm:$0xff]
      %v5163 = vld [vmem:[#allocation18 + $0x80] sm:$0xff]
      %v5164 = vld [vmem:[#allocation18 + $0x88] sm:$0xff]
      %v5165 = vld [vmem:[#allocation18 + $0x90] sm:$0xff]
      %v5166 = vld [vmem:[#allocation18 + $0x98] sm:$0xff]
      %v5167 = vld [vmem:[#allocation18 + $0xa0] sm:$0xff]
      %v5168 = vld [vmem:[#allocation18 + $0xa8] sm:$0xff]
      %v5169 = vld [vmem:[#allocation18 + $0xb0] sm:$0xff]
      %v5170 = vld [vmem:[#allocation18 + $0xb8] sm:$0xff]
      %v5171 = vld [vmem:[#allocation18 + $0xc0] sm:$0xff]
      %v5172 = vld [vmem:[#allocation18 + $0xc8] sm:$0xff]
      %v5173 = vld [vmem:[#allocation18 + $0xd0] sm:$0xff]
      %v5174 = vld [vmem:[#allocation18 + $0xd8] sm:$0xff]
      %v5175 = vld [vmem:[#allocation18 + $0xe0] sm:$0xff]
      %v5176 = vld [vmem:[#allocation18 + $0xe8] sm:$0xff]
      %v5177 = vld [vmem:[#allocation18 + $0xf0] sm:$0xff]
      %v5178 = vld [vmem:[#allocation18 + $0xf8] sm:$0xff]
      %v5179 = vld [vmem:[#allocation18 + $0x100] sm:$0xff]
      %v5180 = vld [vmem:[#allocation18 + $0x108] sm:$0xff]
      %v5181 = vld [vmem:[#allocation18 + $0x110] sm:$0xff]
      %v5182 = vld [vmem:[#allocation18 + $0x118] sm:$0xff]
      %v5183 = vld [vmem:[#allocation18 + $0x120] sm:$0xff]
      %v5184 = vld [vmem:[#allocation18 + $0x128] sm:$0xff]
      %v5185 = vld [vmem:[#allocation18 + $0x130] sm:$0xff]
      %v5186 = vld [vmem:[#allocation18 + $0x138] sm:$0xff]
      %v5187 = vld [vmem:[#allocation18 + $0x140] sm:$0xff]
      %v5188 = vld [vmem:[#allocation18 + $0x148] sm:$0xff]
      %v5189 = vld [vmem:[#allocation18 + $0x150] sm:$0xff]
      %v5190 = vld [vmem:[#allocation18 + $0x158] sm:$0xff]
      %v5191 = vld [vmem:[#allocation18 + $0x160] sm:$0xff]
      %v5192 = vld [vmem:[#allocation18 + $0x168] sm:$0xff]
      %v5193 = vld [vmem:[#allocation18 + $0x170] sm:$0xff]
      %v5194 = vld [vmem:[#allocation18 + $0x178] sm:$0xff]
      %v5195 = vld [vmem:[#allocation18 + $0x180] sm:$0xff]
      %v5196 = vld [vmem:[#allocation18 + $0x188] sm:$0xff]
      %v5197 = vld [vmem:[#allocation18 + $0x190] sm:$0xff]
      %v5198 = vld [vmem:[#allocation18 + $0x198] sm:$0xff]
      %v5199 = vld [vmem:[#allocation18 + $0x1a0] sm:$0xff]
      %v5200 = vld [vmem:[#allocation18 + $0x1a8] sm:$0xff]
      %v5201 = vld [vmem:[#allocation18 + $0x1b0] sm:$0xff]
      %v5202 = vld [vmem:[#allocation18 + $0x1b8] sm:$0xff]
      %v5203 = vld [vmem:[#allocation18 + $0x1c0] sm:$0xff]
      %v5204 = vld [vmem:[#allocation18 + $0x1c8] sm:$0xff]
      %v5205 = vld [vmem:[#allocation18 + $0x1d0] sm:$0xff]
      %v5206 = vld [vmem:[#allocation18 + $0x1d8] sm:$0xff]
      %v5207 = vld [vmem:[#allocation18 + $0x1e0] sm:$0xff]
      %v5208 = vld [vmem:[#allocation18 + $0x1e8] sm:$0xff]
      %v5209 = vld [vmem:[#allocation18 + $0x1f0] sm:$0xff]
      %v5210 = vld [vmem:[#allocation18 + $0x1f8] sm:$0xff]
      %v5211 = vld [vmem:[#allocation18 + $0x200] sm:$0xff]
      %v5212 = vld [vmem:[#allocation18 + $0x208] sm:$0xff]
      %v5213 = vld [vmem:[#allocation18 + $0x210] sm:$0xff]
      %v5214 = vld [vmem:[#allocation18 + $0x218] sm:$0xff]
      %v5215 = vld [vmem:[#allocation18 + $0x220] sm:$0xff]
      %v5216 = vld [vmem:[#allocation18 + $0x228] sm:$0xff]
      %v5217 = vld [vmem:[#allocation18 + $0x230] sm:$0xff]
      %v5218 = vld [vmem:[#allocation18 + $0x238] sm:$0xff]
      %v5219 = vld [vmem:[#allocation18 + $0x240] sm:$0xff]
      %v5220 = vld [vmem:[#allocation18 + $0x248] sm:$0xff]
      %v5221 = vld [vmem:[#allocation18 + $0x250] sm:$0xff]
      %v5222 = vld [vmem:[#allocation18 + $0x258] sm:$0xff]
      %v5223 = vld [vmem:[#allocation18 + $0x260] sm:$0xff]
      %v5224 = vld [vmem:[#allocation18 + $0x268] sm:$0xff]
      %v5225 = vld [vmem:[#allocation18 + $0x270] sm:$0xff]
      %v5226 = vld [vmem:[#allocation18 + $0x278] sm:$0xff]
      %v5227 = vld [vmem:[#allocation18 + $0x280] sm:$0xff]
      %v5228 = vld [vmem:[#allocation18 + $0x288] sm:$0xff]
      %v5229 = vld [vmem:[#allocation18 + $0x290] sm:$0xff]
      %v5230 = vld [vmem:[#allocation18 + $0x298] sm:$0xff]
      %v5231 = vld [vmem:[#allocation18 + $0x2a0] sm:$0xff]
      %v5232 = vld [vmem:[#allocation18 + $0x2a8] sm:$0xff]
      %v5233 = vld [vmem:[#allocation18 + $0x2b0] sm:$0xff]
      %v5234 = vld [vmem:[#allocation18 + $0x2b8] sm:$0xff]
      %v5235 = vld [vmem:[#allocation18 + $0x2c0] sm:$0xff]
      %v5236 = vld [vmem:[#allocation18 + $0x2c8] sm:$0xff]
      %v5237 = vld [vmem:[#allocation18 + $0x2d0] sm:$0xff]
      %v5238 = vld [vmem:[#allocation18 + $0x2d8] sm:$0xff]
      %v5239 = vld [vmem:[#allocation18 + $0x2e0] sm:$0xff]
      %v5240 = vld [vmem:[#allocation18 + $0x2e8] sm:$0xff]
      %v5241 = vld [vmem:[#allocation18 + $0x2f0] sm:$0xff]
      %v5242 = vld [vmem:[#allocation18 + $0x2f8] sm:$0xff]
      %v5243 = vld [vmem:[#allocation19] sm:$0x3]
      %v5245 = vlaneseq
      %v5246 = vshrl.u32 %v5245, 7
      %v5247 = vsub.s32 0, %v5246
      %v5248 = vrot.slane %v5243, %v5247
      %v5249 = vlaneseq
      %v5250 = vshrl.u32 %v5249, 7
      %v5251 = vsub.s32 1, %v5250
      %v5252 = vrot.slane %v5243, %v5251
      %v5351 = vunpack.c.l.b16 %v5147
      %v5352 = vunpack.c.h.b16 %v5147
      %v5353 = vunpack.c.l.b16 %v5148
      %v5354 = vunpack.c.h.b16 %v5148
      %v5355 = vunpack.c.l.b16 %v5149
      %v5356 = vunpack.c.h.b16 %v5149
      %v5357 = vunpack.c.l.b16 %v5150
      %v5358 = vunpack.c.h.b16 %v5150
      %v5359 = vunpack.c.l.b16 %v5151
      %v5360 = vunpack.c.h.b16 %v5151
      %v5361 = vunpack.c.l.b16 %v5152
      %v5362 = vunpack.c.h.b16 %v5152
      %v5363 = vunpack.c.l.b16 %v5153
      %v5364 = vunpack.c.h.b16 %v5153
      %v5365 = vunpack.c.l.b16 %v5154
      %v5366 = vunpack.c.h.b16 %v5154
      %v5367 = vunpack.c.l.b16 %v5155
      %v5368 = vunpack.c.h.b16 %v5155
      %v5369 = vunpack.c.l.b16 %v5156
      %v5370 = vunpack.c.h.b16 %v5156
      %v5371 = vunpack.c.l.b16 %v5157
      %v5372 = vunpack.c.h.b16 %v5157
      %v5373 = vunpack.c.l.b16 %v5158
      %v5374 = vunpack.c.h.b16 %v5158
      %v5375 = vunpack.c.l.b16 %v5159
      %v5376 = vunpack.c.h.b16 %v5159
      %v5377 = vunpack.c.l.b16 %v5160
      %v5378 = vunpack.c.h.b16 %v5160
      %v5379 = vunpack.c.l.b16 %v5161
      %v5380 = vunpack.c.h.b16 %v5161
      %v5381 = vunpack.c.l.b16 %v5162
      %v5382 = vunpack.c.h.b16 %v5162
      %v5383 = vunpack.c.l.b16 %v5163
      %v5384 = vunpack.c.h.b16 %v5163
      %v5385 = vunpack.c.l.b16 %v5164
      %v5386 = vunpack.c.h.b16 %v5164
      %v5387 = vunpack.c.l.b16 %v5165
      %v5388 = vunpack.c.h.b16 %v5165
      %v5389 = vunpack.c.l.b16 %v5166
      %v5390 = vunpack.c.h.b16 %v5166
      %v5391 = vunpack.c.l.b16 %v5167
      %v5392 = vunpack.c.h.b16 %v5167
      %v5393 = vunpack.c.l.b16 %v5168
      %v5394 = vunpack.c.h.b16 %v5168
      %v5395 = vunpack.c.l.b16 %v5169
      %v5396 = vunpack.c.h.b16 %v5169
      %v5397 = vunpack.c.l.b16 %v5170
      %v5398 = vunpack.c.h.b16 %v5170
      %v5399 = vunpack.c.l.b16 %v5171
      %v5400 = vunpack.c.h.b16 %v5171
      %v5401 = vunpack.c.l.b16 %v5172
      %v5402 = vunpack.c.h.b16 %v5172
      %v5403 = vunpack.c.l.b16 %v5173
      %v5404 = vunpack.c.h.b16 %v5173
      %v5405 = vunpack.c.l.b16 %v5174
      %v5406 = vunpack.c.h.b16 %v5174
      %v5407 = vunpack.c.l.b16 %v5175
      %v5408 = vunpack.c.h.b16 %v5175
      %v5409 = vunpack.c.l.b16 %v5176
      %v5410 = vunpack.c.h.b16 %v5176
      %v5411 = vunpack.c.l.b16 %v5177
      %v5412 = vunpack.c.h.b16 %v5177
      %v5413 = vunpack.c.l.b16 %v5178
      %v5414 = vunpack.c.h.b16 %v5178
      %v5415 = vunpack.c.l.b16 %v5179
      %v5416 = vunpack.c.h.b16 %v5179
      %v5417 = vunpack.c.l.b16 %v5180
      %v5418 = vunpack.c.h.b16 %v5180
      %v5419 = vunpack.c.l.b16 %v5181
      %v5420 = vunpack.c.h.b16 %v5181
      %v5421 = vunpack.c.l.b16 %v5182
      %v5422 = vunpack.c.h.b16 %v5182
      %v5423 = vunpack.c.l.b16 %v5183
      %v5424 = vunpack.c.h.b16 %v5183
      %v5425 = vunpack.c.l.b16 %v5184
      %v5426 = vunpack.c.h.b16 %v5184
      %v5427 = vunpack.c.l.b16 %v5185
      %v5428 = vunpack.c.h.b16 %v5185
      %v5429 = vunpack.c.l.b16 %v5186
      %v5430 = vunpack.c.h.b16 %v5186
      %v5431 = vunpack.c.l.b16 %v5187
      %v5432 = vunpack.c.h.b16 %v5187
      %v5433 = vunpack.c.l.b16 %v5188
      %v5434 = vunpack.c.h.b16 %v5188
      %v5435 = vunpack.c.l.b16 %v5189
      %v5436 = vunpack.c.h.b16 %v5189
      %v5437 = vunpack.c.l.b16 %v5190
      %v5438 = vunpack.c.h.b16 %v5190
      %v5439 = vunpack.c.l.b16 %v5191
      %v5440 = vunpack.c.h.b16 %v5191
      %v5441 = vunpack.c.l.b16 %v5192
      %v5442 = vunpack.c.h.b16 %v5192
      %v5443 = vunpack.c.l.b16 %v5193
      %v5444 = vunpack.c.h.b16 %v5193
      %v5445 = vunpack.c.l.b16 %v5194
      %v5446 = vunpack.c.h.b16 %v5194
      %v5447 = vunpack.c.l.b16 %v5195
      %v5448 = vunpack.c.h.b16 %v5195
      %v5449 = vunpack.c.l.b16 %v5196
      %v5450 = vunpack.c.h.b16 %v5196
      %v5451 = vunpack.c.l.b16 %v5197
      %v5452 = vunpack.c.h.b16 %v5197
      %v5453 = vunpack.c.l.b16 %v5198
      %v5454 = vunpack.c.h.b16 %v5198
      %v5455 = vunpack.c.l.b16 %v5199
      %v5456 = vunpack.c.h.b16 %v5199
      %v5457 = vunpack.c.l.b16 %v5200
      %v5458 = vunpack.c.h.b16 %v5200
      %v5459 = vunpack.c.l.b16 %v5201
      %v5460 = vunpack.c.h.b16 %v5201
      %v5461 = vunpack.c.l.b16 %v5202
      %v5462 = vunpack.c.h.b16 %v5202
      %v5463 = vunpack.c.l.b16 %v5203
      %v5464 = vunpack.c.h.b16 %v5203
      %v5465 = vunpack.c.l.b16 %v5204
      %v5466 = vunpack.c.h.b16 %v5204
      %v5467 = vunpack.c.l.b16 %v5205
      %v5468 = vunpack.c.h.b16 %v5205
      %v5469 = vunpack.c.l.b16 %v5206
      %v5470 = vunpack.c.h.b16 %v5206
      %v5471 = vunpack.c.l.b16 %v5207
      %v5472 = vunpack.c.h.b16 %v5207
      %v5473 = vunpack.c.l.b16 %v5208
      %v5474 = vunpack.c.h.b16 %v5208
      %v5475 = vunpack.c.l.b16 %v5209
      %v5476 = vunpack.c.h.b16 %v5209
      %v5477 = vunpack.c.l.b16 %v5210
      %v5478 = vunpack.c.h.b16 %v5210
      %v5479 = vunpack.c.l.b16 %v5211
      %v5480 = vunpack.c.h.b16 %v5211
      %v5481 = vunpack.c.l.b16 %v5212
      %v5482 = vunpack.c.h.b16 %v5212
      %v5483 = vunpack.c.l.b16 %v5213
      %v5484 = vunpack.c.h.b16 %v5213
      %v5485 = vunpack.c.l.b16 %v5214
      %v5486 = vunpack.c.h.b16 %v5214
      %v5487 = vunpack.c.l.b16 %v5215
      %v5488 = vunpack.c.h.b16 %v5215
      %v5489 = vunpack.c.l.b16 %v5216
      %v5490 = vunpack.c.h.b16 %v5216
      %v5491 = vunpack.c.l.b16 %v5217
      %v5492 = vunpack.c.h.b16 %v5217
      %v5493 = vunpack.c.l.b16 %v5218
      %v5494 = vunpack.c.h.b16 %v5218
      %v5495 = vunpack.c.l.b16 %v5219
      %v5496 = vunpack.c.h.b16 %v5219
      %v5497 = vunpack.c.l.b16 %v5220
      %v5498 = vunpack.c.h.b16 %v5220
      %v5499 = vunpack.c.l.b16 %v5221
      %v5500 = vunpack.c.h.b16 %v5221
      %v5501 = vunpack.c.l.b16 %v5222
      %v5502 = vunpack.c.h.b16 %v5222
      %v5503 = vunpack.c.l.b16 %v5223
      %v5504 = vunpack.c.h.b16 %v5223
      %v5505 = vunpack.c.l.b16 %v5224
      %v5506 = vunpack.c.h.b16 %v5224
      %v5507 = vunpack.c.l.b16 %v5225
      %v5508 = vunpack.c.h.b16 %v5225
      %v5509 = vunpack.c.l.b16 %v5226
      %v5510 = vunpack.c.h.b16 %v5226
      %v5511 = vunpack.c.l.b16 %v5227
      %v5512 = vunpack.c.h.b16 %v5227
      %v5513 = vunpack.c.l.b16 %v5228
      %v5514 = vunpack.c.h.b16 %v5228
      %v5515 = vunpack.c.l.b16 %v5229
      %v5516 = vunpack.c.h.b16 %v5229
      %v5517 = vunpack.c.l.b16 %v5230
      %v5518 = vunpack.c.h.b16 %v5230
      %v5519 = vunpack.c.l.b16 %v5231
      %v5520 = vunpack.c.h.b16 %v5231
      %v5521 = vunpack.c.l.b16 %v5232
      %v5522 = vunpack.c.h.b16 %v5232
      %v5523 = vunpack.c.l.b16 %v5233
      %v5524 = vunpack.c.h.b16 %v5233
      %v5525 = vunpack.c.l.b16 %v5234
      %v5526 = vunpack.c.h.b16 %v5234
      %v5527 = vunpack.c.l.b16 %v5235
      %v5528 = vunpack.c.h.b16 %v5235
      %v5529 = vunpack.c.l.b16 %v5236
      %v5530 = vunpack.c.h.b16 %v5236
      %v5531 = vunpack.c.l.b16 %v5237
      %v5532 = vunpack.c.h.b16 %v5237
      %v5533 = vunpack.c.l.b16 %v5238
      %v5534 = vunpack.c.h.b16 %v5238
      %v5535 = vunpack.c.l.b16 %v5239
      %v5536 = vunpack.c.h.b16 %v5239
      %v5537 = vunpack.c.l.b16 %v5240
      %v5538 = vunpack.c.h.b16 %v5240
      %v5539 = vunpack.c.l.b16 %v5241
      %v5540 = vunpack.c.h.b16 %v5241
      %v5541 = vunpack.c.l.b16 %v5242
      %v5542 = vunpack.c.h.b16 %v5242
      %v5543 = vpack.c.b16 %v5353, %v5351
      %v5544 = vpack.c.b16 %v5354, %v5352
      %v5545 = vpack.c.b16 %v5357, %v5355
      %v5546 = vpack.c.b16 %v5358, %v5356
      %v5547 = vpack.c.b16 %v5361, %v5359
      %v5548 = vpack.c.b16 %v5362, %v5360
      %v5549 = vpack.c.b16 %v5365, %v5363
      %v5550 = vpack.c.b16 %v5366, %v5364
      %v5551 = vpack.c.b16 %v5369, %v5367
      %v5552 = vpack.c.b16 %v5370, %v5368
      %v5553 = vpack.c.b16 %v5373, %v5371
      %v5554 = vpack.c.b16 %v5374, %v5372
      %v5555 = vpack.c.b16 %v5377, %v5375
      %v5556 = vpack.c.b16 %v5378, %v5376
      %v5557 = vpack.c.b16 %v5381, %v5379
      %v5558 = vpack.c.b16 %v5382, %v5380
      %v5559 = vpack.c.b16 %v5385, %v5383
      %v5560 = vpack.c.b16 %v5386, %v5384
      %v5561 = vpack.c.b16 %v5389, %v5387
      %v5562 = vpack.c.b16 %v5390, %v5388
      %v5563 = vpack.c.b16 %v5393, %v5391
      %v5564 = vpack.c.b16 %v5394, %v5392
      %v5565 = vpack.c.b16 %v5397, %v5395
      %v5566 = vpack.c.b16 %v5398, %v5396
      %v5567 = vpack.c.b16 %v5401, %v5399
      %v5568 = vpack.c.b16 %v5402, %v5400
      %v5569 = vpack.c.b16 %v5405, %v5403
      %v5570 = vpack.c.b16 %v5406, %v5404
      %v5571 = vpack.c.b16 %v5409, %v5407
      %v5572 = vpack.c.b16 %v5410, %v5408
      %v5573 = vpack.c.b16 %v5413, %v5411
      %v5574 = vpack.c.b16 %v5414, %v5412
      %v5575 = vpack.c.b16 %v5417, %v5415
      %v5576 = vpack.c.b16 %v5418, %v5416
      %v5577 = vpack.c.b16 %v5421, %v5419
      %v5578 = vpack.c.b16 %v5422, %v5420
      %v5579 = vpack.c.b16 %v5425, %v5423
      %v5580 = vpack.c.b16 %v5426, %v5424
      %v5581 = vpack.c.b16 %v5429, %v5427
      %v5582 = vpack.c.b16 %v5430, %v5428
      %v5583 = vpack.c.b16 %v5433, %v5431
      %v5584 = vpack.c.b16 %v5434, %v5432
      %v5585 = vpack.c.b16 %v5437, %v5435
      %v5586 = vpack.c.b16 %v5438, %v5436
      %v5587 = vpack.c.b16 %v5441, %v5439
      %v5588 = vpack.c.b16 %v5442, %v5440
      %v5589 = vpack.c.b16 %v5445, %v5443
      %v5590 = vpack.c.b16 %v5446, %v5444
      %v5591 = vpack.c.b16 %v5449, %v5447
      %v5592 = vpack.c.b16 %v5450, %v5448
      %v5593 = vpack.c.b16 %v5453, %v5451
      %v5594 = vpack.c.b16 %v5454, %v5452
      %v5595 = vpack.c.b16 %v5457, %v5455
      %v5596 = vpack.c.b16 %v5458, %v5456
      %v5597 = vpack.c.b16 %v5461, %v5459
      %v5598 = vpack.c.b16 %v5462, %v5460
      %v5599 = vpack.c.b16 %v5465, %v5463
      %v5600 = vpack.c.b16 %v5466, %v5464
      %v5601 = vpack.c.b16 %v5469, %v5467
      %v5602 = vpack.c.b16 %v5470, %v5468
      %v5603 = vpack.c.b16 %v5473, %v5471
      %v5604 = vpack.c.b16 %v5474, %v5472
      %v5605 = vpack.c.b16 %v5477, %v5475
      %v5606 = vpack.c.b16 %v5478, %v5476
      %v5607 = vpack.c.b16 %v5481, %v5479
      %v5608 = vpack.c.b16 %v5482, %v5480
      %v5609 = vpack.c.b16 %v5485, %v5483
      %v5610 = vpack.c.b16 %v5486, %v5484
      %v5611 = vpack.c.b16 %v5489, %v5487
      %v5612 = vpack.c.b16 %v5490, %v5488
      %v5613 = vpack.c.b16 %v5493, %v5491
      %v5614 = vpack.c.b16 %v5494, %v5492
      %v5615 = vpack.c.b16 %v5497, %v5495
      %v5616 = vpack.c.b16 %v5498, %v5496
      %v5617 = vpack.c.b16 %v5501, %v5499
      %v5618 = vpack.c.b16 %v5502, %v5500
      %v5619 = vpack.c.b16 %v5505, %v5503
      %v5620 = vpack.c.b16 %v5506, %v5504
      %v5621 = vpack.c.b16 %v5509, %v5507
      %v5622 = vpack.c.b16 %v5510, %v5508
      %v5623 = vpack.c.b16 %v5513, %v5511
      %v5624 = vpack.c.b16 %v5514, %v5512
      %v5625 = vpack.c.b16 %v5517, %v5515
      %v5626 = vpack.c.b16 %v5518, %v5516
      %v5627 = vpack.c.b16 %v5521, %v5519
      %v5628 = vpack.c.b16 %v5522, %v5520
      %v5629 = vpack.c.b16 %v5525, %v5523
      %v5630 = vpack.c.b16 %v5526, %v5524
      %v5631 = vpack.c.b16 %v5529, %v5527
      %v5632 = vpack.c.b16 %v5530, %v5528
      %v5633 = vpack.c.b16 %v5533, %v5531
      %v5634 = vpack.c.b16 %v5534, %v5532
      %v5635 = vpack.c.b16 %v5537, %v5535
      %v5636 = vpack.c.b16 %v5538, %v5536
      %v5637 = vpack.c.b16 %v5541, %v5539
      %v5638 = vpack.c.b16 %v5542, %v5540
      %5735 = vmatprep.subr.bf16.mxu0 %v5558
      %5736 = vmatpush1.bf16.msra.mxu0 %v5557
      %5737 = vmatprep.subr.bf16.mxu0 %v5556
      %5738 = vmatpush1.bf16.msra.mxu0 %v5555
      %5739 = vmatprep.subr.bf16.mxu0 %v5554
      %5740 = vmatpush1.bf16.msra.mxu0 %v5553
      %5741 = vmatprep.subr.bf16.mxu0 %v5552
      %5742 = vmatpush1.bf16.msra.mxu0 %v5551
      %5743 = vmatprep.subr.bf16.mxu0 %v5550
      %5744 = vmatpush1.bf16.msra.mxu0 %v5549
      %5745 = vmatprep.subr.bf16.mxu0 %v5548
      %5746 = vmatpush1.bf16.msra.mxu0 %v5547
      %5747 = vmatprep.subr.bf16.mxu0 %v5546
      %5748 = vmatpush1.bf16.msra.mxu0 %v5545
      %5749 = vmatprep.subr.bf16.mxu0 %v5544
      %5750 = vmatpush1.bf16.msra.mxu0 %v5543
      %5751 = vmatprep.subr.bf16.mxu0 %v5574
      %5752 = vmatpush2.bf16.msra.mxu0 %v5573
      %5753 = vmatprep.subr.bf16.mxu0 %v5572
      %5754 = vmatpush2.bf16.msra.mxu0 %v5571
      %5755 = vmatprep.subr.bf16.mxu0 %v5570
      %5756 = vmatpush2.bf16.msra.mxu0 %v5569
      %5757 = vmatprep.subr.bf16.mxu0 %v5568
      %5758 = vmatpush2.bf16.msra.mxu0 %v5567
      %5759 = vmatprep.subr.bf16.mxu0 %v5566
      %5760 = vmatpush2.bf16.msra.mxu0 %v5565
      %5761 = vmatprep.subr.bf16.mxu0 %v5564
      %5762 = vmatpush2.bf16.msra.mxu0 %v5563
      %5763 = vmatprep.subr.bf16.mxu0 %v5562
      %5764 = vmatpush2.bf16.msra.mxu0 %v5561
      %5765 = vmatprep.subr.bf16.mxu0 %v5560
      %5766 = vmatpush2.bf16.msra.mxu0 %v5559
      %5767 = vmatprep.mubr.bf16.mxu0 %v5142
      %5768 = vmatmul.mubr.bf16.gmra.mxu0 %v5141
      %v5769 = vpop.f32.mrf.mxu0
      %v5770 = vadd.f32 %v5248, %v5769
      %v5771 = vpop.f32.mrf.mxu0
      %v5772 = vadd.f32 %v5252, %v5771
      %v5773 = vpop.f32.mrf.mxu0
      %v5774 = vpop.f32.mrf.mxu0
      %5775 = vdwg.mxu0
      %5776 = vmatprep.subr.bf16.mxu0 %v5590
      %5777 = vmatpush1.bf16.msra.mxu0 %v5589
      %5778 = vmatprep.subr.bf16.mxu0 %v5588
      %5779 = vmatpush1.bf16.msra.mxu0 %v5587
      %5780 = vmatprep.subr.bf16.mxu0 %v5586
      %5781 = vmatpush1.bf16.msra.mxu0 %v5585
      %5782 = vmatprep.subr.bf16.mxu0 %v5584
      %5783 = vmatpush1.bf16.msra.mxu0 %v5583
      %5784 = vmatprep.subr.bf16.mxu0 %v5582
      %5785 = vmatpush1.bf16.msra.mxu0 %v5581
      %5786 = vmatprep.subr.bf16.mxu0 %v5580
      %5787 = vmatpush1.bf16.msra.mxu0 %v5579
      %5788 = vmatprep.subr.bf16.mxu0 %v5578
      %5789 = vmatpush1.bf16.msra.mxu0 %v5577
      %5790 = vmatprep.subr.bf16.mxu0 %v5576
      %5791 = vmatpush1.bf16.msra.mxu0 %v5575
      %5792 = vmatprep.subr.bf16.mxu0 %v5606
      %5793 = vmatpush2.bf16.msra.mxu0 %v5605
      %5794 = vmatprep.subr.bf16.mxu0 %v5604
      %5795 = vmatpush2.bf16.msra.mxu0 %v5603
      %5796 = vmatprep.subr.bf16.mxu0 %v5602
      %5797 = vmatpush2.bf16.msra.mxu0 %v5601
      %5798 = vmatprep.subr.bf16.mxu0 %v5600
      %5799 = vmatpush2.bf16.msra.mxu0 %v5599
      %5800 = vmatprep.subr.bf16.mxu0 %v5598
      %5801 = vmatpush2.bf16.msra.mxu0 %v5597
      %5802 = vmatprep.subr.bf16.mxu0 %v5596
      %5803 = vmatpush2.bf16.msra.mxu0 %v5595
      %5804 = vmatprep.subr.bf16.mxu0 %v5594
      %5805 = vmatpush2.bf16.msra.mxu0 %v5593
      %5806 = vmatprep.subr.bf16.mxu0 %v5592
      %5807 = vmatpush2.bf16.msra.mxu0 %v5591
      %5808 = vmatprep.mubr.bf16.mxu0 %v5144
      %5809 = vmatmul.mubr.bf16.gmra.mxu0 %v5143
      %v5810 = vpop.f32.mrf.mxu0
      %v5811 = vadd.f32 %v5770, %v5810
      %v5812 = vpop.f32.mrf.mxu0
      %v5813 = vadd.f32 %v5772, %v5812
      %v5814 = vpop.f32.mrf.mxu0
      %v5815 = vpop.f32.mrf.mxu0
      %5816 = vdwg.mxu0
      %5817 = vmatprep.subr.bf16.mxu0 %v5622
      %5818 = vmatpush1.bf16.msra.mxu0 %v5621
      %5819 = vmatprep.subr.bf16.mxu0 %v5620
      %5820 = vmatpush1.bf16.msra.mxu0 %v5619
      %5821 = vmatprep.subr.bf16.mxu0 %v5618
      %5822 = vmatpush1.bf16.msra.mxu0 %v5617
      %5823 = vmatprep.subr.bf16.mxu0 %v5616
      %5824 = vmatpush1.bf16.msra.mxu0 %v5615
      %5825 = vmatprep.subr.bf16.mxu0 %v5614
      %5826 = vmatpush1.bf16.msra.mxu0 %v5613
      %5827 = vmatprep.subr.bf16.mxu0 %v5612
      %5828 = vmatpush1.bf16.msra.mxu0 %v5611
      %5829 = vmatprep.subr.bf16.mxu0 %v5610
      %5830 = vmatpush1.bf16.msra.mxu0 %v5609
      %5831 = vmatprep.subr.bf16.mxu0 %v5608
      %5832 = vmatpush1.bf16.msra.mxu0 %v5607
      %5833 = vmatprep.subr.bf16.mxu0 %v5638
      %5834 = vmatpush2.bf16.msra.mxu0 %v5637
      %5835 = vmatprep.subr.bf16.mxu0 %v5636
      %5836 = vmatpush2.bf16.msra.mxu0 %v5635
      %5837 = vmatprep.subr.bf16.mxu0 %v5634
      %5838 = vmatpush2.bf16.msra.mxu0 %v5633
      %5839 = vmatprep.subr.bf16.mxu0 %v5632
      %5840 = vmatpush2.bf16.msra.mxu0 %v5631
      %5841 = vmatprep.subr.bf16.mxu0 %v5630
      %5842 = vmatpush2.bf16.msra.mxu0 %v5629
      %5843 = vmatprep.subr.bf16.mxu0 %v5628
      %5844 = vmatpush2.bf16.msra.mxu0 %v5627
      %5845 = vmatprep.subr.bf16.mxu0 %v5626
      %5846 = vmatpush2.bf16.msra.mxu0 %v5625
      %5847 = vmatprep.subr.bf16.mxu0 %v5624
      %5848 = vmatpush2.bf16.msra.mxu0 %v5623
      %5849 = vmatprep.mubr.bf16.mxu0 %v5146
      %5850 = vmatmul.mubr.bf16.gmra.mxu0 %v5145
      %v5851 = vpop.f32.mrf.mxu0
      %v5852 = vadd.f32 %v5811, %v5851
      %v5853 = vpop.f32.mrf.mxu0
      %v5854 = vadd.f32 %v5813, %v5853
      %v5855 = vpop.f32.mrf.mxu0
      %v5856 = vpop.f32.mrf.mxu0
      %5857 = vdwg.mxu0
      %v5858 = vmax.f32 %v5852, 0.0
      %v5859 = vmax.f32 %v5854, 0.0
      %v5860 = vpack.c.bf16 %v5858, %v5858
      %v5861 = vpack.c.bf16 %v5859, %v5859
      %v5862 = vld [vmem:[#allocation21] sm:$0xf]
      %v5863 = vld [vmem:[#allocation21 + $0x4] sm:$0xf]
      %v5864 = vld [vmem:[#allocation21 + $0x8] sm:$0xf]
      %v5865 = vld [vmem:[#allocation21 + $0xc] sm:$0xf]
      %v5866 = vld [vmem:[#allocation21 + $0x10] sm:$0xf]
      %v5867 = vld [vmem:[#allocation21 + $0x14] sm:$0xf]
      %v5868 = vld [vmem:[#allocation21 + $0x18] sm:$0xf]
      %v5869 = vld [vmem:[#allocation21 + $0x1c] sm:$0xf]
      %v5870 = vld [vmem:[#allocation21 + $0x20] sm:$0xf]
      %v5871 = vld [vmem:[#allocation21 + $0x24] sm:$0xf]
      %v5872 = vld [vmem:[#allocation21 + $0x28] sm:$0xf]
      %v5873 = vld [vmem:[#allocation21 + $0x2c] sm:$0xf]
      %v5874 = vld [vmem:[#allocation21 + $0x30] sm:$0xf]
      %v5875 = vld [vmem:[#allocation21 + $0x34] sm:$0xf]
      %v5876 = vld [vmem:[#allocation21 + $0x38] sm:$0xf]
      %v5877 = vld [vmem:[#allocation21 + $0x3c] sm:$0xf]
      %v5878 = vld [vmem:[#allocation21 + $0x40] sm:$0xf]
      %v5879 = vld [vmem:[#allocation21 + $0x44] sm:$0xf]
      %v5880 = vld [vmem:[#allocation21 + $0x48] sm:$0xf]
      %v5881 = vld [vmem:[#allocation21 + $0x4c] sm:$0xf]
      %v5882 = vld [vmem:[#allocation21 + $0x50] sm:$0xf]
      %v5883 = vld [vmem:[#allocation21 + $0x54] sm:$0xf]
      %v5884 = vld [vmem:[#allocation21 + $0x58] sm:$0xf]
      %v5885 = vld [vmem:[#allocation21 + $0x5c] sm:$0xf]
      %v5886 = vld [vmem:[#allocation21 + $0x60] sm:$0xf]
      %v5887 = vld [vmem:[#allocation21 + $0x64] sm:$0xf]
      %v5888 = vld [vmem:[#allocation21 + $0x68] sm:$0xf]
      %v5889 = vld [vmem:[#allocation21 + $0x6c] sm:$0xf]
      %v5890 = vld [vmem:[#allocation21 + $0x70] sm:$0xf]
      %v5891 = vld [vmem:[#allocation21 + $0x74] sm:$0xf]
      %v5892 = vld [vmem:[#allocation21 + $0x78] sm:$0xf]
      %v5893 = vld [vmem:[#allocation21 + $0x7c] sm:$0xf]
      %v5894 = vld [vmem:[#allocation22] sm:$0x1]
      %v5896 = vlaneseq
      %v5897 = vshrl.u32 %v5896, 7
      %v5898 = vsub.s32 0, %v5897
      %v5899 = vrot.slane %v5894, %v5898
      %v5933 = vunpack.c.l.b16 %v5862
      %v5934 = vunpack.c.l.b16 %v5863
      %v5935 = vunpack.c.l.b16 %v5864
      %v5936 = vunpack.c.l.b16 %v5865
      %v5937 = vunpack.c.l.b16 %v5866
      %v5938 = vunpack.c.l.b16 %v5867
      %v5939 = vunpack.c.l.b16 %v5868
      %v5940 = vunpack.c.l.b16 %v5869
      %v5941 = vunpack.c.l.b16 %v5870
      %v5942 = vunpack.c.l.b16 %v5871
      %v5943 = vunpack.c.l.b16 %v5872
      %v5944 = vunpack.c.l.b16 %v5873
      %v5945 = vunpack.c.l.b16 %v5874
      %v5946 = vunpack.c.l.b16 %v5875
      %v5947 = vunpack.c.l.b16 %v5876
      %v5948 = vunpack.c.l.b16 %v5877
      %v5949 = vunpack.c.l.b16 %v5878
      %v5950 = vunpack.c.l.b16 %v5879
      %v5951 = vunpack.c.l.b16 %v5880
      %v5952 = vunpack.c.l.b16 %v5881
      %v5953 = vunpack.c.l.b16 %v5882
      %v5954 = vunpack.c.l.b16 %v5883
      %v5955 = vunpack.c.l.b16 %v5884
      %v5956 = vunpack.c.l.b16 %v5885
      %v5957 = vunpack.c.l.b16 %v5886
      %v5958 = vunpack.c.l.b16 %v5887
      %v5959 = vunpack.c.l.b16 %v5888
      %v5960 = vunpack.c.l.b16 %v5889
      %v5961 = vunpack.c.l.b16 %v5890
      %v5962 = vunpack.c.l.b16 %v5891
      %v5963 = vunpack.c.l.b16 %v5892
      %v5964 = vunpack.c.l.b16 %v5893
      %v5965 = vpack.c.b16 %v5934, %v5933
      %v5966 = vpack.c.b16 %v5936, %v5935
      %v5967 = vpack.c.b16 %v5938, %v5937
      %v5968 = vpack.c.b16 %v5940, %v5939
      %v5969 = vpack.c.b16 %v5942, %v5941
      %v5970 = vpack.c.b16 %v5944, %v5943
      %v5971 = vpack.c.b16 %v5946, %v5945
      %v5972 = vpack.c.b16 %v5948, %v5947
      %v5973 = vpack.c.b16 %v5950, %v5949
      %v5974 = vpack.c.b16 %v5952, %v5951
      %v5975 = vpack.c.b16 %v5954, %v5953
      %v5976 = vpack.c.b16 %v5956, %v5955
      %v5977 = vpack.c.b16 %v5958, %v5957
      %v5978 = vpack.c.b16 %v5960, %v5959
      %v5979 = vpack.c.b16 %v5962, %v5961
      %v5980 = vpack.c.b16 %v5964, %v5963
      %5997 = vmatprep.subr.bf16.mxu0 0
      %5998 = vmatpush1.bf16.msra.mxu0 %v5972
      %5999 = vmatprep.subr.bf16.mxu0 0
      %6000 = vmatpush1.bf16.msra.mxu0 %v5971
      %6001 = vmatprep.subr.bf16.mxu0 0
      %6002 = vmatpush1.bf16.msra.mxu0 %v5970
      %6003 = vmatprep.subr.bf16.mxu0 0
      %6004 = vmatpush1.bf16.msra.mxu0 %v5969
      %6005 = vmatprep.subr.bf16.mxu0 0
      %6006 = vmatpush1.bf16.msra.mxu0 %v5968
      %6007 = vmatprep.subr.bf16.mxu0 0
      %6008 = vmatpush1.bf16.msra.mxu0 %v5967
      %6009 = vmatprep.subr.bf16.mxu0 0
      %6010 = vmatpush1.bf16.msra.mxu0 %v5966
      %6011 = vmatprep.subr.bf16.mxu0 0
      %6012 = vmatpush1.bf16.msra.mxu0 %v5965
      %6013 = vmatprep.subr.bf16.mxu0 0
      %6014 = vmatpush2.bf16.msra.mxu0 %v5980
      %6015 = vmatprep.subr.bf16.mxu0 0
      %6016 = vmatpush2.bf16.msra.mxu0 %v5979
      %6017 = vmatprep.subr.bf16.mxu0 0
      %6018 = vmatpush2.bf16.msra.mxu0 %v5978
      %6019 = vmatprep.subr.bf16.mxu0 0
      %6020 = vmatpush2.bf16.msra.mxu0 %v5977
      %6021 = vmatprep.subr.bf16.mxu0 0
      %6022 = vmatpush2.bf16.msra.mxu0 %v5976
      %6023 = vmatprep.subr.bf16.mxu0 0
      %6024 = vmatpush2.bf16.msra.mxu0 %v5975
      %6025 = vmatprep.subr.bf16.mxu0 0
      %6026 = vmatpush2.bf16.msra.mxu0 %v5974
      %6027 = vmatprep.subr.bf16.mxu0 0
      %6028 = vmatpush2.bf16.msra.mxu0 %v5973
      %6029 = vmatprep.mubr.bf16.mxu0 %v5861
      %6030 = vmatmul.mubr.bf16.gmra.mxu0 %v5860
      %v6031 = vpop.f32.mrf.mxu0
      %v6032 = vadd.f32 %v5899, %v6031
      %v6033 = vpop.f32.mrf.mxu0
      %v6034 = vpop.f32.mrf.mxu0
      %v6035 = vpop.f32.mrf.mxu0
      %6036 = vdwg.mxu0
      %6037 = vst [vmem:[#allocation24] sm:$0xff] %v6032
    $region109: #{tpu_custom_call.1} parent=1 // pred_fallthru
      _
    // Predicated region
    $region110: #{tpu_custom_call.1} parent=1 // pred_check
      _
    $region111: #{tpu_custom_call.1} parent=1 // pred_check_branch
      %6039 = sbr.rel (0) target = $region113
    $region112: #{tpu_custom_call.1} parent=1 // pred_region
      %s6041 = ssub.s32 128, 128
      %6042 = vsyncadd [#allocation6], %s6041
      %s6044 = sshll.u32 [#allocation24], 4
      %s6045 = int_to_ptr.vmem [resolvable:$true] %s6044
      %6047 = dma.vmem_to_hbm [thread:$0]  %s6045, 128, %s13, [#allocation6]
    $region113: #{tpu_custom_call.1} parent=1 // pred_fallthru
      _
    // Predicated region
    $region114: #{tpu_custom_call.1} parent=1 // pred_check
      _
    $region115: #{tpu_custom_call.1} parent=1 // pred_check_branch
      %6049 = sbr.rel (0) target = $region117
    $region116: #{tpu_custom_call.1} parent=1 // pred_region
      %6050 = dma.done [#allocation6], 128
    $region117: #{tpu_custom_call.1} parent=1 // pred_fallthru
      _
    %6051 = vsyncpa [#allocation5], 1
    %6052 = vsyncpa [#allocation8], 1
    %6053 = vsyncpa [#allocation11], 1
    %6054 = vsyncpa [#allocation14], 1
    %6055 = vsyncpa [#allocation17], 1
    %6056 = vsyncpa [#allocation20], 1
    %6057 = vsyncpa [#allocation23], 1
    %6058 = vsyncpa [#allocation6], 1

</llo_original>
